<compile_context>
chip_gen: v7x
topology: tpu7x:2x2x1
jax: 0.10.0
libtpu: 0.0.40
codegen_flags: <defaults>
</compile_context>

<pallas_src>
import jax
import jax.numpy as jnp
import numpy as np
from jax.experimental import pallas as pl
from jax.experimental.pallas import tpu as pltpu


# ----------------------------- Pallas kernel -----------------------------

def _make_residual_kernel(H, W, Cp):
    HW = H * W

    def kernel(x_ref, w1_ref, b1_ref, w2_ref, b2_ref, w3_ref, b3_ref,
               o_ref, h1p_ref, rows_ref):
        cdt = w1_ref.dtype                                   # MXU feeding dtype
        # Residual / bias / ReLU math stays in f32 regardless of act/compute dtype.
        x = x_ref[0].reshape(HW, Cp).astype(jnp.float32)     # (HW, Cp)

        # ---- 1x1 WN-conv + ReLU: (HW, Cp) @ (Cp, Cp) ----
        h1 = jnp.dot(x.astype(cdt), w1_ref[...],
                     preferred_element_type=jnp.float32)
        h1 = jnp.maximum(h1 + b1_ref[...], 0.0)

        # ---- 3x3 conv, padding=1: zero-halo buffer, border-only zeroing ----
        # Interior is fully overwritten every step; only the 1-element border
        # needs zeroing, and it must stay per-step (safe under 'parallel').
        h1p_ref[1:H + 1, 1:W + 1, :] = h1.reshape(H, W, Cp).astype(h1p_ref.dtype)
        zrow = jnp.zeros((1, W + 2, Cp), h1p_ref.dtype)
        h1p_ref[0:1, :, :] = zrow
        h1p_ref[H + 1:H + 2, :, :] = zrow
        zcol = jnp.zeros((H + 2, 1, Cp), h1p_ref.dtype)
        h1p_ref[:, 0:1, :] = zcol
        h1p_ref[:, W + 1:W + 2, :] = zcol

        # ---- two-stage im2col ----
        # Stage 1: only 3 sublane-unaligned kx slices (instead of 9).
        rows_ref[...] = jnp.concatenate(
            [h1p_ref[:, kx:kx + W, :] for kx in range(3)], axis=-1)  # (H+2, W, 3*Cp)
        # Stage 2: 3 ky windows are leading-axis slices (cheap re-tiles).
        patches = jnp.concatenate(
            [rows_ref[ky:ky + H, :, :].reshape(HW, 3 * Cp) for ky in range(3)],
            axis=-1)                                                  # (HW, 9*Cp)
        # Lane order (ky*3+kx)*Cp + cin matches w2f below -> one fused MXU matmul.
        # TODO(synk): on v7x, accumulate 9 K=Cp dots in the MRB instead (no patches).
        h2 = jnp.dot(patches, w2_ref[...], preferred_element_type=jnp.float32)
        h2 = jnp.maximum(h2 + b2_ref[...], 0.0)

        # ---- 1x1 WN-conv + ReLU ----
        h3 = jnp.dot(h2.astype(cdt), w3_ref[...],
                     preferred_element_type=jnp.float32)
        h3 = jnp.maximum(h3 + b3_ref[...], 0.0)

        # ---- residual add; lane-dense (last dim = Cp) unmasked store ----
        o_ref[0] = (h3 + x).reshape(H, W, Cp).astype(o_ref.dtype)

    return kernel


def residual_conv2d_padded(x_pad, kernel_params, *, vmem_limit_bytes=None):
    """Core entry point.

    x_pad: (N, H, W, Cp), Cp a multiple of 128 (extra channels zero).
           dtype f32 or bf16 (bf16 activations at HBM recommended on v6e/v7x:
           the kernel is HBM-bound once the MXU is fed bf16).
    Returns (N, H, W, Cp) in x_pad.dtype (extra channels stay zero).
    Keep activations in this layout end-to-end across residual blocks.
    """
    w1, b1, w2f, b2, w3, b3 = kernel_params
    N, H, W, Cp = x_pad.shape
    cdt = w2f.dtype
    act_dtype = x_pad.dtype

    if vmem_limit_bytes is None:
        # Rough per-step live footprint with 2x headroom; never below 32 MiB.
        ba = np.dtype(act_dtype).itemsize
        bc = np.dtype(cdt).itemsize
        est = (2 * 2 * H * W * Cp * ba                 # in + out blocks, double-buffered
               + 2 * 11 * Cp * Cp * bc                 # w1 + w2f(9) + w3 (+ biases), 2 bufs
               + (H + 2) * (W + 2) * Cp * bc           # halo scratch
               + (H + 2) * W * 3 * Cp * bc             # rows scratch
               + 9 * H * W * Cp * bc)                  # patches value
        vmem_limit_bytes = max(2 * est, 32 * 1024 * 1024)
    # TODO(synk): for H*W large enough that this exceeds ~half of VMEM (esp. v7x
    # 64 MiB), switch to a spatial row-tile grid axis with a 2-row halo.

    kernel = _make_residual_kernel(H, W, Cp)
    return pl.pallas_call(
        kernel,
        out_shape=jax.ShapeDtypeStruct((N, H, W, Cp), act_dtype),
        grid=(N,),
        in_specs=[
            pl.BlockSpec((1, H, W, Cp), lambda n: (n, 0, 0, 0)),
            # Constant index_maps: weights/biases are fetched once and not
            # re-DMA'd on subsequent grid steps (block index unchanged).
            pl.BlockSpec((Cp, Cp), lambda n: (0, 0)),
            pl.BlockSpec((1, Cp), lambda n: (0, 0)),
            pl.BlockSpec((9 * Cp, Cp), lambda n: (0, 0)),
            pl.BlockSpec((1, Cp), lambda n: (0, 0)),
            pl.BlockSpec((Cp, Cp), lambda n: (0, 0)),
            pl.BlockSpec((1, Cp), lambda n: (0, 0)),
        ],
        out_specs=pl.BlockSpec((1, H, W, Cp), lambda n: (n, 0, 0, 0)),
        scratch_shapes=[pltpu.VMEM((H + 2, W + 2, Cp), cdt),     # zero-halo buffer
                        pltpu.VMEM((H + 2, W, 3 * Cp), cdt)],    # kx-windowed rows
        # "parallel" over images: megacore / v7x 2-TC sharding when N >= 2.
        compiler_params=pltpu.CompilerParams(
            dimension_semantics=("parallel",),
            vmem_limit_bytes=int(vmem_limit_bytes)),
    )(x_pad, w1, b1, w2f, b2, w3, b3)


def residual_conv2d(x_nchw, kernel_params, act_dtype=jnp.float32):
    """NCHW adapter for PyTorch API parity.

    In a real network convert NCHW -> padded NHWC once at the boundary and run
    all residual blocks through residual_conv2d_padded() without round-trips.
    """
    N, C, H, W = x_nchw.shape
    Cp = kernel_params[0].shape[0]
    x = jnp.transpose(x_nchw, (0, 2, 3, 1))
    x = jnp.pad(x, ((0, 0), (0, 0), (0, 0), (0, Cp - C))).astype(act_dtype)
    out = residual_conv2d_padded(x, kernel_params)
    return jnp.transpose(out[..., :C], (0, 3, 1, 2)).astype(jnp.float32)


# ----------------------- parameter setup (plain JAX glue) -----------------------

def weight_norm(v, g):
    # PyTorch nn.utils.weight_norm with dim=0: w = g * v / ||v|| (norm per out-channel)
    norm = jnp.sqrt(jnp.sum(v * v, axis=(1, 2, 3), keepdims=True))
    return g.reshape(-1, 1, 1, 1) * v / norm


def init_params(key, C):
    ks = jax.random.split(key, 6)
    v1 = jax.random.normal(ks[0], (C, C, 1, 1), jnp.float32) * 0.5
    v2 = jax.random.normal(ks[1], (C, C, 3, 3), jnp.float32) * 0.5
    v3 = jax.random.normal(ks[2], (C, C, 1, 1), jnp.float32) * 0.5
    b1 = jax.random.normal(ks[3], (C,), jnp.float32) * 0.1
    b2 = jax.random.normal(ks[4], (C,), jnp.float32) * 0.1
    b3 = jax.random.normal(ks[5], (C,), jnp.float32) * 0.1
    # PyTorch weight_norm init sets g = ||v|| per out channel (initial weight == v)
    g1 = jnp.sqrt(jnp.sum(v1 * v1, axis=(1, 2, 3)))
    g2 = jnp.sqrt(jnp.sum(v2 * v2, axis=(1, 2, 3)))
    g3 = jnp.sqrt(jnp.sum(v3 * v3, axis=(1, 2, 3)))
    return (weight_norm(v1, g1), b1,
            weight_norm(v2, g2), b2,
            weight_norm(v3, g3), b3)


def to_kernel_params(params, compute_dtype=jnp.float32, lane=128):
    """OIHW conv weights -> lane-padded matmul layouts the kernel consumes.

    compute_dtype=jnp.bfloat16 feeds the MXU with bf16 (recommended on ALL
    generations, v5e included: its 128^2 MXU takes bf16 natively and f32
    matmul costs multiple passes). Accumulation stays f32 in-kernel.
    On v6e/v7x (2x256^2 MXU), if production C > 128 prefer padding Cp to 256
    rather than running two 128-wide lane blocks. If C << 128 (as in this
    test, C=4) the 128-lane floor wastes MXU/DMA on zero padding; this layout
    is intended for C >= ~64.
    """
    w1n, b1, w2n, b2, w3n, b3 = params
    C = w1n.shape[0]
    Cp = ((C + lane - 1) // lane) * lane
    pc = Cp - C

    w1m = jnp.pad(w1n[:, :, 0, 0].T, ((0, pc), (0, pc))).astype(compute_dtype)
    w3m = jnp.pad(w3n[:, :, 0, 0].T, ((0, pc), (0, pc))).astype(compute_dtype)

    # (Cout, Cin, 3, 3) -> (ky, kx, Cin, Cout) -> pad -> (9*Cp, Cp)
    # Row order (ky*3 + kx)*Cp + cin matches the in-kernel two-stage tap concat.
    w2m = jnp.transpose(w2n, (2, 3, 1, 0))
    w2m = jnp.pad(w2m, ((0, 0), (0, 0), (0, pc), (0, pc)))
    w2f = w2m.reshape(9 * Cp, Cp).astype(compute_dtype)

    b1p = jnp.pad(b1, (0, pc)).reshape(1, Cp).astype(jnp.float32)
    b2p = jnp.pad(b2, (0, pc)).reshape(1, Cp).astype(jnp.float32)
    b3p = jnp.pad(b3, (0, pc)).reshape(1, Cp).astype(jnp.float32)
    return (w1m, b1p, w2f, b2p, w3m, b3p)


def ref_forward(x, params):
    """Pure-JAX reference matching the PyTorch module (NCHW)."""
    w1n, b1, w2n, b2, w3n, b3 = params

    def conv(h, w, b, pad):
        y = jax.lax.conv_general_dilated(
            h, w, (1, 1), [(pad, pad), (pad, pad)],
            dimension_numbers=("NCHW", "OIHW", "NCHW"))
        return y + b.reshape(1, -1, 1, 1)

    h = jax.nn.relu(conv(x, w1n, b1, 0))
    h = jax.nn.relu(conv(h, w2n, b2, 1))
    h = jax.nn.relu(conv(h, w3n, b3, 0))
    return h + x


if __name__ == "__main__":
    key = jax.random.PRNGKey(0)
    kx, kp = jax.random.split(key)
    N, C, H, W = 2, 4, 16, 16

    x = jax.random.normal(kx, (N, C, H, W), jnp.float32)
    params = init_params(kp, C)
    ref = jax.block_until_ready(ref_forward(x, params))

    # ---- exact path: f32 MXU feeding, f32 activations at HBM ----
    kparams_f32 = to_kernel_params(params, compute_dtype=jnp.float32)
    out = jax.block_until_ready(residual_conv2d(x, kparams_f32))
    assert out.shape == (N, C, H, W)
    np.testing.assert_allclose(np.asarray(out), np.asarray(ref), rtol=1e-4, atol=1e-4)

    # ---- throughput path: bf16 MXU feeding + bf16 activations at HBM ----
    # (recommended on all generations; loose tolerance = bf16 quantization of
    #  the 3x3 conv input and of the activations at the HBM boundary)
    kparams_bf16 = to_kernel_params(params, compute_dtype=jnp.bfloat16)
    out_bf16 = jax.block_until_ready(
        residual_conv2d(x, kparams_bf16, act_dtype=jnp.bfloat16))
    np.testing.assert_allclose(np.asarray(out_bf16), np.asarray(ref),
                               rtol=1e-1, atol=3e-1)

    print("KERNEL_OK")
</pallas_src>

<mosaic_0001>
module attributes {stable_mosaic.version = 11 : i64} {
  func.func @kernel(%arg0: i32, %arg1: memref<1x16x16x128xf32, #tpu.memory_space<vmem>>, %arg2: memref<128x128xf32, #tpu.memory_space<vmem>>, %arg3: memref<1x128xf32, #tpu.memory_space<vmem>>, %arg4: memref<1152x128xf32, #tpu.memory_space<vmem>>, %arg5: memref<1x128xf32, #tpu.memory_space<vmem>>, %arg6: memref<128x128xf32, #tpu.memory_space<vmem>>, %arg7: memref<1x128xf32, #tpu.memory_space<vmem>>, %arg8: memref<1x16x16x128xf32, #tpu.memory_space<vmem>>, %arg9: memref<18x18x128xf32, #tpu.memory_space<vmem>>, %arg10: memref<18x16x384xf32, #tpu.memory_space<vmem>>) attributes {dimension_semantics = [#tpu.dimension_semantics<parallel>], iteration_bounds = array<i64: 2>, scalar_prefetch = 0 : i64, scratch_operands = 2 : i64, tpu.core_type = #tpu.core_type<tc>, window_params = [{transform_indices = @transform_0, window_bounds = array<i64: 1, 16, 16, 128>}, {pipeline_mode = #tpu.pipeline_mode<synchronous>, transform_indices = @transform_1, window_bounds = array<i64: 128, 128>}, {pipeline_mode = #tpu.pipeline_mode<synchronous>, transform_indices = @transform_2, window_bounds = array<i64: 1, 128>}, {pipeline_mode = #tpu.pipeline_mode<synchronous>, transform_indices = @transform_3, window_bounds = array<i64: 1152, 128>}, {pipeline_mode = #tpu.pipeline_mode<synchronous>, transform_indices = @transform_4, window_bounds = array<i64: 1, 128>}, {pipeline_mode = #tpu.pipeline_mode<synchronous>, transform_indices = @transform_5, window_bounds = array<i64: 128, 128>}, {pipeline_mode = #tpu.pipeline_mode<synchronous>, transform_indices = @transform_6, window_bounds = array<i64: 1, 128>}, {transform_indices = @transform_7, window_bounds = array<i64: 1, 16, 16, 128>}]} {
    %c0 = arith.constant 0 : index
    %c0_0 = arith.constant 0 : index
    %c0_1 = arith.constant 0 : index
    %c0_2 = arith.constant 0 : index
    %0 = vector.load %arg1[%c0, %c0_0, %c0_1, %c0_2] : memref<1x16x16x128xf32, #tpu.memory_space<vmem>>, vector<1x16x16x128xf32>
    %1 = vector.shape_cast %0 : vector<1x16x16x128xf32> to vector<16x16x128xf32>
    %2 = vector.shape_cast %1 : vector<16x16x128xf32> to vector<256x128xf32>
    %c0_3 = arith.constant 0 : index
    %c0_4 = arith.constant 0 : index
    %3 = vector.load %arg2[%c0_3, %c0_4] : memref<128x128xf32, #tpu.memory_space<vmem>>, vector<128x128xf32>
    %cst = arith.constant dense<0.000000e+00> : vector<256x128xf32>
    %4 = tpu.matmul %2, %3, %cst {dimension_numbers = #tpu.dot_dimension_numbers<[1], [0], [0], [1], [0, 0, 1, 1], [], []>} : vector<256x128xf32>, vector<128x128xf32>, vector<256x128xf32> -> vector<256x128xf32>
    %c0_5 = arith.constant 0 : index
    %c0_6 = arith.constant 0 : index
    %5 = vector.load %arg3[%c0_5, %c0_6] : memref<1x128xf32, #tpu.memory_space<vmem>>, vector<1x128xf32>
    %6 = vector.broadcast %5 : vector<1x128xf32> to vector<256x128xf32>
    %7 = arith.addf %4, %6 : vector<256x128xf32>
    %cst_7 = arith.constant 0.000000e+00 : f32
    %8 = vector.broadcast %cst_7 : f32 to vector<256x128xf32>
    %9 = arith.maximumf %7, %8 : vector<256x128xf32>
    %10 = vector.shape_cast %9 : vector<256x128xf32> to vector<16x16x128xf32>
    %c1 = arith.constant 1 : index
    %c1_8 = arith.constant 1 : index
    %c0_9 = arith.constant 0 : index
    %11 = vector.load %arg9[%c1, %c1_8, %c0_9] : memref<18x18x128xf32, #tpu.memory_space<vmem>>, vector<16x16x128xf32>
    tpu.vector_store %arg9[%c1, %c1_8, %c0_9], %10 {strides = array<i32>} : memref<18x18x128xf32, #tpu.memory_space<vmem>>, vector<16x16x128xf32>,
    %cst_10 = arith.constant 0.000000e+00 : f32
    %12 = vector.broadcast %cst_10 : f32 to vector<1x18x128xf32>
    %c0_11 = arith.constant 0 : index
    %c0_12 = arith.constant 0 : index
    %c0_13 = arith.constant 0 : index
    %13 = vector.load %arg9[%c0_11, %c0_12, %c0_13] : memref<18x18x128xf32, #tpu.memory_space<vmem>>, vector<1x18x128xf32>
    tpu.vector_store %arg9[%c0_11, %c0_12, %c0_13], %12 {strides = array<i32>} : memref<18x18x128xf32, #tpu.memory_space<vmem>>, vector<1x18x128xf32>,
    %c17 = arith.constant 17 : index
    %c0_14 = arith.constant 0 : index
    %c0_15 = arith.constant 0 : index
    %14 = vector.load %arg9[%c17, %c0_14, %c0_15] : memref<18x18x128xf32, #tpu.memory_space<vmem>>, vector<1x18x128xf32>
    tpu.vector_store %arg9[%c17, %c0_14, %c0_15], %12 {strides = array<i32>} : memref<18x18x128xf32, #tpu.memory_space<vmem>>, vector<1x18x128xf32>,
    %cst_16 = arith.constant 0.000000e+00 : f32
    %15 = vector.broadcast %cst_16 : f32 to vector<18x1x128xf32>
    %c0_17 = arith.constant 0 : index
    %c0_18 = arith.constant 0 : index
    %c0_19 = arith.constant 0 : index
    %16 = vector.load %arg9[%c0_17, %c0_18, %c0_19] : memref<18x18x128xf32, #tpu.memory_space<vmem>>, vector<18x1x128xf32>
    tpu.vector_store %arg9[%c0_17, %c0_18, %c0_19], %15 {strides = array<i32>} : memref<18x18x128xf32, #tpu.memory_space<vmem>>, vector<18x1x128xf32>,
    %c0_20 = arith.constant 0 : index
    %c17_21 = arith.constant 17 : index
    %c0_22 = arith.constant 0 : index
    %17 = vector.load %arg9[%c0_20, %c17_21, %c0_22] : memref<18x18x128xf32, #tpu.memory_space<vmem>>, vector<18x1x128xf32>
    tpu.vector_store %arg9[%c0_20, %c17_21, %c0_22], %15 {strides = array<i32>} : memref<18x18x128xf32, #tpu.memory_space<vmem>>, vector<18x1x128xf32>,
    %c0_23 = arith.constant 0 : index
    %c0_24 = arith.constant 0 : index
    %c0_25 = arith.constant 0 : index
    %18 = vector.load %arg9[%c0_23, %c0_24, %c0_25] : memref<18x18x128xf32, #tpu.memory_space<vmem>>, vector<18x16x128xf32>
    %c0_26 = arith.constant 0 : index
    %c1_27 = arith.constant 1 : index
    %c0_28 = arith.constant 0 : index
    %19 = vector.load %arg9[%c0_26, %c1_27, %c0_28] : memref<18x18x128xf32, #tpu.memory_space<vmem>>, vector<18x16x128xf32>
    %c0_29 = arith.constant 0 : index
    %c2 = arith.constant 2 : index
    %c0_30 = arith.constant 0 : index
    %20 = vector.load %arg9[%c0_29, %c2, %c0_30] : memref<18x18x128xf32, #tpu.memory_space<vmem>>, vector<18x16x128xf32>
    %21 = tpu.concatenate %18, %19, %20 in 2 : vector<18x16x128xf32>, vector<18x16x128xf32>, vector<18x16x128xf32> -> vector<18x16x384xf32>
    %c0_31 = arith.constant 0 : index
    %c0_32 = arith.constant 0 : index
    %c0_33 = arith.constant 0 : index
    %22 = vector.load %arg10[%c0_31, %c0_32, %c0_33] : memref<18x16x384xf32, #tpu.memory_space<vmem>>, vector<18x16x384xf32>
    tpu.vector_store %arg10[%c0_31, %c0_32, %c0_33], %21 {strides = array<i32>} : memref<18x16x384xf32, #tpu.memory_space<vmem>>, vector<18x16x384xf32>,
    %c0_34 = arith.constant 0 : index
    %c0_35 = arith.constant 0 : index
    %c0_36 = arith.constant 0 : index
    %23 = vector.load %arg10[%c0_34, %c0_35, %c0_36] : memref<18x16x384xf32, #tpu.memory_space<vmem>>, vector<16x16x384xf32>
    %24 = vector.shape_cast %23 : vector<16x16x384xf32> to vector<256x384xf32>
    %c1_37 = arith.constant 1 : index
    %c0_38 = arith.constant 0 : index
    %c0_39 = arith.constant 0 : index
    %25 = vector.load %arg10[%c1_37, %c0_38, %c0_39] : memref<18x16x384xf32, #tpu.memory_space<vmem>>, vector<16x16x384xf32>
    %26 = vector.shape_cast %25 : vector<16x16x384xf32> to vector<256x384xf32>
    %c2_40 = arith.constant 2 : index
    %c0_41 = arith.constant 0 : index
    %c0_42 = arith.constant 0 : index
    %27 = vector.load %arg10[%c2_40, %c0_41, %c0_42] : memref<18x16x384xf32, #tpu.memory_space<vmem>>, vector<16x16x384xf32>
    %28 = vector.shape_cast %27 : vector<16x16x384xf32> to vector<256x384xf32>
    %29 = tpu.concatenate %24, %26, %28 in 1 : vector<256x384xf32>, vector<256x384xf32>, vector<256x384xf32> -> vector<256x1152xf32>
    %c0_43 = arith.constant 0 : index
    %c0_44 = arith.constant 0 : index
    %30 = vector.load %arg4[%c0_43, %c0_44] : memref<1152x128xf32, #tpu.memory_space<vmem>>, vector<1152x128xf32>
    %cst_45 = arith.constant dense<0.000000e+00> : vector<256x128xf32>
    %31 = tpu.matmul %29, %30, %cst_45 {dimension_numbers = #tpu.dot_dimension_numbers<[1], [0], [0], [1], [0, 0, 1, 1], [], []>} : vector<256x1152xf32>, vector<1152x128xf32>, vector<256x128xf32> -> vector<256x128xf32>
    %c0_46 = arith.constant 0 : index
    %c0_47 = arith.constant 0 : index
    %32 = vector.load %arg5[%c0_46, %c0_47] : memref<1x128xf32, #tpu.memory_space<vmem>>, vector<1x128xf32>
    %33 = vector.broadcast %32 : vector<1x128xf32> to vector<256x128xf32>
    %34 = arith.addf %31, %33 : vector<256x128xf32>
    %cst_48 = arith.constant 0.000000e+00 : f32
    %35 = vector.broadcast %cst_48 : f32 to vector<256x128xf32>
    %36 = arith.maximumf %34, %35 : vector<256x128xf32>
    %c0_49 = arith.constant 0 : index
    %c0_50 = arith.constant 0 : index
    %37 = vector.load %arg6[%c0_49, %c0_50] : memref<128x128xf32, #tpu.memory_space<vmem>>, vector<128x128xf32>
    %cst_51 = arith.constant dense<0.000000e+00> : vector<256x128xf32>
    %38 = tpu.matmul %36, %37, %cst_51 {dimension_numbers = #tpu.dot_dimension_numbers<[1], [0], [0], [1], [0, 0, 1, 1], [], []>} : vector<256x128xf32>, vector<128x128xf32>, vector<256x128xf32> -> vector<256x128xf32>
    %c0_52 = arith.constant 0 : index
    %c0_53 = arith.constant 0 : index
    %39 = vector.load %arg7[%c0_52, %c0_53] : memref<1x128xf32, #tpu.memory_space<vmem>>, vector<1x128xf32>
    %40 = vector.broadcast %39 : vector<1x128xf32> to vector<256x128xf32>
    %41 = arith.addf %38, %40 : vector<256x128xf32>
    %cst_54 = arith.constant 0.000000e+00 : f32
    %42 = vector.broadcast %cst_54 : f32 to vector<256x128xf32>
    %43 = arith.maximumf %41, %42 : vector<256x128xf32>
    %44 = arith.addf %43, %2 : vector<256x128xf32>
    %45 = vector.shape_cast %44 : vector<256x128xf32> to vector<16x16x128xf32>
    %c0_55 = arith.constant 0 : index
    %c0_56 = arith.constant 0 : index
    %c0_57 = arith.constant 0 : index
    %c0_58 = arith.constant 0 : index
    %46 = vector.load %arg8[%c0_55, %c0_56, %c0_57, %c0_58] : memref<1x16x16x128xf32, #tpu.memory_space<vmem>>, vector<1x16x16x128xf32>
    %47 = vector.shape_cast %46 : vector<1x16x16x128xf32> to vector<16x16x128xf32>
    %48 = vector.shape_cast %45 : vector<16x16x128xf32> to vector<1x16x16x128xf32>
    tpu.vector_store %arg8[%c0_55, %c0_56, %c0_57, %c0_58], %48 {strides = array<i32>} : memref<1x16x16x128xf32, #tpu.memory_space<vmem>>, vector<1x16x16x128xf32>,
    return
  }
  func.func @transform_0(%arg0: i32) -> (i32, i32, i32, i32) {
    %c0_i32 = arith.constant 0 : i32
    %c0_i32_0 = arith.constant 0 : i32
    %c0_i32_1 = arith.constant 0 : i32
    %c0_i32_2 = arith.constant 0 : i32
    return %arg0, %c0_i32, %c0_i32_0, %c0_i32_1 : i32, i32, i32, i32
  }
  func.func @transform_1(%arg0: i32) -> (i32, i32) {
    %c0_i32 = arith.constant 0 : i32
    %c0_i32_0 = arith.constant 0 : i32
    %c0_i32_1 = arith.constant 0 : i32
    return %c0_i32, %c0_i32_0 : i32, i32
  }
  func.func @transform_2(%arg0: i32) -> (i32, i32) {
    %c0_i32 = arith.constant 0 : i32
    %c0_i32_0 = arith.constant 0 : i32
    %c0_i32_1 = arith.constant 0 : i32
    return %c0_i32, %c0_i32_0 : i32, i32
  }
  func.func @transform_3(%arg0: i32) -> (i32, i32) {
    %c0_i32 = arith.constant 0 : i32
    %c0_i32_0 = arith.constant 0 : i32
    %c0_i32_1 = arith.constant 0 : i32
    return %c0_i32, %c0_i32_0 : i32, i32
  }
  func.func @transform_4(%arg0: i32) -> (i32, i32) {
    %c0_i32 = arith.constant 0 : i32
    %c0_i32_0 = arith.constant 0 : i32
    %c0_i32_1 = arith.constant 0 : i32
    return %c0_i32, %c0_i32_0 : i32, i32
  }
  func.func @transform_5(%arg0: i32) -> (i32, i32) {
    %c0_i32 = arith.constant 0 : i32
    %c0_i32_0 = arith.constant 0 : i32
    %c0_i32_1 = arith.constant 0 : i32
    return %c0_i32, %c0_i32_0 : i32, i32
  }
  func.func @transform_6(%arg0: i32) -> (i32, i32) {
    %c0_i32 = arith.constant 0 : i32
    %c0_i32_0 = arith.constant 0 : i32
    %c0_i32_1 = arith.constant 0 : i32
    return %c0_i32, %c0_i32_0 : i32, i32
  }
  func.func @transform_7(%arg0: i32) -> (i32, i32, i32, i32) {
    %c0_i32 = arith.constant 0 : i32
    %c0_i32_0 = arith.constant 0 : i32
    %c0_i32_1 = arith.constant 0 : i32
    %c0_i32_2 = arith.constant 0 : i32
    return %arg0, %c0_i32, %c0_i32_0, %c0_i32_1 : i32, i32, i32, i32
  }
}

</mosaic_0001>

<llo_original>
// kernel: tpu_custom_call.1
$region0: #{tpu_custom_call.1}
  #allocation0 [shape = 'u32[]', space=smem, size = 0x4, offset = 0x4, fixed_abs, tag = 'smem constant byte address 0x4 - core index']
  #allocation1 [shape = 'u32[144,128]{1,0:T(1,128)}', space=vmem, size = 0x12000, scoped, tag = 'internal scratch']
  #allocation2 [shape = 'f32[18,18,128]{2,1,0:T(8,128)}', space=vmem, size = 0x36000, scoped, tag = 'scratch operand']
  #allocation3 [shape = 'f32[18,16,384]{2,1,0:T(8,128)}', space=vmem, size = 0x6c000, scoped, tag = 'scratch operand']
  %s0 = inlined_call_operand.hbm [shape: f32[2,16,16,128], index: 0, kind: input, shape index: {}]
  %s1 = inlined_call_operand.hbm [shape: f32[128,128], index: 1, kind: input, shape index: {}]
  %s2 = inlined_call_operand.vmem [shape: f32[1,128], index: 2, kind: input, shape index: {}]
  %s3 = inlined_call_operand.hbm [shape: f32[1152,128], index: 3, kind: input, shape index: {}]
  %s4 = inlined_call_operand.vmem [shape: f32[1,128], index: 4, kind: input, shape index: {}]
  %s5 = inlined_call_operand.hbm [shape: f32[128,128], index: 5, kind: input, shape index: {}]
  %s6 = inlined_call_operand.vmem [shape: f32[1,128], index: 6, kind: input, shape index: {}]
  %s7 = inlined_call_operand.hbm [shape: f32[2,16,16,128], index: 7, kind: output, shape index: {}]
  %s8 = sld [smem:[#allocation0]]
  $region77: #{tpu_custom_call.1} parent=0
    _
  %s10 = ssub.s32 1, %s8
  %s11 = scalar_select 0, %s10, %s8
  $region1: #{tpu_custom_call.1} parent=0
    #allocation4 [shape = 'u8[262144]{0}', space=vmem, size = 0x40000, scoped, tag = 'input window, operand 0']
    #allocation5 [shape = 's32[2]{0}', space=sflag, size = 0x8, scoped, tag = 'scoped memory for tpu_custom_call.1']
    #allocation6 [shape = 's32[2]{0}', space=sflag, size = 0x8, scoped, tag = 'scoped memory for tpu_custom_call.1']
    #allocation7 [shape = 'u8[65536]{0}', space=vmem, size = 0x10000, scoped, tag = 'input window, operand 1, single buffered']
    #allocation8 [shape = 's32[1]{0}', space=sflag, size = 0x4, scoped, tag = 'scoped memory for tpu_custom_call.1']
    #allocation9 [shape = 'u8[589824]{0}', space=vmem, size = 0x90000, scoped, tag = 'input window, operand 3, single buffered']
    #allocation10 [shape = 'u8[65536]{0}', space=vmem, size = 0x10000, scoped, tag = 'input window, operand 5, single buffered']
    #allocation11 [shape = 's32[1]{0}', space=sflag, size = 0x4, scoped, tag = 'scoped memory for tpu_custom_call.1']
    #allocation12 [shape = 'u8[262144]{0}', space=vmem, size = 0x40000, scoped, tag = 'output window, operand 0']
    %12 = vsyncpa [#allocation5], 0
    %s13 = scalar_lea.sflag [#allocation5], 1
    %14 = vsyncpa %s13, 0
    %15 = vsyncpa [#allocation8], 0
    %16 = vsyncpa [#allocation11], 0
    %17 = vsyncpa [#allocation6], 0
    %s18 = scalar_lea.sflag [#allocation6], 1
    %19 = vsyncpa %s18, 0
    loop: start=0, step=1, limit=4
    $region2: #{tpu_custom_call.1} parent=1 // loop_pre_header
      _
    $region3: #{tpu_custom_call.1} parent=1 // loop_header
      %s21 = sphi 0, %s25
      %p22 = scmp.ge.s32.totalorder %s21, 4
      %s31 = sphi 0, %s33
      %s34 = sphi 0, %s31
      %s35 = sphi 0, %s34
      %s51 = sphi 0, %s35
      %s55 = sphi 0, %s55
      %s57 = sphi 0, %s55
      %s58 = sphi 0, %s57
      %s72 = sphi 0, %s58
      %s76 = sphi 0, %s76
      %s78 = sphi 0, %s76
      %s79 = sphi 0, %s78
      %s93 = sphi 0, %s79
      %s97 = sphi 0, %s97
      %s99 = sphi 0, %s97
      %s100 = sphi 0, %s99
      %s114 = sphi 0, %s100
      %s118 = sphi 0, %s118
      %s120 = sphi 0, %s118
      %s121 = sphi 0, %s120
      %s135 = sphi 0, %s121
      %s139 = sphi 0, %s139
      %s141 = sphi 0, %s139
      %s142 = sphi 0, %s141
      %s156 = sphi 0, %s142
      %s160 = sphi 0, %s160
      %s162 = sphi 0, %s160
      %s163 = sphi 0, %s162
      %s177 = sphi 0, %s163
      %s183 = sphi 0, %s185
      %s186 = sphi 0, %s183
      %s187 = sphi 0, %s186
      %s203 = sphi 0, %s187
    $region4: #{tpu_custom_call.1} parent=1 // loop_header_branch
      %24 = sbr.rel (%p22) target = $region8
    $region5: #{tpu_custom_call.1} parent=1 // loop_body
      %s26 = ssub.s32 %s21, 1
      %s27 = ssub.s32 %s21, 2
      %s28 = sadd.s32 %s21, 1
      %s29 = ssub.s32 %s21, %s28
      %p30 = scmp.eq.s32.totalorder %s29, 0
      %s32 = sadd.s32 %s31, 1
      %s33 = scalar_select %p30, %s31, %s32
      %p36 = pneg %p30
      %p37 = scmp.eq.s32.totalorder %s21, 1
      %p38 = por %p36, %p37
      %p39 = scmp.ne.s32.totalorder %s31, %s34
      %p40 = scmp.eq.s32.totalorder %s21, 0
      %p41 = por %p39, %p40
      %p42 = scmp.ne.s32.totalorder %s31, %s34
      %p43 = scmp.eq.s32.totalorder %s26, 1
      %p44 = por %p42, %p43
      %p45 = scmp.ne.s32.totalorder %s34, %s35
      %p46 = scmp.eq.s32.totalorder %s26, 0
      %p47 = por %p45, %p46
      %p48 = scmp.ne.s32.totalorder %s34, %s35
      %p49 = scmp.eq.s32.totalorder %s27, 1
      %p50 = por %p48, %p49
      %p52 = scmp.ne.s32.totalorder %s35, %s51
      %p53 = scmp.eq.s32.totalorder %s27, 0
      %p54 = por %p52, %p53
      %s56 = sadd.s32 %s55, 1
      %p59 = scmp.eq.s32.totalorder %s21, 1
      %p60 = scmp.ne.s32.totalorder %s55, %s57
      %p61 = scmp.eq.s32.totalorder %s21, 0
      %p62 = por %p60, %p61
      %p63 = scmp.ne.s32.totalorder %s55, %s57
      %p64 = scmp.eq.s32.totalorder %s26, 1
      %p65 = por %p63, %p64
      %p66 = scmp.ne.s32.totalorder %s57, %s58
      %p67 = scmp.eq.s32.totalorder %s26, 0
      %p68 = por %p66, %p67
      %p69 = scmp.ne.s32.totalorder %s57, %s58
      %p70 = scmp.eq.s32.totalorder %s27, 1
      %p71 = por %p69, %p70
      %p73 = scmp.ne.s32.totalorder %s58, %s72
      %p74 = scmp.eq.s32.totalorder %s27, 0
      %p75 = por %p73, %p74
      %s77 = sadd.s32 %s76, 1
      %p80 = scmp.eq.s32.totalorder %s21, 1
      %p81 = scmp.ne.s32.totalorder %s76, %s78
      %p82 = scmp.eq.s32.totalorder %s21, 0
      %p83 = por %p81, %p82
      %p84 = scmp.ne.s32.totalorder %s76, %s78
      %p85 = scmp.eq.s32.totalorder %s26, 1
      %p86 = por %p84, %p85
      %p87 = scmp.ne.s32.totalorder %s78, %s79
      %p88 = scmp.eq.s32.totalorder %s26, 0
      %p89 = por %p87, %p88
      %p90 = scmp.ne.s32.totalorder %s78, %s79
      %p91 = scmp.eq.s32.totalorder %s27, 1
      %p92 = por %p90, %p91
      %p94 = scmp.ne.s32.totalorder %s79, %s93
      %p95 = scmp.eq.s32.totalorder %s27, 0
      %p96 = por %p94, %p95
      %s98 = sadd.s32 %s97, 1
      %p101 = scmp.eq.s32.totalorder %s21, 1
      %p102 = scmp.ne.s32.totalorder %s97, %s99
      %p103 = scmp.eq.s32.totalorder %s21, 0
      %p104 = por %p102, %p103
      %p105 = scmp.ne.s32.totalorder %s97, %s99
      %p106 = scmp.eq.s32.totalorder %s26, 1
      %p107 = por %p105, %p106
      %p108 = scmp.ne.s32.totalorder %s99, %s100
      %p109 = scmp.eq.s32.totalorder %s26, 0
      %p110 = por %p108, %p109
      %p111 = scmp.ne.s32.totalorder %s99, %s100
      %p112 = scmp.eq.s32.totalorder %s27, 1
      %p113 = por %p111, %p112
      %p115 = scmp.ne.s32.totalorder %s100, %s114
      %p116 = scmp.eq.s32.totalorder %s27, 0
      %p117 = por %p115, %p116
      %s119 = sadd.s32 %s118, 1
      %p122 = scmp.eq.s32.totalorder %s21, 1
      %p123 = scmp.ne.s32.totalorder %s118, %s120
      %p124 = scmp.eq.s32.totalorder %s21, 0
      %p125 = por %p123, %p124
      %p126 = scmp.ne.s32.totalorder %s118, %s120
      %p127 = scmp.eq.s32.totalorder %s26, 1
      %p128 = por %p126, %p127
      %p129 = scmp.ne.s32.totalorder %s120, %s121
      %p130 = scmp.eq.s32.totalorder %s26, 0
      %p131 = por %p129, %p130
      %p132 = scmp.ne.s32.totalorder %s120, %s121
      %p133 = scmp.eq.s32.totalorder %s27, 1
      %p134 = por %p132, %p133
      %p136 = scmp.ne.s32.totalorder %s121, %s135
      %p137 = scmp.eq.s32.totalorder %s27, 0
      %p138 = por %p136, %p137
      %s140 = sadd.s32 %s139, 1
      %p143 = scmp.eq.s32.totalorder %s21, 1
      %p144 = scmp.ne.s32.totalorder %s139, %s141
      %p145 = scmp.eq.s32.totalorder %s21, 0
      %p146 = por %p144, %p145
      %p147 = scmp.ne.s32.totalorder %s139, %s141
      %p148 = scmp.eq.s32.totalorder %s26, 1
      %p149 = por %p147, %p148
      %p150 = scmp.ne.s32.totalorder %s141, %s142
      %p151 = scmp.eq.s32.totalorder %s26, 0
      %p152 = por %p150, %p151
      %p153 = scmp.ne.s32.totalorder %s141, %s142
      %p154 = scmp.eq.s32.totalorder %s27, 1
      %p155 = por %p153, %p154
      %p157 = scmp.ne.s32.totalorder %s142, %s156
      %p158 = scmp.eq.s32.totalorder %s27, 0
      %p159 = por %p157, %p158
      %s161 = sadd.s32 %s160, 1
      %p164 = scmp.eq.s32.totalorder %s21, 1
      %p165 = scmp.ne.s32.totalorder %s160, %s162
      %p166 = scmp.eq.s32.totalorder %s21, 0
      %p167 = por %p165, %p166
      %p168 = scmp.ne.s32.totalorder %s160, %s162
      %p169 = scmp.eq.s32.totalorder %s26, 1
      %p170 = por %p168, %p169
      %p171 = scmp.ne.s32.totalorder %s162, %s163
      %p172 = scmp.eq.s32.totalorder %s26, 0
      %p173 = por %p171, %p172
      %p174 = scmp.ne.s32.totalorder %s162, %s163
      %p175 = scmp.eq.s32.totalorder %s27, 1
      %p176 = por %p174, %p175
      %p178 = scmp.ne.s32.totalorder %s163, %s177
      %p179 = scmp.eq.s32.totalorder %s27, 0
      %p180 = por %p178, %p179
      %s181 = ssub.s32 %s21, %s28
      %p182 = scmp.eq.s32.totalorder %s181, 0
      %s184 = sadd.s32 %s183, 1
      %s185 = scalar_select %p182, %s183, %s184
      %p188 = pneg %p182
      %p189 = scmp.eq.s32.totalorder %s21, 1
      %p190 = por %p188, %p189
      %p191 = scmp.ne.s32.totalorder %s183, %s186
      %p192 = scmp.eq.s32.totalorder %s21, 0
      %p193 = por %p191, %p192
      %p194 = scmp.ne.s32.totalorder %s183, %s186
      %p195 = scmp.eq.s32.totalorder %s26, 1
      %p196 = por %p194, %p195
      %p197 = scmp.ne.s32.totalorder %s186, %s187
      %p198 = scmp.eq.s32.totalorder %s26, 0
      %p199 = por %p197, %p198
      %p200 = scmp.ne.s32.totalorder %s186, %s187
      %p201 = scmp.eq.s32.totalorder %s27, 1
      %p202 = por %p200, %p201
      %p204 = scmp.ne.s32.totalorder %s187, %s203
      %p205 = scmp.eq.s32.totalorder %s27, 0
      %p206 = por %p204, %p205
      %p207 = scmp.le.s32.totalorder 1, %s21
      %p208 = scmp.lt.s32.totalorder %s21, 3
      %p209 = pnand %p207, %p208
      %p210 = pneg %p209
      // Predicated region
      $region9: #{tpu_custom_call.1} parent=5 // pred_check
        _
      $region10: #{tpu_custom_call.1} parent=5 // pred_check_branch
        %212 = sbr.rel (%p209) target = $region12
      $region11: #{tpu_custom_call.1} parent=5 // pred_region
        %s213 = ssub.s32 %s21, 1
        // Predicated region
        $region13: #{tpu_custom_call.1} parent=11 // pred_check
          %p214 = pneg %p68
        $region14: #{tpu_custom_call.1} parent=11 // pred_check_branch
          %216 = sbr.rel (%p214) target = $region16
        $region15: #{tpu_custom_call.1} parent=11 // pred_region
          %s218 = ssub.s32 2048, 2048
          %219 = vsyncadd [#allocation8], %s218
          %s220 = sshll.u32 [#allocation7], 4
          %s221 = int_to_ptr.vmem [resolvable:$true] %s220
          %226 = dma.hbm_to_vmem [thread:$0]  %s1, 2048, %s221, [#allocation8], 128, 128, 8
        $region16: #{tpu_custom_call.1} parent=11 // pred_fallthru
          _
        // Predicated region
        $region17: #{tpu_custom_call.1} parent=11 // pred_check
          %p227 = pneg %p89
        $region18: #{tpu_custom_call.1} parent=11 // pred_check_branch
          %229 = sbr.rel (%p227) target = $region20
        $region19: #{tpu_custom_call.1} parent=11 // pred_region
          _
        $region20: #{tpu_custom_call.1} parent=11 // pred_fallthru
          _
        // Predicated region
        $region21: #{tpu_custom_call.1} parent=11 // pred_check
          %p230 = pneg %p110
        $region22: #{tpu_custom_call.1} parent=11 // pred_check_branch
          %232 = sbr.rel (%p230) target = $region24
        $region23: #{tpu_custom_call.1} parent=11 // pred_region
          %s234 = ssub.s32 18432, 18432
          %235 = vsyncadd [#allocation8], %s234
          %s236 = sshll.u32 [#allocation9], 4
          %s237 = int_to_ptr.vmem [resolvable:$true] %s236
          %242 = dma.hbm_to_vmem [thread:$0]  %s3, 18432, %s237, [#allocation8], 128, 128, 8
        $region24: #{tpu_custom_call.1} parent=11 // pred_fallthru
          _
        // Predicated region
        $region25: #{tpu_custom_call.1} parent=11 // pred_check
          %p243 = pneg %p131
        $region26: #{tpu_custom_call.1} parent=11 // pred_check_branch
          %245 = sbr.rel (%p243) target = $region28
        $region27: #{tpu_custom_call.1} parent=11 // pred_region
          _
        $region28: #{tpu_custom_call.1} parent=11 // pred_fallthru
          _
        // Predicated region
        $region29: #{tpu_custom_call.1} parent=11 // pred_check
          %p246 = pneg %p152
        $region30: #{tpu_custom_call.1} parent=11 // pred_check_branch
          %248 = sbr.rel (%p246) target = $region32
        $region31: #{tpu_custom_call.1} parent=11 // pred_region
          %s250 = ssub.s32 2048, 2048
          %251 = vsyncadd [#allocation11], %s250
          %s252 = sshll.u32 [#allocation10], 4
          %s253 = int_to_ptr.vmem [resolvable:$true] %s252
          %258 = dma.hbm_to_vmem [thread:$0]  %s5, 2048, %s253, [#allocation11], 128, 128, 8
        $region32: #{tpu_custom_call.1} parent=11 // pred_fallthru
          _
        // Predicated region
        $region33: #{tpu_custom_call.1} parent=11 // pred_check
          %p259 = pneg %p173
        $region34: #{tpu_custom_call.1} parent=11 // pred_check_branch
          %261 = sbr.rel (%p259) target = $region36
        $region35: #{tpu_custom_call.1} parent=11 // pred_region
          _
        $region36: #{tpu_custom_call.1} parent=11 // pred_fallthru
          _
      $region12: #{tpu_custom_call.1} parent=5 // pred_fallthru
        _
      %p262 = scmp.lt.s32.totalorder %s21, 2
      // Predicated region
      $region37: #{tpu_custom_call.1} parent=5 // pred_check
        %p263 = pneg %p262
      $region38: #{tpu_custom_call.1} parent=5 // pred_check_branch
        %265 = sbr.rel (%p263) target = $region40
      $region39: #{tpu_custom_call.1} parent=5 // pred_region
        // Predicated region
        $region41: #{tpu_custom_call.1} parent=39 // pred_check
          %p266 = pneg %p41
        $region42: #{tpu_custom_call.1} parent=39 // pred_check_branch
          %268 = sbr.rel (%p266) target = $region44
        $region43: #{tpu_custom_call.1} parent=39 // pred_region
          %s269 = sand.u32 %s31, 1
          %s270 = scalar_lea.sflag [#allocation5], %s269
          %s271 = sand.u32 %s31, 1
          %s272 = smul.addr %s271, 256
          %s273 = scalar_lea.vmem [#allocation4], %s272
          %s275 = ssub.s32 4096, 4096
          %276 = vsyncadd %s270, %s275
          %s277 = smul.addr %s21, 32
          %s278 = smul.addr %s277, 128
          %s279 = scalar_lea.hbm %s0, %s278
          %s280 = sshll.u32 %s273, 4
          %s281 = int_to_ptr.vmem [resolvable:$true] %s280
          %286 = dma.hbm_to_vmem [thread:$0]  %s279, 4096, %s281, %s270, 128, 128, 8
        $region44: #{tpu_custom_call.1} parent=39 // pred_fallthru
          _
      $region40: #{tpu_custom_call.1} parent=5 // pred_fallthru
        _
      %p287 = scmp.le.s32.totalorder 1, %s21
      %p288 = scmp.lt.s32.totalorder %s21, 3
      %p289 = pnand %p287, %p288
      %p290 = pneg %p289
      // Predicated region
      $region45: #{tpu_custom_call.1} parent=5 // pred_check
        _
      $region46: #{tpu_custom_call.1} parent=5 // pred_check_branch
        %292 = sbr.rel (%p289) target = $region48
      $region47: #{tpu_custom_call.1} parent=5 // pred_region
        %s293 = ssub.s32 %s21, 1
        %s294 = sand.u32 %s34, 1
        %s295 = scalar_lea.sflag [#allocation5], %s294
        %s296 = sand.u32 %s34, 1
        %s297 = smul.addr %s296, 256
        %s298 = scalar_lea.vmem [#allocation4], %s297
        // Predicated region
        $region49: #{tpu_custom_call.1} parent=47 // pred_check
          %p299 = pneg %p47
        $region50: #{tpu_custom_call.1} parent=47 // pred_check_branch
          %301 = sbr.rel (%p299) target = $region52
        $region51: #{tpu_custom_call.1} parent=47 // pred_region
          %302 = dma.done %s295, 4096
        $region52: #{tpu_custom_call.1} parent=47 // pred_fallthru
          _
        // Predicated region
        $region53: #{tpu_custom_call.1} parent=47 // pred_check
          %p303 = pneg %p68
        $region54: #{tpu_custom_call.1} parent=47 // pred_check_branch
          %305 = sbr.rel (%p303) target = $region56
        $region55: #{tpu_custom_call.1} parent=47 // pred_region
          %306 = dma.done [#allocation8], 2048
        $region56: #{tpu_custom_call.1} parent=47 // pred_fallthru
          _
        // Predicated region
        $region57: #{tpu_custom_call.1} parent=47 // pred_check
          %p307 = pneg %p110
        $region58: #{tpu_custom_call.1} parent=47 // pred_check_branch
          %309 = sbr.rel (%p307) target = $region60
        $region59: #{tpu_custom_call.1} parent=47 // pred_region
          %310 = dma.done [#allocation8], 18432
        $region60: #{tpu_custom_call.1} parent=47 // pred_fallthru
          _
        // Predicated region
        $region61: #{tpu_custom_call.1} parent=47 // pred_check
          %p311 = pneg %p152
        $region62: #{tpu_custom_call.1} parent=47 // pred_check_branch
          %313 = sbr.rel (%p311) target = $region64
        $region63: #{tpu_custom_call.1} parent=47 // pred_region
          %314 = dma.done [#allocation11], 2048
        $region64: #{tpu_custom_call.1} parent=47 // pred_fallthru
          _
        %s315 = sand.u32 %s34, 1
        %s316 = scalar_lea.sflag [#allocation5], %s315
        %s317 = sand.u32 %s34, 1
        %s318 = smul.addr %s317, 256
        %s319 = scalar_lea.vmem [#allocation4], %s318
        %p320 = pneg %p47
        %p321 = pneg %p44
        %p322 = pneg %p68
        %p323 = pneg %p65
        %p324 = pneg %p89
        %p325 = pneg %p86
        %p326 = pneg %p110
        %p327 = pneg %p107
        %p328 = pneg %p131
        %p329 = pneg %p128
        %p330 = pneg %p152
        %p331 = pneg %p149
        %p332 = pneg %p173
        %p333 = pneg %p170
        %p334 = pneg %p199
        %p335 = pneg %p196
        %s336 = sand.u32 %s186, 1
        %s337 = scalar_lea.sflag [#allocation6], %s336
        %s338 = sand.u32 %s186, 1
        %s339 = smul.addr %s338, 256
        %s340 = scalar_lea.vmem [#allocation12], %s339
        %v341 = vld [vmem:[%s298] sm:$0xff]
        %v342 = vld [vmem:[%s298 + $0x8] sm:$0xff]
        %v343 = vld [vmem:[%s298 + $0x10] sm:$0xff]
        %v344 = vld [vmem:[%s298 + $0x18] sm:$0xff]
        %v345 = vld [vmem:[%s298 + $0x20] sm:$0xff]
        %v346 = vld [vmem:[%s298 + $0x28] sm:$0xff]
        %v347 = vld [vmem:[%s298 + $0x30] sm:$0xff]
        %v348 = vld [vmem:[%s298 + $0x38] sm:$0xff]
        %v349 = vld [vmem:[%s298 + $0x40] sm:$0xff]
        %v350 = vld [vmem:[%s298 + $0x48] sm:$0xff]
        %v351 = vld [vmem:[%s298 + $0x50] sm:$0xff]
        %v352 = vld [vmem:[%s298 + $0x58] sm:$0xff]
        %v353 = vld [vmem:[%s298 + $0x60] sm:$0xff]
        %v354 = vld [vmem:[%s298 + $0x68] sm:$0xff]
        %v355 = vld [vmem:[%s298 + $0x70] sm:$0xff]
        %v356 = vld [vmem:[%s298 + $0x78] sm:$0xff]
        %v357 = vld [vmem:[%s298 + $0x80] sm:$0xff]
        %v358 = vld [vmem:[%s298 + $0x88] sm:$0xff]
        %v359 = vld [vmem:[%s298 + $0x90] sm:$0xff]
        %v360 = vld [vmem:[%s298 + $0x98] sm:$0xff]
        %v361 = vld [vmem:[%s298 + $0xa0] sm:$0xff]
        %v362 = vld [vmem:[%s298 + $0xa8] sm:$0xff]
        %v363 = vld [vmem:[%s298 + $0xb0] sm:$0xff]
        %v364 = vld [vmem:[%s298 + $0xb8] sm:$0xff]
        %v365 = vld [vmem:[%s298 + $0xc0] sm:$0xff]
        %v366 = vld [vmem:[%s298 + $0xc8] sm:$0xff]
        %v367 = vld [vmem:[%s298 + $0xd0] sm:$0xff]
        %v368 = vld [vmem:[%s298 + $0xd8] sm:$0xff]
        %v369 = vld [vmem:[%s298 + $0xe0] sm:$0xff]
        %v370 = vld [vmem:[%s298 + $0xe8] sm:$0xff]
        %v371 = vld [vmem:[%s298 + $0xf0] sm:$0xff]
        %v372 = vld [vmem:[%s298 + $0xf8] sm:$0xff]
        %v373 = vld [vmem:[#allocation7] sm:$0xff]
        %v374 = vld [vmem:[#allocation7 + $0x8] sm:$0xff]
        %v375 = vld [vmem:[#allocation7 + $0x10] sm:$0xff]
        %v376 = vld [vmem:[#allocation7 + $0x18] sm:$0xff]
        %v377 = vld [vmem:[#allocation7 + $0x20] sm:$0xff]
        %v378 = vld [vmem:[#allocation7 + $0x28] sm:$0xff]
        %v379 = vld [vmem:[#allocation7 + $0x30] sm:$0xff]
        %v380 = vld [vmem:[#allocation7 + $0x38] sm:$0xff]
        %v381 = vld [vmem:[#allocation7 + $0x40] sm:$0xff]
        %v382 = vld [vmem:[#allocation7 + $0x48] sm:$0xff]
        %v383 = vld [vmem:[#allocation7 + $0x50] sm:$0xff]
        %v384 = vld [vmem:[#allocation7 + $0x58] sm:$0xff]
        %v385 = vld [vmem:[#allocation7 + $0x60] sm:$0xff]
        %v386 = vld [vmem:[#allocation7 + $0x68] sm:$0xff]
        %v387 = vld [vmem:[#allocation7 + $0x70] sm:$0xff]
        %v388 = vld [vmem:[#allocation7 + $0x78] sm:$0xff]
        %v389 = vld [vmem:[%s2] sm:$0x1]
        %v391 = vlaneseq
        %v392 = vshrl.u32 %v391, 7
        %v393 = vsub.s32 0, %v392
        %v394 = vrot.slane %v389, %v393
        %396 = vmatprep.subr.mxu0 0.0
        %397 = vmatpush1.msra.mxu0 %v373
        %398 = vmatprep.subr.mxu0 0.0
        %399 = vmatpush1.msra.mxu0 %v374
        %400 = vmatprep.subr.mxu0 0.0
        %401 = vmatpush1.msra.mxu0 %v375
        %402 = vmatprep.subr.mxu0 0.0
        %403 = vmatpush1.msra.mxu0 %v376
        %404 = vmatprep.subr.mxu0 0.0
        %405 = vmatpush1.msra.mxu0 %v377
        %406 = vmatprep.subr.mxu0 0.0
        %407 = vmatpush1.msra.mxu0 %v378
        %408 = vmatprep.subr.mxu0 0.0
        %409 = vmatpush1.msra.mxu0 %v379
        %410 = vmatprep.subr.mxu0 0.0
        %411 = vmatpush1.msra.mxu0 %v380
        %412 = vmatprep.subr.mxu0 0.0
        %413 = vmatpush1.msra.mxu0 %v381
        %414 = vmatprep.subr.mxu0 0.0
        %415 = vmatpush1.msra.mxu0 %v382
        %416 = vmatprep.subr.mxu0 0.0
        %417 = vmatpush1.msra.mxu0 %v383
        %418 = vmatprep.subr.mxu0 0.0
        %419 = vmatpush1.msra.mxu0 %v384
        %420 = vmatprep.subr.mxu0 0.0
        %421 = vmatpush1.msra.mxu0 %v385
        %422 = vmatprep.subr.mxu0 0.0
        %423 = vmatpush1.msra.mxu0 %v386
        %424 = vmatprep.subr.mxu0 0.0
        %425 = vmatpush1.msra.mxu0 %v387
        %426 = vmatprep.subr.mxu0 0.0
        %427 = vmatpush1.msra.mxu0 %v388
        %428 = vmatprep.subr.mxu0 0.0
        %429 = vmatpush1.msra.mxu0 0.0
        %430 = vmatprep.subr.mxu0 0.0
        %431 = vmatpush1.msra.mxu0 0.0
        %432 = vmatprep.subr.mxu0 0.0
        %433 = vmatpush1.msra.mxu0 0.0
        %434 = vmatprep.subr.mxu0 0.0
        %435 = vmatpush1.msra.mxu0 0.0
        %436 = vmatprep.subr.mxu0 0.0
        %437 = vmatpush1.msra.mxu0 0.0
        %438 = vmatprep.subr.mxu0 0.0
        %439 = vmatpush1.msra.mxu0 0.0
        %440 = vmatprep.subr.mxu0 0.0
        %441 = vmatpush1.msra.mxu0 0.0
        %442 = vmatprep.subr.mxu0 0.0
        %443 = vmatpush1.msra.mxu0 0.0
        %444 = vmatprep.subr.mxu0 0.0
        %445 = vmatpush1.msra.mxu0 0.0
        %446 = vmatprep.subr.mxu0 0.0
        %447 = vmatpush1.msra.mxu0 0.0
        %448 = vmatprep.subr.mxu0 0.0
        %449 = vmatpush1.msra.mxu0 0.0
        %450 = vmatprep.subr.mxu0 0.0
        %451 = vmatpush1.msra.mxu0 0.0
        %452 = vmatprep.subr.mxu0 0.0
        %453 = vmatpush1.msra.mxu0 0.0
        %454 = vmatprep.subr.mxu0 0.0
        %455 = vmatpush1.msra.mxu0 0.0
        %456 = vmatprep.subr.mxu0 0.0
        %457 = vmatpush1.msra.mxu0 0.0
        %458 = vmatprep.subr.mxu0 0.0
        %459 = vmatpush1.msra.mxu0 0.0
        %460 = vmatprep.mubr.f32.mxu0 0.0
        %461 = vmatmul.mubr.f32.gmra.mrb[0].mxu0 %v341
        %v462 = vpop.f32.mrb[0].mxu0
        %v463 = vadd.f32 %v394, %v462
        %v464 = vpop.f32.mrb[0].mxu0
        %465 = vmatprep.mubr.f32.mxu0 0.0
        %466 = vmatmul.mubr.f32.gmra.mrb[0].mxu0 %v342
        %v467 = vpop.f32.mrb[0].mxu0
        %v468 = vadd.f32 %v394, %v467
        %v469 = vpop.f32.mrb[0].mxu0
        %470 = vmatprep.mubr.f32.mxu0 0.0
        %471 = vmatmul.mubr.f32.gmra.mrb[0].mxu0 %v343
        %v472 = vpop.f32.mrb[0].mxu0
        %v473 = vadd.f32 %v394, %v472
        %v474 = vpop.f32.mrb[0].mxu0
        %475 = vmatprep.mubr.f32.mxu0 0.0
        %476 = vmatmul.mubr.f32.gmra.mrb[0].mxu0 %v344
        %v477 = vpop.f32.mrb[0].mxu0
        %v478 = vadd.f32 %v394, %v477
        %v479 = vpop.f32.mrb[0].mxu0
        %480 = vmatprep.mubr.f32.mxu0 0.0
        %481 = vmatmul.mubr.f32.gmra.mrb[0].mxu0 %v345
        %v482 = vpop.f32.mrb[0].mxu0
        %v483 = vadd.f32 %v394, %v482
        %v484 = vpop.f32.mrb[0].mxu0
        %485 = vmatprep.mubr.f32.mxu0 0.0
        %486 = vmatmul.mubr.f32.gmra.mrb[0].mxu0 %v346
        %v487 = vpop.f32.mrb[0].mxu0
        %v488 = vadd.f32 %v394, %v487
        %v489 = vpop.f32.mrb[0].mxu0
        %490 = vmatprep.mubr.f32.mxu0 0.0
        %491 = vmatmul.mubr.f32.gmra.mrb[0].mxu0 %v347
        %v492 = vpop.f32.mrb[0].mxu0
        %v493 = vadd.f32 %v394, %v492
        %v494 = vpop.f32.mrb[0].mxu0
        %495 = vmatprep.mubr.f32.mxu0 0.0
        %496 = vmatmul.mubr.f32.gmra.mrb[0].mxu0 %v348
        %v497 = vpop.f32.mrb[0].mxu0
        %v498 = vadd.f32 %v394, %v497
        %v499 = vpop.f32.mrb[0].mxu0
        %500 = vmatprep.mubr.f32.mxu0 0.0
        %501 = vmatmul.mubr.f32.gmra.mrb[0].mxu0 %v349
        %v502 = vpop.f32.mrb[0].mxu0
        %v503 = vadd.f32 %v394, %v502
        %v504 = vpop.f32.mrb[0].mxu0
        %505 = vmatprep.mubr.f32.mxu0 0.0
        %506 = vmatmul.mubr.f32.gmra.mrb[0].mxu0 %v350
        %v507 = vpop.f32.mrb[0].mxu0
        %v508 = vadd.f32 %v394, %v507
        %v509 = vpop.f32.mrb[0].mxu0
        %510 = vmatprep.mubr.f32.mxu0 0.0
        %511 = vmatmul.mubr.f32.gmra.mrb[0].mxu0 %v351
        %v512 = vpop.f32.mrb[0].mxu0
        %v513 = vadd.f32 %v394, %v512
        %v514 = vpop.f32.mrb[0].mxu0
        %515 = vmatprep.mubr.f32.mxu0 0.0
        %516 = vmatmul.mubr.f32.gmra.mrb[0].mxu0 %v352
        %v517 = vpop.f32.mrb[0].mxu0
        %v518 = vadd.f32 %v394, %v517
        %v519 = vpop.f32.mrb[0].mxu0
        %520 = vmatprep.mubr.f32.mxu0 0.0
        %521 = vmatmul.mubr.f32.gmra.mrb[0].mxu0 %v353
        %v522 = vpop.f32.mrb[0].mxu0
        %v523 = vadd.f32 %v394, %v522
        %v524 = vpop.f32.mrb[0].mxu0
        %525 = vmatprep.mubr.f32.mxu0 0.0
        %526 = vmatmul.mubr.f32.gmra.mrb[0].mxu0 %v354
        %v527 = vpop.f32.mrb[0].mxu0
        %v528 = vadd.f32 %v394, %v527
        %v529 = vpop.f32.mrb[0].mxu0
        %530 = vmatprep.mubr.f32.mxu0 0.0
        %531 = vmatmul.mubr.f32.gmra.mrb[0].mxu0 %v355
        %v532 = vpop.f32.mrb[0].mxu0
        %v533 = vadd.f32 %v394, %v532
        %v534 = vpop.f32.mrb[0].mxu0
        %535 = vmatprep.mubr.f32.mxu0 0.0
        %536 = vmatmul.mubr.f32.gmra.mrb[0].mxu0 %v356
        %v537 = vpop.f32.mrb[0].mxu0
        %v538 = vadd.f32 %v394, %v537
        %v539 = vpop.f32.mrb[0].mxu0
        %540 = vmatprep.mubr.f32.mxu0 0.0
        %541 = vmatmul.mubr.f32.gmra.mrb[0].mxu0 %v357
        %v542 = vpop.f32.mrb[0].mxu0
        %v543 = vadd.f32 %v394, %v542
        %v544 = vpop.f32.mrb[0].mxu0
        %545 = vmatprep.mubr.f32.mxu0 0.0
        %546 = vmatmul.mubr.f32.gmra.mrb[0].mxu0 %v358
        %v547 = vpop.f32.mrb[0].mxu0
        %v548 = vadd.f32 %v394, %v547
        %v549 = vpop.f32.mrb[0].mxu0
        %550 = vmatprep.mubr.f32.mxu0 0.0
        %551 = vmatmul.mubr.f32.gmra.mrb[0].mxu0 %v359
        %v552 = vpop.f32.mrb[0].mxu0
        %v553 = vadd.f32 %v394, %v552
        %v554 = vpop.f32.mrb[0].mxu0
        %555 = vmatprep.mubr.f32.mxu0 0.0
        %556 = vmatmul.mubr.f32.gmra.mrb[0].mxu0 %v360
        %v557 = vpop.f32.mrb[0].mxu0
        %v558 = vadd.f32 %v394, %v557
        %v559 = vpop.f32.mrb[0].mxu0
        %560 = vmatprep.mubr.f32.mxu0 0.0
        %561 = vmatmul.mubr.f32.gmra.mrb[0].mxu0 %v361
        %v562 = vpop.f32.mrb[0].mxu0
        %v563 = vadd.f32 %v394, %v562
        %v564 = vpop.f32.mrb[0].mxu0
        %565 = vmatprep.mubr.f32.mxu0 0.0
        %566 = vmatmul.mubr.f32.gmra.mrb[0].mxu0 %v362
        %v567 = vpop.f32.mrb[0].mxu0
        %v568 = vadd.f32 %v394, %v567
        %v569 = vpop.f32.mrb[0].mxu0
        %570 = vmatprep.mubr.f32.mxu0 0.0
        %571 = vmatmul.mubr.f32.gmra.mrb[0].mxu0 %v363
        %v572 = vpop.f32.mrb[0].mxu0
        %v573 = vadd.f32 %v394, %v572
        %v574 = vpop.f32.mrb[0].mxu0
        %575 = vmatprep.mubr.f32.mxu0 0.0
        %576 = vmatmul.mubr.f32.gmra.mrb[0].mxu0 %v364
        %v577 = vpop.f32.mrb[0].mxu0
        %v578 = vadd.f32 %v394, %v577
        %v579 = vpop.f32.mrb[0].mxu0
        %580 = vmatprep.mubr.f32.mxu0 0.0
        %581 = vmatmul.mubr.f32.gmra.mrb[0].mxu0 %v365
        %v582 = vpop.f32.mrb[0].mxu0
        %v583 = vadd.f32 %v394, %v582
        %v584 = vpop.f32.mrb[0].mxu0
        %585 = vmatprep.mubr.f32.mxu0 0.0
        %586 = vmatmul.mubr.f32.gmra.mrb[0].mxu0 %v366
        %v587 = vpop.f32.mrb[0].mxu0
        %v588 = vadd.f32 %v394, %v587
        %v589 = vpop.f32.mrb[0].mxu0
        %590 = vmatprep.mubr.f32.mxu0 0.0
        %591 = vmatmul.mubr.f32.gmra.mrb[0].mxu0 %v367
        %v592 = vpop.f32.mrb[0].mxu0
        %v593 = vadd.f32 %v394, %v592
        %v594 = vpop.f32.mrb[0].mxu0
        %595 = vmatprep.mubr.f32.mxu0 0.0
        %596 = vmatmul.mubr.f32.gmra.mrb[0].mxu0 %v368
        %v597 = vpop.f32.mrb[0].mxu0
        %v598 = vadd.f32 %v394, %v597
        %v599 = vpop.f32.mrb[0].mxu0
        %600 = vmatprep.mubr.f32.mxu0 0.0
        %601 = vmatmul.mubr.f32.gmra.mrb[0].mxu0 %v369
        %v602 = vpop.f32.mrb[0].mxu0
        %v603 = vadd.f32 %v394, %v602
        %v604 = vpop.f32.mrb[0].mxu0
        %605 = vmatprep.mubr.f32.mxu0 0.0
        %606 = vmatmul.mubr.f32.gmra.mrb[0].mxu0 %v370
        %v607 = vpop.f32.mrb[0].mxu0
        %v608 = vadd.f32 %v394, %v607
        %v609 = vpop.f32.mrb[0].mxu0
        %610 = vmatprep.mubr.f32.mxu0 0.0
        %611 = vmatmul.mubr.f32.gmra.mrb[0].mxu0 %v371
        %v612 = vpop.f32.mrb[0].mxu0
        %v613 = vadd.f32 %v394, %v612
        %v614 = vpop.f32.mrb[0].mxu0
        %615 = vmatprep.mubr.f32.mxu0 0.0
        %616 = vmatmul.mubr.f32.gmra.mrb[0].mxu0 %v372
        %v617 = vpop.f32.mrb[0].mxu0
        %v618 = vadd.f32 %v394, %v617
        %v619 = vpop.f32.mrb[0].mxu0
        %620 = vdwg.mxu0
        %v621 = vmax.f32 %v463, 0.0
        %v622 = vmax.f32 %v468, 0.0
        %v623 = vmax.f32 %v473, 0.0
        %v624 = vmax.f32 %v478, 0.0
        %v625 = vmax.f32 %v483, 0.0
        %v626 = vmax.f32 %v488, 0.0
        %v627 = vmax.f32 %v493, 0.0
        %v628 = vmax.f32 %v498, 0.0
        %v629 = vmax.f32 %v503, 0.0
        %v630 = vmax.f32 %v508, 0.0
        %v631 = vmax.f32 %v513, 0.0
        %v632 = vmax.f32 %v518, 0.0
        %v633 = vmax.f32 %v523, 0.0
        %v634 = vmax.f32 %v528, 0.0
        %v635 = vmax.f32 %v533, 0.0
        %v636 = vmax.f32 %v538, 0.0
        %v637 = vmax.f32 %v543, 0.0
        %v638 = vmax.f32 %v548, 0.0
        %v639 = vmax.f32 %v553, 0.0
        %v640 = vmax.f32 %v558, 0.0
        %v641 = vmax.f32 %v563, 0.0
        %v642 = vmax.f32 %v568, 0.0
        %v643 = vmax.f32 %v573, 0.0
        %v644 = vmax.f32 %v578, 0.0
        %v645 = vmax.f32 %v583, 0.0
        %v646 = vmax.f32 %v588, 0.0
        %v647 = vmax.f32 %v593, 0.0
        %v648 = vmax.f32 %v598, 0.0
        %v649 = vmax.f32 %v603, 0.0
        %v650 = vmax.f32 %v608, 0.0
        %v651 = vmax.f32 %v613, 0.0
        %v652 = vmax.f32 %v618, 0.0
        %s653 = scalar_lea.vmem [#allocation2], 24
        %654 = vst [vmem:[%s653 + $0x1] sm:$0xff] %v621
        %655 = vst [vmem:[%s653 + $0x9] sm:$0xff] %v622
        %656 = vst [vmem:[%s653 + $0x19] sm:$0xff] %v623
        %657 = vst [vmem:[%s653 + $0x21] sm:$0xff] %v624
        %658 = vst [vmem:[%s653 + $0x31] sm:$0xff] %v625
        %659 = vst [vmem:[%s653 + $0x39] sm:$0xff] %v626
        %660 = vst [vmem:[%s653 + $0x49] sm:$0xff] %v627
        %661 = vst [vmem:[%s653 + $0x51] sm:$0xff] %v628
        %662 = vst [vmem:[%s653 + $0x61] sm:$0xff] %v629
        %663 = vst [vmem:[%s653 + $0x69] sm:$0xff] %v630
        %664 = vst [vmem:[%s653 + $0x79] sm:$0xff] %v631
        %665 = vst [vmem:[%s653 + $0x81] sm:$0xff] %v632
        %666 = vst [vmem:[%s653 + $0x91] sm:$0xff] %v633
        %667 = vst [vmem:[%s653 + $0x99] sm:$0xff] %v634
        %668 = vst [vmem:[%s653 + $0xa9] sm:$0xff] %v635
        %669 = vst [vmem:[%s653 + $0xb1] sm:$0xff] %v636
        %670 = vst [vmem:[%s653 + $0xc1] sm:$0xff] %v637
        %671 = vst [vmem:[%s653 + $0xc9] sm:$0xff] %v638
        %672 = vst [vmem:[%s653 + $0xd9] sm:$0xff] %v639
        %673 = vst [vmem:[%s653 + $0xe1] sm:$0xff] %v640
        %674 = vst [vmem:[%s653 + $0xf1] sm:$0xff] %v641
        %675 = vst [vmem:[%s653 + $0xf9] sm:$0xff] %v642
        %676 = vst [vmem:[%s653 + $0x109] sm:$0xff] %v643
        %677 = vst [vmem:[%s653 + $0x111] sm:$0xff] %v644
        %678 = vst [vmem:[%s653 + $0x121] sm:$0xff] %v645
        %679 = vst [vmem:[%s653 + $0x129] sm:$0xff] %v646
        %680 = vst [vmem:[%s653 + $0x139] sm:$0xff] %v647
        %681 = vst [vmem:[%s653 + $0x141] sm:$0xff] %v648
        %682 = vst [vmem:[%s653 + $0x151] sm:$0xff] %v649
        %683 = vst [vmem:[%s653 + $0x159] sm:$0xff] %v650
        %684 = vst [vmem:[%s653 + $0x169] sm:$0xff] %v651
        %685 = vst [vmem:[%s653 + $0x171] sm:$0xff] %v652
        %686 = vst [vmem:[#allocation2] sm:$0xff] 0.0
        %687 = vst [vmem:[#allocation2 + $0x8] sm:$0xff] 0.0
        %688 = vst [vmem:[#allocation2 + $0x10] sm:$0x3] 0.0
        %s689 = scalar_lea.vmem [#allocation2], 408
        %690 = vst [vmem:[%s689] sm:$0xff] 0.0
        %691 = vst [vmem:[%s689 + $0x8] sm:$0xff] 0.0
        %692 = vst [vmem:[%s689 + $0x10] sm:$0x3] 0.0
        %693 = vst [vmem:[#allocation2] sm:$0x1] 0.0
        %694 = vst [vmem:[#allocation2 + $0x18] sm:$0x1] 0.0
        %695 = vst [vmem:[#allocation2 + $0x30] sm:$0x1] 0.0
        %696 = vst [vmem:[#allocation2 + $0x48] sm:$0x1] 0.0
        %697 = vst [vmem:[#allocation2 + $0x60] sm:$0x1] 0.0
        %698 = vst [vmem:[#allocation2 + $0x78] sm:$0x1] 0.0
        %699 = vst [vmem:[#allocation2 + $0x90] sm:$0x1] 0.0
        %700 = vst [vmem:[#allocation2 + $0xa8] sm:$0x1] 0.0
        %701 = vst [vmem:[#allocation2 + $0xc0] sm:$0x1] 0.0
        %702 = vst [vmem:[#allocation2 + $0xd8] sm:$0x1] 0.0
        %703 = vst [vmem:[#allocation2 + $0xf0] sm:$0x1] 0.0
        %704 = vst [vmem:[#allocation2 + $0x108] sm:$0x1] 0.0
        %705 = vst [vmem:[#allocation2 + $0x120] sm:$0x1] 0.0
        %706 = vst [vmem:[#allocation2 + $0x138] sm:$0x1] 0.0
        %707 = vst [vmem:[#allocation2 + $0x150] sm:$0x1] 0.0
        %708 = vst [vmem:[#allocation2 + $0x168] sm:$0x1] 0.0
        %709 = vst [vmem:[#allocation2 + $0x180] sm:$0x1] 0.0
        %710 = vst [vmem:[#allocation2 + $0x198] sm:$0x1] 0.0
        %711 = vst [vmem:[#allocation2 + $0x11] sm:$0x1] 0.0
        %712 = vst [vmem:[#allocation2 + $0x29] sm:$0x1] 0.0
        %713 = vst [vmem:[#allocation2 + $0x41] sm:$0x1] 0.0
        %714 = vst [vmem:[#allocation2 + $0x59] sm:$0x1] 0.0
        %715 = vst [vmem:[#allocation2 + $0x71] sm:$0x1] 0.0
        %716 = vst [vmem:[#allocation2 + $0x89] sm:$0x1] 0.0
        %717 = vst [vmem:[#allocation2 + $0xa1] sm:$0x1] 0.0
        %718 = vst [vmem:[#allocation2 + $0xb9] sm:$0x1] 0.0
        %719 = vst [vmem:[#allocation2 + $0xd1] sm:$0x1] 0.0
        %720 = vst [vmem:[#allocation2 + $0xe9] sm:$0x1] 0.0
        %721 = vst [vmem:[#allocation2 + $0x101] sm:$0x1] 0.0
        %722 = vst [vmem:[#allocation2 + $0x119] sm:$0x1] 0.0
        %723 = vst [vmem:[#allocation2 + $0x131] sm:$0x1] 0.0
        %724 = vst [vmem:[#allocation2 + $0x149] sm:$0x1] 0.0
        %725 = vst [vmem:[#allocation2 + $0x161] sm:$0x1] 0.0
        %726 = vst [vmem:[#allocation2 + $0x179] sm:$0x1] 0.0
        %727 = vst [vmem:[#allocation2 + $0x191] sm:$0x1] 0.0
        %728 = vst [vmem:[#allocation2 + $0x1a9] sm:$0x1] 0.0
        %v729 = vld [vmem:[#allocation2] sm:$0xff]
        %v730 = vld [vmem:[#allocation2 + $0x8] sm:$0xff]
        %v731 = vld [vmem:[#allocation2 + $0x18] sm:$0xff]
        %v732 = vld [vmem:[#allocation2 + $0x20] sm:$0xff]
        %v733 = vld [vmem:[#allocation2 + $0x30] sm:$0xff]
        %v734 = vld [vmem:[#allocation2 + $0x38] sm:$0xff]
        %v735 = vld [vmem:[#allocation2 + $0x48] sm:$0xff]
        %v736 = vld [vmem:[#allocation2 + $0x50] sm:$0xff]
        %v737 = vld [vmem:[#allocation2 + $0x60] sm:$0xff]
        %v738 = vld [vmem:[#allocation2 + $0x68] sm:$0xff]
        %v739 = vld [vmem:[#allocation2 + $0x78] sm:$0xff]
        %v740 = vld [vmem:[#allocation2 + $0x80] sm:$0xff]
        %v741 = vld [vmem:[#allocation2 + $0x90] sm:$0xff]
        %v742 = vld [vmem:[#allocation2 + $0x98] sm:$0xff]
        %v743 = vld [vmem:[#allocation2 + $0xa8] sm:$0xff]
        %v744 = vld [vmem:[#allocation2 + $0xb0] sm:$0xff]
        %v745 = vld [vmem:[#allocation2 + $0xc0] sm:$0xff]
        %v746 = vld [vmem:[#allocation2 + $0xc8] sm:$0xff]
        %v747 = vld [vmem:[#allocation2 + $0xd8] sm:$0xff]
        %v748 = vld [vmem:[#allocation2 + $0xe0] sm:$0xff]
        %v749 = vld [vmem:[#allocation2 + $0xf0] sm:$0xff]
        %v750 = vld [vmem:[#allocation2 + $0xf8] sm:$0xff]
        %v751 = vld [vmem:[#allocation2 + $0x108] sm:$0xff]
        %v752 = vld [vmem:[#allocation2 + $0x110] sm:$0xff]
        %v753 = vld [vmem:[#allocation2 + $0x120] sm:$0xff]
        %v754 = vld [vmem:[#allocation2 + $0x128] sm:$0xff]
        %v755 = vld [vmem:[#allocation2 + $0x138] sm:$0xff]
        %v756 = vld [vmem:[#allocation2 + $0x140] sm:$0xff]
        %v757 = vld [vmem:[#allocation2 + $0x150] sm:$0xff]
        %v758 = vld [vmem:[#allocation2 + $0x158] sm:$0xff]
        %v759 = vld [vmem:[#allocation2 + $0x168] sm:$0xff]
        %v760 = vld [vmem:[#allocation2 + $0x170] sm:$0xff]
        %v761 = vld [vmem:[#allocation2 + $0x180] sm:$0xff]
        %v762 = vld [vmem:[#allocation2 + $0x188] sm:$0xff]
        %v763 = vld [vmem:[#allocation2 + $0x198] sm:$0xff]
        %v764 = vld [vmem:[#allocation2 + $0x1a0] sm:$0xff]
        %v765 = vld [vmem:[#allocation2 + $0x1] sm:$0xff]
        %v766 = vld [vmem:[#allocation2 + $0x9] sm:$0xff]
        %v767 = vld [vmem:[#allocation2 + $0x19] sm:$0xff]
        %v768 = vld [vmem:[#allocation2 + $0x21] sm:$0xff]
        %v769 = vld [vmem:[#allocation2 + $0x31] sm:$0xff]
        %v770 = vld [vmem:[#allocation2 + $0x39] sm:$0xff]
        %v771 = vld [vmem:[#allocation2 + $0x49] sm:$0xff]
        %v772 = vld [vmem:[#allocation2 + $0x51] sm:$0xff]
        %v773 = vld [vmem:[#allocation2 + $0x61] sm:$0xff]
        %v774 = vld [vmem:[#allocation2 + $0x69] sm:$0xff]
        %v775 = vld [vmem:[#allocation2 + $0x79] sm:$0xff]
        %v776 = vld [vmem:[#allocation2 + $0x81] sm:$0xff]
        %v777 = vld [vmem:[#allocation2 + $0x91] sm:$0xff]
        %v778 = vld [vmem:[#allocation2 + $0x99] sm:$0xff]
        %v779 = vld [vmem:[#allocation2 + $0xa9] sm:$0xff]
        %v780 = vld [vmem:[#allocation2 + $0xb1] sm:$0xff]
        %v781 = vld [vmem:[#allocation2 + $0xc1] sm:$0xff]
        %v782 = vld [vmem:[#allocation2 + $0xc9] sm:$0xff]
        %v783 = vld [vmem:[#allocation2 + $0xd9] sm:$0xff]
        %v784 = vld [vmem:[#allocation2 + $0xe1] sm:$0xff]
        %v785 = vld [vmem:[#allocation2 + $0xf1] sm:$0xff]
        %v786 = vld [vmem:[#allocation2 + $0xf9] sm:$0xff]
        %v787 = vld [vmem:[#allocation2 + $0x109] sm:$0xff]
        %v788 = vld [vmem:[#allocation2 + $0x111] sm:$0xff]
        %v789 = vld [vmem:[#allocation2 + $0x121] sm:$0xff]
        %v790 = vld [vmem:[#allocation2 + $0x129] sm:$0xff]
        %v791 = vld [vmem:[#allocation2 + $0x139] sm:$0xff]
        %v792 = vld [vmem:[#allocation2 + $0x141] sm:$0xff]
        %v793 = vld [vmem:[#allocation2 + $0x151] sm:$0xff]
        %v794 = vld [vmem:[#allocation2 + $0x159] sm:$0xff]
        %v795 = vld [vmem:[#allocation2 + $0x169] sm:$0xff]
        %v796 = vld [vmem:[#allocation2 + $0x171] sm:$0xff]
        %v797 = vld [vmem:[#allocation2 + $0x181] sm:$0xff]
        %v798 = vld [vmem:[#allocation2 + $0x189] sm:$0xff]
        %v799 = vld [vmem:[#allocation2 + $0x199] sm:$0xff]
        %v800 = vld [vmem:[#allocation2 + $0x1a1] sm:$0xff]
        %v801 = vld [vmem:[#allocation2 + $0x2] sm:$0xff]
        %v802 = vld [vmem:[#allocation2 + $0xa] sm:$0xff]
        %v803 = vld [vmem:[#allocation2 + $0x1a] sm:$0xff]
        %v804 = vld [vmem:[#allocation2 + $0x22] sm:$0xff]
        %v805 = vld [vmem:[#allocation2 + $0x32] sm:$0xff]
        %v806 = vld [vmem:[#allocation2 + $0x3a] sm:$0xff]
        %v807 = vld [vmem:[#allocation2 + $0x4a] sm:$0xff]
        %v808 = vld [vmem:[#allocation2 + $0x52] sm:$0xff]
        %v809 = vld [vmem:[#allocation2 + $0x62] sm:$0xff]
        %v810 = vld [vmem:[#allocation2 + $0x6a] sm:$0xff]
        %v811 = vld [vmem:[#allocation2 + $0x7a] sm:$0xff]
        %v812 = vld [vmem:[#allocation2 + $0x82] sm:$0xff]
        %v813 = vld [vmem:[#allocation2 + $0x92] sm:$0xff]
        %v814 = vld [vmem:[#allocation2 + $0x9a] sm:$0xff]
        %v815 = vld [vmem:[#allocation2 + $0xaa] sm:$0xff]
        %v816 = vld [vmem:[#allocation2 + $0xb2] sm:$0xff]
        %v817 = vld [vmem:[#allocation2 + $0xc2] sm:$0xff]
        %v818 = vld [vmem:[#allocation2 + $0xca] sm:$0xff]
        %v819 = vld [vmem:[#allocation2 + $0xda] sm:$0xff]
        %v820 = vld [vmem:[#allocation2 + $0xe2] sm:$0xff]
        %v821 = vld [vmem:[#allocation2 + $0xf2] sm:$0xff]
        %v822 = vld [vmem:[#allocation2 + $0xfa] sm:$0xff]
        %v823 = vld [vmem:[#allocation2 + $0x10a] sm:$0xff]
        %v824 = vld [vmem:[#allocation2 + $0x112] sm:$0xff]
        %v825 = vld [vmem:[#allocation2 + $0x122] sm:$0xff]
        %v826 = vld [vmem:[#allocation2 + $0x12a] sm:$0xff]
        %v827 = vld [vmem:[#allocation2 + $0x13a] sm:$0xff]
        %v828 = vld [vmem:[#allocation2 + $0x142] sm:$0xff]
        %v829 = vld [vmem:[#allocation2 + $0x152] sm:$0xff]
        %v830 = vld [vmem:[#allocation2 + $0x15a] sm:$0xff]
        %v831 = vld [vmem:[#allocation2 + $0x16a] sm:$0xff]
        %v832 = vld [vmem:[#allocation2 + $0x172] sm:$0xff]
        %v833 = vld [vmem:[#allocation2 + $0x182] sm:$0xff]
        %v834 = vld [vmem:[#allocation2 + $0x18a] sm:$0xff]
        %v835 = vld [vmem:[#allocation2 + $0x19a] sm:$0xff]
        %v836 = vld [vmem:[#allocation2 + $0x1a2] sm:$0xff]
        %837 = vst [vmem:[#allocation3] sm:$0xff] %v729
        %838 = vst [vmem:[#allocation3 + $0x8] sm:$0xff] %v765
        %839 = vst [vmem:[#allocation3 + $0x10] sm:$0xff] %v801
        %840 = vst [vmem:[#allocation3 + $0x18] sm:$0xff] %v730
        %841 = vst [vmem:[#allocation3 + $0x20] sm:$0xff] %v766
        %842 = vst [vmem:[#allocation3 + $0x28] sm:$0xff] %v802
        %843 = vst [vmem:[#allocation3 + $0x30] sm:$0xff] %v731
        %844 = vst [vmem:[#allocation3 + $0x38] sm:$0xff] %v767
        %845 = vst [vmem:[#allocation3 + $0x40] sm:$0xff] %v803
        %846 = vst [vmem:[#allocation3 + $0x48] sm:$0xff] %v732
        %847 = vst [vmem:[#allocation3 + $0x50] sm:$0xff] %v768
        %848 = vst [vmem:[#allocation3 + $0x58] sm:$0xff] %v804
        %849 = vst [vmem:[#allocation3 + $0x60] sm:$0xff] %v733
        %850 = vst [vmem:[#allocation3 + $0x68] sm:$0xff] %v769
        %851 = vst [vmem:[#allocation3 + $0x70] sm:$0xff] %v805
        %852 = vst [vmem:[#allocation3 + $0x78] sm:$0xff] %v734
        %853 = vst [vmem:[#allocation3 + $0x80] sm:$0xff] %v770
        %854 = vst [vmem:[#allocation3 + $0x88] sm:$0xff] %v806
        %855 = vst [vmem:[#allocation3 + $0x90] sm:$0xff] %v735
        %856 = vst [vmem:[#allocation3 + $0x98] sm:$0xff] %v771
        %857 = vst [vmem:[#allocation3 + $0xa0] sm:$0xff] %v807
        %858 = vst [vmem:[#allocation3 + $0xa8] sm:$0xff] %v736
        %859 = vst [vmem:[#allocation3 + $0xb0] sm:$0xff] %v772
        %860 = vst [vmem:[#allocation3 + $0xb8] sm:$0xff] %v808
        %861 = vst [vmem:[#allocation3 + $0xc0] sm:$0xff] %v737
        %862 = vst [vmem:[#allocation3 + $0xc8] sm:$0xff] %v773
        %863 = vst [vmem:[#allocation3 + $0xd0] sm:$0xff] %v809
        %864 = vst [vmem:[#allocation3 + $0xd8] sm:$0xff] %v738
        %865 = vst [vmem:[#allocation3 + $0xe0] sm:$0xff] %v774
        %866 = vst [vmem:[#allocation3 + $0xe8] sm:$0xff] %v810
        %867 = vst [vmem:[#allocation3 + $0xf0] sm:$0xff] %v739
        %868 = vst [vmem:[#allocation3 + $0xf8] sm:$0xff] %v775
        %869 = vst [vmem:[#allocation3 + $0x100] sm:$0xff] %v811
        %870 = vst [vmem:[#allocation3 + $0x108] sm:$0xff] %v740
        %871 = vst [vmem:[#allocation3 + $0x110] sm:$0xff] %v776
        %872 = vst [vmem:[#allocation3 + $0x118] sm:$0xff] %v812
        %873 = vst [vmem:[#allocation3 + $0x120] sm:$0xff] %v741
        %874 = vst [vmem:[#allocation3 + $0x128] sm:$0xff] %v777
        %875 = vst [vmem:[#allocation3 + $0x130] sm:$0xff] %v813
        %876 = vst [vmem:[#allocation3 + $0x138] sm:$0xff] %v742
        %877 = vst [vmem:[#allocation3 + $0x140] sm:$0xff] %v778
        %878 = vst [vmem:[#allocation3 + $0x148] sm:$0xff] %v814
        %879 = vst [vmem:[#allocation3 + $0x150] sm:$0xff] %v743
        %880 = vst [vmem:[#allocation3 + $0x158] sm:$0xff] %v779
        %881 = vst [vmem:[#allocation3 + $0x160] sm:$0xff] %v815
        %882 = vst [vmem:[#allocation3 + $0x168] sm:$0xff] %v744
        %883 = vst [vmem:[#allocation3 + $0x170] sm:$0xff] %v780
        %884 = vst [vmem:[#allocation3 + $0x178] sm:$0xff] %v816
        %885 = vst [vmem:[#allocation3 + $0x180] sm:$0xff] %v745
        %886 = vst [vmem:[#allocation3 + $0x188] sm:$0xff] %v781
        %887 = vst [vmem:[#allocation3 + $0x190] sm:$0xff] %v817
        %888 = vst [vmem:[#allocation3 + $0x198] sm:$0xff] %v746
        %889 = vst [vmem:[#allocation3 + $0x1a0] sm:$0xff] %v782
        %890 = vst [vmem:[#allocation3 + $0x1a8] sm:$0xff] %v818
        %891 = vst [vmem:[#allocation3 + $0x1b0] sm:$0xff] %v747
        %892 = vst [vmem:[#allocation3 + $0x1b8] sm:$0xff] %v783
        %893 = vst [vmem:[#allocation3 + $0x1c0] sm:$0xff] %v819
        %894 = vst [vmem:[#allocation3 + $0x1c8] sm:$0xff] %v748
        %895 = vst [vmem:[#allocation3 + $0x1d0] sm:$0xff] %v784
        %896 = vst [vmem:[#allocation3 + $0x1d8] sm:$0xff] %v820
        %897 = vst [vmem:[#allocation3 + $0x1e0] sm:$0xff] %v749
        %898 = vst [vmem:[#allocation3 + $0x1e8] sm:$0xff] %v785
        %899 = vst [vmem:[#allocation3 + $0x1f0] sm:$0xff] %v821
        %900 = vst [vmem:[#allocation3 + $0x1f8] sm:$0xff] %v750
        %901 = vst [vmem:[#allocation3 + $0x200] sm:$0xff] %v786
        %902 = vst [vmem:[#allocation3 + $0x208] sm:$0xff] %v822
        %903 = vst [vmem:[#allocation3 + $0x210] sm:$0xff] %v751
        %904 = vst [vmem:[#allocation3 + $0x218] sm:$0xff] %v787
        %905 = vst [vmem:[#allocation3 + $0x220] sm:$0xff] %v823
        %906 = vst [vmem:[#allocation3 + $0x228] sm:$0xff] %v752
        %907 = vst [vmem:[#allocation3 + $0x230] sm:$0xff] %v788
        %908 = vst [vmem:[#allocation3 + $0x238] sm:$0xff] %v824
        %909 = vst [vmem:[#allocation3 + $0x240] sm:$0xff] %v753
        %910 = vst [vmem:[#allocation3 + $0x248] sm:$0xff] %v789
        %911 = vst [vmem:[#allocation3 + $0x250] sm:$0xff] %v825
        %912 = vst [vmem:[#allocation3 + $0x258] sm:$0xff] %v754
        %913 = vst [vmem:[#allocation3 + $0x260] sm:$0xff] %v790
        %914 = vst [vmem:[#allocation3 + $0x268] sm:$0xff] %v826
        %915 = vst [vmem:[#allocation3 + $0x270] sm:$0xff] %v755
        %916 = vst [vmem:[#allocation3 + $0x278] sm:$0xff] %v791
        %917 = vst [vmem:[#allocation3 + $0x280] sm:$0xff] %v827
        %918 = vst [vmem:[#allocation3 + $0x288] sm:$0xff] %v756
        %919 = vst [vmem:[#allocation3 + $0x290] sm:$0xff] %v792
        %920 = vst [vmem:[#allocation3 + $0x298] sm:$0xff] %v828
        %921 = vst [vmem:[#allocation3 + $0x2a0] sm:$0xff] %v757
        %922 = vst [vmem:[#allocation3 + $0x2a8] sm:$0xff] %v793
        %923 = vst [vmem:[#allocation3 + $0x2b0] sm:$0xff] %v829
        %924 = vst [vmem:[#allocation3 + $0x2b8] sm:$0xff] %v758
        %925 = vst [vmem:[#allocation3 + $0x2c0] sm:$0xff] %v794
        %926 = vst [vmem:[#allocation3 + $0x2c8] sm:$0xff] %v830
        %927 = vst [vmem:[#allocation3 + $0x2d0] sm:$0xff] %v759
        %928 = vst [vmem:[#allocation3 + $0x2d8] sm:$0xff] %v795
        %929 = vst [vmem:[#allocation3 + $0x2e0] sm:$0xff] %v831
        %930 = vst [vmem:[#allocation3 + $0x2e8] sm:$0xff] %v760
        %931 = vst [vmem:[#allocation3 + $0x2f0] sm:$0xff] %v796
        %932 = vst [vmem:[#allocation3 + $0x2f8] sm:$0xff] %v832
        %933 = vst [vmem:[#allocation3 + $0x300] sm:$0xff] %v761
        %934 = vst [vmem:[#allocation3 + $0x308] sm:$0xff] %v797
        %935 = vst [vmem:[#allocation3 + $0x310] sm:$0xff] %v833
        %936 = vst [vmem:[#allocation3 + $0x318] sm:$0xff] %v762
        %937 = vst [vmem:[#allocation3 + $0x320] sm:$0xff] %v798
        %938 = vst [vmem:[#allocation3 + $0x328] sm:$0xff] %v834
        %939 = vst [vmem:[#allocation3 + $0x330] sm:$0xff] %v763
        %940 = vst [vmem:[#allocation3 + $0x338] sm:$0xff] %v799
        %941 = vst [vmem:[#allocation3 + $0x340] sm:$0xff] %v835
        %942 = vst [vmem:[#allocation3 + $0x348] sm:$0xff] %v764
        %943 = vst [vmem:[#allocation3 + $0x350] sm:$0xff] %v800
        %944 = vst [vmem:[#allocation3 + $0x358] sm:$0xff] %v836
        %v945 = vld [vmem:[#allocation3] sm:$0xff]
        %v946 = vld [vmem:[#allocation3 + $0x8] sm:$0xff]
        %v947 = vld [vmem:[#allocation3 + $0x10] sm:$0xff]
        %v948 = vld [vmem:[#allocation3 + $0x18] sm:$0xff]
        %v949 = vld [vmem:[#allocation3 + $0x20] sm:$0xff]
        %v950 = vld [vmem:[#allocation3 + $0x28] sm:$0xff]
        %v951 = vld [vmem:[#allocation3 + $0x30] sm:$0xff]
        %v952 = vld [vmem:[#allocation3 + $0x38] sm:$0xff]
        %v953 = vld [vmem:[#allocation3 + $0x40] sm:$0xff]
        %v954 = vld [vmem:[#allocation3 + $0x48] sm:$0xff]
        %v955 = vld [vmem:[#allocation3 + $0x50] sm:$0xff]
        %v956 = vld [vmem:[#allocation3 + $0x58] sm:$0xff]
        %v957 = vld [vmem:[#allocation3 + $0x60] sm:$0xff]
        %v958 = vld [vmem:[#allocation3 + $0x68] sm:$0xff]
        %v959 = vld [vmem:[#allocation3 + $0x70] sm:$0xff]
        %v960 = vld [vmem:[#allocation3 + $0x78] sm:$0xff]
        %v961 = vld [vmem:[#allocation3 + $0x80] sm:$0xff]
        %v962 = vld [vmem:[#allocation3 + $0x88] sm:$0xff]
        %v963 = vld [vmem:[#allocation3 + $0x90] sm:$0xff]
        %v964 = vld [vmem:[#allocation3 + $0x98] sm:$0xff]
        %v965 = vld [vmem:[#allocation3 + $0xa0] sm:$0xff]
        %v966 = vld [vmem:[#allocation3 + $0xa8] sm:$0xff]
        %v967 = vld [vmem:[#allocation3 + $0xb0] sm:$0xff]
        %v968 = vld [vmem:[#allocation3 + $0xb8] sm:$0xff]
        %v969 = vld [vmem:[#allocation3 + $0xc0] sm:$0xff]
        %v970 = vld [vmem:[#allocation3 + $0xc8] sm:$0xff]
        %v971 = vld [vmem:[#allocation3 + $0xd0] sm:$0xff]
        %v972 = vld [vmem:[#allocation3 + $0xd8] sm:$0xff]
        %v973 = vld [vmem:[#allocation3 + $0xe0] sm:$0xff]
        %v974 = vld [vmem:[#allocation3 + $0xe8] sm:$0xff]
        %v975 = vld [vmem:[#allocation3 + $0xf0] sm:$0xff]
        %v976 = vld [vmem:[#allocation3 + $0xf8] sm:$0xff]
        %v977 = vld [vmem:[#allocation3 + $0x100] sm:$0xff]
        %v978 = vld [vmem:[#allocation3 + $0x108] sm:$0xff]
        %v979 = vld [vmem:[#allocation3 + $0x110] sm:$0xff]
        %v980 = vld [vmem:[#allocation3 + $0x118] sm:$0xff]
        %v981 = vld [vmem:[#allocation3 + $0x120] sm:$0xff]
        %v982 = vld [vmem:[#allocation3 + $0x128] sm:$0xff]
        %v983 = vld [vmem:[#allocation3 + $0x130] sm:$0xff]
        %v984 = vld [vmem:[#allocation3 + $0x138] sm:$0xff]
        %v985 = vld [vmem:[#allocation3 + $0x140] sm:$0xff]
        %v986 = vld [vmem:[#allocation3 + $0x148] sm:$0xff]
        %v987 = vld [vmem:[#allocation3 + $0x150] sm:$0xff]
        %v988 = vld [vmem:[#allocation3 + $0x158] sm:$0xff]
        %v989 = vld [vmem:[#allocation3 + $0x160] sm:$0xff]
        %v990 = vld [vmem:[#allocation3 + $0x168] sm:$0xff]
        %v991 = vld [vmem:[#allocation3 + $0x170] sm:$0xff]
        %v992 = vld [vmem:[#allocation3 + $0x178] sm:$0xff]
        %v993 = vld [vmem:[#allocation3 + $0x180] sm:$0xff]
        %v994 = vld [vmem:[#allocation3 + $0x188] sm:$0xff]
        %v995 = vld [vmem:[#allocation3 + $0x190] sm:$0xff]
        %v996 = vld [vmem:[#allocation3 + $0x198] sm:$0xff]
        %v997 = vld [vmem:[#allocation3 + $0x1a0] sm:$0xff]
        %v998 = vld [vmem:[#allocation3 + $0x1a8] sm:$0xff]
        %v999 = vld [vmem:[#allocation3 + $0x1b0] sm:$0xff]
        %v1000 = vld [vmem:[#allocation3 + $0x1b8] sm:$0xff]
        %v1001 = vld [vmem:[#allocation3 + $0x1c0] sm:$0xff]
        %v1002 = vld [vmem:[#allocation3 + $0x1c8] sm:$0xff]
        %v1003 = vld [vmem:[#allocation3 + $0x1d0] sm:$0xff]
        %v1004 = vld [vmem:[#allocation3 + $0x1d8] sm:$0xff]
        %v1005 = vld [vmem:[#allocation3 + $0x1e0] sm:$0xff]
        %v1006 = vld [vmem:[#allocation3 + $0x1e8] sm:$0xff]
        %v1007 = vld [vmem:[#allocation3 + $0x1f0] sm:$0xff]
        %v1008 = vld [vmem:[#allocation3 + $0x1f8] sm:$0xff]
        %v1009 = vld [vmem:[#allocation3 + $0x200] sm:$0xff]
        %v1010 = vld [vmem:[#allocation3 + $0x208] sm:$0xff]
        %v1011 = vld [vmem:[#allocation3 + $0x210] sm:$0xff]
        %v1012 = vld [vmem:[#allocation3 + $0x218] sm:$0xff]
        %v1013 = vld [vmem:[#allocation3 + $0x220] sm:$0xff]
        %v1014 = vld [vmem:[#allocation3 + $0x228] sm:$0xff]
        %v1015 = vld [vmem:[#allocation3 + $0x230] sm:$0xff]
        %v1016 = vld [vmem:[#allocation3 + $0x238] sm:$0xff]
        %v1017 = vld [vmem:[#allocation3 + $0x240] sm:$0xff]
        %v1018 = vld [vmem:[#allocation3 + $0x248] sm:$0xff]
        %v1019 = vld [vmem:[#allocation3 + $0x250] sm:$0xff]
        %v1020 = vld [vmem:[#allocation3 + $0x258] sm:$0xff]
        %v1021 = vld [vmem:[#allocation3 + $0x260] sm:$0xff]
        %v1022 = vld [vmem:[#allocation3 + $0x268] sm:$0xff]
        %v1023 = vld [vmem:[#allocation3 + $0x270] sm:$0xff]
        %v1024 = vld [vmem:[#allocation3 + $0x278] sm:$0xff]
        %v1025 = vld [vmem:[#allocation3 + $0x280] sm:$0xff]
        %v1026 = vld [vmem:[#allocation3 + $0x288] sm:$0xff]
        %v1027 = vld [vmem:[#allocation3 + $0x290] sm:$0xff]
        %v1028 = vld [vmem:[#allocation3 + $0x298] sm:$0xff]
        %v1029 = vld [vmem:[#allocation3 + $0x2a0] sm:$0xff]
        %v1030 = vld [vmem:[#allocation3 + $0x2a8] sm:$0xff]
        %v1031 = vld [vmem:[#allocation3 + $0x2b0] sm:$0xff]
        %v1032 = vld [vmem:[#allocation3 + $0x2b8] sm:$0xff]
        %v1033 = vld [vmem:[#allocation3 + $0x2c0] sm:$0xff]
        %v1034 = vld [vmem:[#allocation3 + $0x2c8] sm:$0xff]
        %v1035 = vld [vmem:[#allocation3 + $0x2d0] sm:$0xff]
        %v1036 = vld [vmem:[#allocation3 + $0x2d8] sm:$0xff]
        %v1037 = vld [vmem:[#allocation3 + $0x2e0] sm:$0xff]
        %v1038 = vld [vmem:[#allocation3 + $0x2e8] sm:$0xff]
        %v1039 = vld [vmem:[#allocation3 + $0x2f0] sm:$0xff]
        %v1040 = vld [vmem:[#allocation3 + $0x2f8] sm:$0xff]
        %s1041 = scalar_lea.vmem [#allocation3], 48
        %v1042 = vld [vmem:[%s1041] sm:$0xff]
        %v1043 = vld [vmem:[%s1041 + $0x8] sm:$0xff]
        %v1044 = vld [vmem:[%s1041 + $0x10] sm:$0xff]
        %v1045 = vld [vmem:[%s1041 + $0x18] sm:$0xff]
        %v1046 = vld [vmem:[%s1041 + $0x20] sm:$0xff]
        %v1047 = vld [vmem:[%s1041 + $0x28] sm:$0xff]
        %v1048 = vld [vmem:[%s1041 + $0x30] sm:$0xff]
        %v1049 = vld [vmem:[%s1041 + $0x38] sm:$0xff]
        %v1050 = vld [vmem:[%s1041 + $0x40] sm:$0xff]
        %v1051 = vld [vmem:[%s1041 + $0x48] sm:$0xff]
        %v1052 = vld [vmem:[%s1041 + $0x50] sm:$0xff]
        %v1053 = vld [vmem:[%s1041 + $0x58] sm:$0xff]
        %v1054 = vld [vmem:[%s1041 + $0x60] sm:$0xff]
        %v1055 = vld [vmem:[%s1041 + $0x68] sm:$0xff]
        %v1056 = vld [vmem:[%s1041 + $0x70] sm:$0xff]
        %v1057 = vld [vmem:[%s1041 + $0x78] sm:$0xff]
        %v1058 = vld [vmem:[%s1041 + $0x80] sm:$0xff]
        %v1059 = vld [vmem:[%s1041 + $0x88] sm:$0xff]
        %v1060 = vld [vmem:[%s1041 + $0x90] sm:$0xff]
        %v1061 = vld [vmem:[%s1041 + $0x98] sm:$0xff]
        %v1062 = vld [vmem:[%s1041 + $0xa0] sm:$0xff]
        %v1063 = vld [vmem:[%s1041 + $0xa8] sm:$0xff]
        %v1064 = vld [vmem:[%s1041 + $0xb0] sm:$0xff]
        %v1065 = vld [vmem:[%s1041 + $0xb8] sm:$0xff]
        %v1066 = vld [vmem:[%s1041 + $0xc0] sm:$0xff]
        %v1067 = vld [vmem:[%s1041 + $0xc8] sm:$0xff]
        %v1068 = vld [vmem:[%s1041 + $0xd0] sm:$0xff]
        %v1069 = vld [vmem:[%s1041 + $0xd8] sm:$0xff]
        %v1070 = vld [vmem:[%s1041 + $0xe0] sm:$0xff]
        %v1071 = vld [vmem:[%s1041 + $0xe8] sm:$0xff]
        %v1072 = vld [vmem:[%s1041 + $0xf0] sm:$0xff]
        %v1073 = vld [vmem:[%s1041 + $0xf8] sm:$0xff]
        %v1074 = vld [vmem:[%s1041 + $0x100] sm:$0xff]
        %v1075 = vld [vmem:[%s1041 + $0x108] sm:$0xff]
        %v1076 = vld [vmem:[%s1041 + $0x110] sm:$0xff]
        %v1077 = vld [vmem:[%s1041 + $0x118] sm:$0xff]
        %v1078 = vld [vmem:[%s1041 + $0x120] sm:$0xff]
        %v1079 = vld [vmem:[%s1041 + $0x128] sm:$0xff]
        %v1080 = vld [vmem:[%s1041 + $0x130] sm:$0xff]
        %v1081 = vld [vmem:[%s1041 + $0x138] sm:$0xff]
        %v1082 = vld [vmem:[%s1041 + $0x140] sm:$0xff]
        %v1083 = vld [vmem:[%s1041 + $0x148] sm:$0xff]
        %v1084 = vld [vmem:[%s1041 + $0x150] sm:$0xff]
        %v1085 = vld [vmem:[%s1041 + $0x158] sm:$0xff]
        %v1086 = vld [vmem:[%s1041 + $0x160] sm:$0xff]
        %v1087 = vld [vmem:[%s1041 + $0x168] sm:$0xff]
        %v1088 = vld [vmem:[%s1041 + $0x170] sm:$0xff]
        %v1089 = vld [vmem:[%s1041 + $0x178] sm:$0xff]
        %v1090 = vld [vmem:[%s1041 + $0x180] sm:$0xff]
        %v1091 = vld [vmem:[%s1041 + $0x188] sm:$0xff]
        %v1092 = vld [vmem:[%s1041 + $0x190] sm:$0xff]
        %v1093 = vld [vmem:[%s1041 + $0x198] sm:$0xff]
        %v1094 = vld [vmem:[%s1041 + $0x1a0] sm:$0xff]
        %v1095 = vld [vmem:[%s1041 + $0x1a8] sm:$0xff]
        %v1096 = vld [vmem:[%s1041 + $0x1b0] sm:$0xff]
        %v1097 = vld [vmem:[%s1041 + $0x1b8] sm:$0xff]
        %v1098 = vld [vmem:[%s1041 + $0x1c0] sm:$0xff]
        %v1099 = vld [vmem:[%s1041 + $0x1c8] sm:$0xff]
        %v1100 = vld [vmem:[%s1041 + $0x1d0] sm:$0xff]
        %v1101 = vld [vmem:[%s1041 + $0x1d8] sm:$0xff]
        %v1102 = vld [vmem:[%s1041 + $0x1e0] sm:$0xff]
        %v1103 = vld [vmem:[%s1041 + $0x1e8] sm:$0xff]
        %v1104 = vld [vmem:[%s1041 + $0x1f0] sm:$0xff]
        %v1105 = vld [vmem:[%s1041 + $0x1f8] sm:$0xff]
        %v1106 = vld [vmem:[%s1041 + $0x200] sm:$0xff]
        %v1107 = vld [vmem:[%s1041 + $0x208] sm:$0xff]
        %v1108 = vld [vmem:[%s1041 + $0x210] sm:$0xff]
        %v1109 = vld [vmem:[%s1041 + $0x218] sm:$0xff]
        %v1110 = vld [vmem:[%s1041 + $0x220] sm:$0xff]
        %v1111 = vld [vmem:[%s1041 + $0x228] sm:$0xff]
        %v1112 = vld [vmem:[%s1041 + $0x230] sm:$0xff]
        %v1113 = vld [vmem:[%s1041 + $0x238] sm:$0xff]
        %v1114 = vld [vmem:[%s1041 + $0x240] sm:$0xff]
        %v1115 = vld [vmem:[%s1041 + $0x248] sm:$0xff]
        %v1116 = vld [vmem:[%s1041 + $0x250] sm:$0xff]
        %v1117 = vld [vmem:[%s1041 + $0x258] sm:$0xff]
        %v1118 = vld [vmem:[%s1041 + $0x260] sm:$0xff]
        %v1119 = vld [vmem:[%s1041 + $0x268] sm:$0xff]
        %v1120 = vld [vmem:[%s1041 + $0x270] sm:$0xff]
        %v1121 = vld [vmem:[%s1041 + $0x278] sm:$0xff]
        %v1122 = vld [vmem:[%s1041 + $0x280] sm:$0xff]
        %v1123 = vld [vmem:[%s1041 + $0x288] sm:$0xff]
        %v1124 = vld [vmem:[%s1041 + $0x290] sm:$0xff]
        %v1125 = vld [vmem:[%s1041 + $0x298] sm:$0xff]
        %v1126 = vld [vmem:[%s1041 + $0x2a0] sm:$0xff]
        %v1127 = vld [vmem:[%s1041 + $0x2a8] sm:$0xff]
        %v1128 = vld [vmem:[%s1041 + $0x2b0] sm:$0xff]
        %v1129 = vld [vmem:[%s1041 + $0x2b8] sm:$0xff]
        %v1130 = vld [vmem:[%s1041 + $0x2c0] sm:$0xff]
        %v1131 = vld [vmem:[%s1041 + $0x2c8] sm:$0xff]
        %v1132 = vld [vmem:[%s1041 + $0x2d0] sm:$0xff]
        %v1133 = vld [vmem:[%s1041 + $0x2d8] sm:$0xff]
        %v1134 = vld [vmem:[%s1041 + $0x2e0] sm:$0xff]
        %v1135 = vld [vmem:[%s1041 + $0x2e8] sm:$0xff]
        %v1136 = vld [vmem:[%s1041 + $0x2f0] sm:$0xff]
        %v1137 = vld [vmem:[%s1041 + $0x2f8] sm:$0xff]
        %s1138 = scalar_lea.vmem [#allocation3], 96
        %v1139 = vld [vmem:[%s1138] sm:$0xff]
        %v1140 = vld [vmem:[%s1138 + $0x8] sm:$0xff]
        %v1141 = vld [vmem:[%s1138 + $0x10] sm:$0xff]
        %v1142 = vld [vmem:[%s1138 + $0x18] sm:$0xff]
        %v1143 = vld [vmem:[%s1138 + $0x20] sm:$0xff]
        %v1144 = vld [vmem:[%s1138 + $0x28] sm:$0xff]
        %v1145 = vld [vmem:[%s1138 + $0x30] sm:$0xff]
        %v1146 = vld [vmem:[%s1138 + $0x38] sm:$0xff]
        %v1147 = vld [vmem:[%s1138 + $0x40] sm:$0xff]
        %v1148 = vld [vmem:[%s1138 + $0x48] sm:$0xff]
        %v1149 = vld [vmem:[%s1138 + $0x50] sm:$0xff]
        %v1150 = vld [vmem:[%s1138 + $0x58] sm:$0xff]
        %v1151 = vld [vmem:[%s1138 + $0x60] sm:$0xff]
        %v1152 = vld [vmem:[%s1138 + $0x68] sm:$0xff]
        %v1153 = vld [vmem:[%s1138 + $0x70] sm:$0xff]
        %v1154 = vld [vmem:[%s1138 + $0x78] sm:$0xff]
        %v1155 = vld [vmem:[%s1138 + $0x80] sm:$0xff]
        %v1156 = vld [vmem:[%s1138 + $0x88] sm:$0xff]
        %v1157 = vld [vmem:[%s1138 + $0x90] sm:$0xff]
        %v1158 = vld [vmem:[%s1138 + $0x98] sm:$0xff]
        %v1159 = vld [vmem:[%s1138 + $0xa0] sm:$0xff]
        %v1160 = vld [vmem:[%s1138 + $0xa8] sm:$0xff]
        %v1161 = vld [vmem:[%s1138 + $0xb0] sm:$0xff]
        %v1162 = vld [vmem:[%s1138 + $0xb8] sm:$0xff]
        %v1163 = vld [vmem:[%s1138 + $0xc0] sm:$0xff]
        %v1164 = vld [vmem:[%s1138 + $0xc8] sm:$0xff]
        %v1165 = vld [vmem:[%s1138 + $0xd0] sm:$0xff]
        %v1166 = vld [vmem:[%s1138 + $0xd8] sm:$0xff]
        %v1167 = vld [vmem:[%s1138 + $0xe0] sm:$0xff]
        %v1168 = vld [vmem:[%s1138 + $0xe8] sm:$0xff]
        %v1169 = vld [vmem:[%s1138 + $0xf0] sm:$0xff]
        %v1170 = vld [vmem:[%s1138 + $0xf8] sm:$0xff]
        %v1171 = vld [vmem:[%s1138 + $0x100] sm:$0xff]
        %v1172 = vld [vmem:[%s1138 + $0x108] sm:$0xff]
        %v1173 = vld [vmem:[%s1138 + $0x110] sm:$0xff]
        %v1174 = vld [vmem:[%s1138 + $0x118] sm:$0xff]
        %v1175 = vld [vmem:[%s1138 + $0x120] sm:$0xff]
        %v1176 = vld [vmem:[%s1138 + $0x128] sm:$0xff]
        %v1177 = vld [vmem:[%s1138 + $0x130] sm:$0xff]
        %v1178 = vld [vmem:[%s1138 + $0x138] sm:$0xff]
        %v1179 = vld [vmem:[%s1138 + $0x140] sm:$0xff]
        %v1180 = vld [vmem:[%s1138 + $0x148] sm:$0xff]
        %v1181 = vld [vmem:[%s1138 + $0x150] sm:$0xff]
        %v1182 = vld [vmem:[%s1138 + $0x158] sm:$0xff]
        %v1183 = vld [vmem:[%s1138 + $0x160] sm:$0xff]
        %v1184 = vld [vmem:[%s1138 + $0x168] sm:$0xff]
        %v1185 = vld [vmem:[%s1138 + $0x170] sm:$0xff]
        %v1186 = vld [vmem:[%s1138 + $0x178] sm:$0xff]
        %v1187 = vld [vmem:[%s1138 + $0x180] sm:$0xff]
        %v1188 = vld [vmem:[%s1138 + $0x188] sm:$0xff]
        %v1189 = vld [vmem:[%s1138 + $0x190] sm:$0xff]
        %v1190 = vld [vmem:[%s1138 + $0x198] sm:$0xff]
        %v1191 = vld [vmem:[%s1138 + $0x1a0] sm:$0xff]
        %v1192 = vld [vmem:[%s1138 + $0x1a8] sm:$0xff]
        %v1193 = vld [vmem:[%s1138 + $0x1b0] sm:$0xff]
        %v1194 = vld [vmem:[%s1138 + $0x1b8] sm:$0xff]
        %v1195 = vld [vmem:[%s1138 + $0x1c0] sm:$0xff]
        %v1196 = vld [vmem:[%s1138 + $0x1c8] sm:$0xff]
        %v1197 = vld [vmem:[%s1138 + $0x1d0] sm:$0xff]
        %v1198 = vld [vmem:[%s1138 + $0x1d8] sm:$0xff]
        %v1199 = vld [vmem:[%s1138 + $0x1e0] sm:$0xff]
        %v1200 = vld [vmem:[%s1138 + $0x1e8] sm:$0xff]
        %v1201 = vld [vmem:[%s1138 + $0x1f0] sm:$0xff]
        %v1202 = vld [vmem:[%s1138 + $0x1f8] sm:$0xff]
        %v1203 = vld [vmem:[%s1138 + $0x200] sm:$0xff]
        %v1204 = vld [vmem:[%s1138 + $0x208] sm:$0xff]
        %v1205 = vld [vmem:[%s1138 + $0x210] sm:$0xff]
        %v1206 = vld [vmem:[%s1138 + $0x218] sm:$0xff]
        %v1207 = vld [vmem:[%s1138 + $0x220] sm:$0xff]
        %v1208 = vld [vmem:[%s1138 + $0x228] sm:$0xff]
        %v1209 = vld [vmem:[%s1138 + $0x230] sm:$0xff]
        %v1210 = vld [vmem:[%s1138 + $0x238] sm:$0xff]
        %v1211 = vld [vmem:[%s1138 + $0x240] sm:$0xff]
        %v1212 = vld [vmem:[%s1138 + $0x248] sm:$0xff]
        %v1213 = vld [vmem:[%s1138 + $0x250] sm:$0xff]
        %v1214 = vld [vmem:[%s1138 + $0x258] sm:$0xff]
        %v1215 = vld [vmem:[%s1138 + $0x260] sm:$0xff]
        %v1216 = vld [vmem:[%s1138 + $0x268] sm:$0xff]
        %v1217 = vld [vmem:[%s1138 + $0x270] sm:$0xff]
        %v1218 = vld [vmem:[%s1138 + $0x278] sm:$0xff]
        %v1219 = vld [vmem:[%s1138 + $0x280] sm:$0xff]
        %v1220 = vld [vmem:[%s1138 + $0x288] sm:$0xff]
        %v1221 = vld [vmem:[%s1138 + $0x290] sm:$0xff]
        %v1222 = vld [vmem:[%s1138 + $0x298] sm:$0xff]
        %v1223 = vld [vmem:[%s1138 + $0x2a0] sm:$0xff]
        %v1224 = vld [vmem:[%s1138 + $0x2a8] sm:$0xff]
        %v1225 = vld [vmem:[%s1138 + $0x2b0] sm:$0xff]
        %v1226 = vld [vmem:[%s1138 + $0x2b8] sm:$0xff]
        %v1227 = vld [vmem:[%s1138 + $0x2c0] sm:$0xff]
        %v1228 = vld [vmem:[%s1138 + $0x2c8] sm:$0xff]
        %v1229 = vld [vmem:[%s1138 + $0x2d0] sm:$0xff]
        %v1230 = vld [vmem:[%s1138 + $0x2d8] sm:$0xff]
        %v1231 = vld [vmem:[%s1138 + $0x2e0] sm:$0xff]
        %v1232 = vld [vmem:[%s1138 + $0x2e8] sm:$0xff]
        %v1233 = vld [vmem:[%s1138 + $0x2f0] sm:$0xff]
        %v1234 = vld [vmem:[%s1138 + $0x2f8] sm:$0xff]
        %v1235 = vld [vmem:[#allocation9] sm:$0xff]
        %v1236 = vld [vmem:[#allocation9 + $0x8] sm:$0xff]
        %v1237 = vld [vmem:[#allocation9 + $0x10] sm:$0xff]
        %v1238 = vld [vmem:[#allocation9 + $0x18] sm:$0xff]
        %v1239 = vld [vmem:[#allocation9 + $0x20] sm:$0xff]
        %v1240 = vld [vmem:[#allocation9 + $0x28] sm:$0xff]
        %v1241 = vld [vmem:[#allocation9 + $0x30] sm:$0xff]
        %v1242 = vld [vmem:[#allocation9 + $0x38] sm:$0xff]
        %v1243 = vld [vmem:[#allocation9 + $0x40] sm:$0xff]
        %v1244 = vld [vmem:[#allocation9 + $0x48] sm:$0xff]
        %v1245 = vld [vmem:[#allocation9 + $0x50] sm:$0xff]
        %v1246 = vld [vmem:[#allocation9 + $0x58] sm:$0xff]
        %v1247 = vld [vmem:[#allocation9 + $0x60] sm:$0xff]
        %v1248 = vld [vmem:[#allocation9 + $0x68] sm:$0xff]
        %v1249 = vld [vmem:[#allocation9 + $0x70] sm:$0xff]
        %v1250 = vld [vmem:[#allocation9 + $0x78] sm:$0xff]
        %v1251 = vld [vmem:[#allocation9 + $0x80] sm:$0xff]
        %v1252 = vld [vmem:[#allocation9 + $0x88] sm:$0xff]
        %v1253 = vld [vmem:[#allocation9 + $0x90] sm:$0xff]
        %v1254 = vld [vmem:[#allocation9 + $0x98] sm:$0xff]
        %v1255 = vld [vmem:[#allocation9 + $0xa0] sm:$0xff]
        %v1256 = vld [vmem:[#allocation9 + $0xa8] sm:$0xff]
        %v1257 = vld [vmem:[#allocation9 + $0xb0] sm:$0xff]
        %v1258 = vld [vmem:[#allocation9 + $0xb8] sm:$0xff]
        %v1259 = vld [vmem:[#allocation9 + $0xc0] sm:$0xff]
        %v1260 = vld [vmem:[#allocation9 + $0xc8] sm:$0xff]
        %v1261 = vld [vmem:[#allocation9 + $0xd0] sm:$0xff]
        %v1262 = vld [vmem:[#allocation9 + $0xd8] sm:$0xff]
        %v1263 = vld [vmem:[#allocation9 + $0xe0] sm:$0xff]
        %v1264 = vld [vmem:[#allocation9 + $0xe8] sm:$0xff]
        %v1265 = vld [vmem:[#allocation9 + $0xf0] sm:$0xff]
        %v1266 = vld [vmem:[#allocation9 + $0xf8] sm:$0xff]
        %v1267 = vld [vmem:[#allocation9 + $0x100] sm:$0xff]
        %v1268 = vld [vmem:[#allocation9 + $0x108] sm:$0xff]
        %v1269 = vld [vmem:[#allocation9 + $0x110] sm:$0xff]
        %v1270 = vld [vmem:[#allocation9 + $0x118] sm:$0xff]
        %v1271 = vld [vmem:[#allocation9 + $0x120] sm:$0xff]
        %v1272 = vld [vmem:[#allocation9 + $0x128] sm:$0xff]
        %v1273 = vld [vmem:[#allocation9 + $0x130] sm:$0xff]
        %v1274 = vld [vmem:[#allocation9 + $0x138] sm:$0xff]
        %v1275 = vld [vmem:[#allocation9 + $0x140] sm:$0xff]
        %v1276 = vld [vmem:[#allocation9 + $0x148] sm:$0xff]
        %v1277 = vld [vmem:[#allocation9 + $0x150] sm:$0xff]
        %v1278 = vld [vmem:[#allocation9 + $0x158] sm:$0xff]
        %v1279 = vld [vmem:[#allocation9 + $0x160] sm:$0xff]
        %v1280 = vld [vmem:[#allocation9 + $0x168] sm:$0xff]
        %v1281 = vld [vmem:[#allocation9 + $0x170] sm:$0xff]
        %v1282 = vld [vmem:[#allocation9 + $0x178] sm:$0xff]
        %v1283 = vld [vmem:[#allocation9 + $0x180] sm:$0xff]
        %v1284 = vld [vmem:[#allocation9 + $0x188] sm:$0xff]
        %v1285 = vld [vmem:[#allocation9 + $0x190] sm:$0xff]
        %v1286 = vld [vmem:[#allocation9 + $0x198] sm:$0xff]
        %v1287 = vld [vmem:[#allocation9 + $0x1a0] sm:$0xff]
        %v1288 = vld [vmem:[#allocation9 + $0x1a8] sm:$0xff]
        %v1289 = vld [vmem:[#allocation9 + $0x1b0] sm:$0xff]
        %v1290 = vld [vmem:[#allocation9 + $0x1b8] sm:$0xff]
        %v1291 = vld [vmem:[#allocation9 + $0x1c0] sm:$0xff]
        %v1292 = vld [vmem:[#allocation9 + $0x1c8] sm:$0xff]
        %v1293 = vld [vmem:[#allocation9 + $0x1d0] sm:$0xff]
        %v1294 = vld [vmem:[#allocation9 + $0x1d8] sm:$0xff]
        %v1295 = vld [vmem:[#allocation9 + $0x1e0] sm:$0xff]
        %v1296 = vld [vmem:[#allocation9 + $0x1e8] sm:$0xff]
        %v1297 = vld [vmem:[#allocation9 + $0x1f0] sm:$0xff]
        %v1298 = vld [vmem:[#allocation9 + $0x1f8] sm:$0xff]
        %v1299 = vld [vmem:[#allocation9 + $0x200] sm:$0xff]
        %v1300 = vld [vmem:[#allocation9 + $0x208] sm:$0xff]
        %v1301 = vld [vmem:[#allocation9 + $0x210] sm:$0xff]
        %v1302 = vld [vmem:[#allocation9 + $0x218] sm:$0xff]
        %v1303 = vld [vmem:[#allocation9 + $0x220] sm:$0xff]
        %v1304 = vld [vmem:[#allocation9 + $0x228] sm:$0xff]
        %v1305 = vld [vmem:[#allocation9 + $0x230] sm:$0xff]
        %v1306 = vld [vmem:[#allocation9 + $0x238] sm:$0xff]
        %v1307 = vld [vmem:[#allocation9 + $0x240] sm:$0xff]
        %v1308 = vld [vmem:[#allocation9 + $0x248] sm:$0xff]
        %v1309 = vld [vmem:[#allocation9 + $0x250] sm:$0xff]
        %v1310 = vld [vmem:[#allocation9 + $0x258] sm:$0xff]
        %v1311 = vld [vmem:[#allocation9 + $0x260] sm:$0xff]
        %v1312 = vld [vmem:[#allocation9 + $0x268] sm:$0xff]
        %v1313 = vld [vmem:[#allocation9 + $0x270] sm:$0xff]
        %v1314 = vld [vmem:[#allocation9 + $0x278] sm:$0xff]
        %v1315 = vld [vmem:[#allocation9 + $0x280] sm:$0xff]
        %v1316 = vld [vmem:[#allocation9 + $0x288] sm:$0xff]
        %v1317 = vld [vmem:[#allocation9 + $0x290] sm:$0xff]
        %v1318 = vld [vmem:[#allocation9 + $0x298] sm:$0xff]
        %v1319 = vld [vmem:[#allocation9 + $0x2a0] sm:$0xff]
        %v1320 = vld [vmem:[#allocation9 + $0x2a8] sm:$0xff]
        %v1321 = vld [vmem:[#allocation9 + $0x2b0] sm:$0xff]
        %v1322 = vld [vmem:[#allocation9 + $0x2b8] sm:$0xff]
        %v1323 = vld [vmem:[#allocation9 + $0x2c0] sm:$0xff]
        %v1324 = vld [vmem:[#allocation9 + $0x2c8] sm:$0xff]
        %v1325 = vld [vmem:[#allocation9 + $0x2d0] sm:$0xff]
        %v1326 = vld [vmem:[#allocation9 + $0x2d8] sm:$0xff]
        %v1327 = vld [vmem:[#allocation9 + $0x2e0] sm:$0xff]
        %v1328 = vld [vmem:[#allocation9 + $0x2e8] sm:$0xff]
        %v1329 = vld [vmem:[#allocation9 + $0x2f0] sm:$0xff]
        %v1330 = vld [vmem:[#allocation9 + $0x2f8] sm:$0xff]
        %v1331 = vld [vmem:[#allocation9 + $0x300] sm:$0xff]
        %v1332 = vld [vmem:[#allocation9 + $0x308] sm:$0xff]
        %v1333 = vld [vmem:[#allocation9 + $0x310] sm:$0xff]
        %v1334 = vld [vmem:[#allocation9 + $0x318] sm:$0xff]
        %v1335 = vld [vmem:[#allocation9 + $0x320] sm:$0xff]
        %v1336 = vld [vmem:[#allocation9 + $0x328] sm:$0xff]
        %v1337 = vld [vmem:[#allocation9 + $0x330] sm:$0xff]
        %v1338 = vld [vmem:[#allocation9 + $0x338] sm:$0xff]
        %v1339 = vld [vmem:[#allocation9 + $0x340] sm:$0xff]
        %v1340 = vld [vmem:[#allocation9 + $0x348] sm:$0xff]
        %v1341 = vld [vmem:[#allocation9 + $0x350] sm:$0xff]
        %v1342 = vld [vmem:[#allocation9 + $0x358] sm:$0xff]
        %v1343 = vld [vmem:[#allocation9 + $0x360] sm:$0xff]
        %v1344 = vld [vmem:[#allocation9 + $0x368] sm:$0xff]
        %v1345 = vld [vmem:[#allocation9 + $0x370] sm:$0xff]
        %v1346 = vld [vmem:[#allocation9 + $0x378] sm:$0xff]
        %v1347 = vld [vmem:[#allocation9 + $0x380] sm:$0xff]
        %v1348 = vld [vmem:[#allocation9 + $0x388] sm:$0xff]
        %v1349 = vld [vmem:[#allocation9 + $0x390] sm:$0xff]
        %v1350 = vld [vmem:[#allocation9 + $0x398] sm:$0xff]
        %v1351 = vld [vmem:[#allocation9 + $0x3a0] sm:$0xff]
        %v1352 = vld [vmem:[#allocation9 + $0x3a8] sm:$0xff]
        %v1353 = vld [vmem:[#allocation9 + $0x3b0] sm:$0xff]
        %v1354 = vld [vmem:[#allocation9 + $0x3b8] sm:$0xff]
        %v1355 = vld [vmem:[#allocation9 + $0x3c0] sm:$0xff]
        %v1356 = vld [vmem:[#allocation9 + $0x3c8] sm:$0xff]
        %v1357 = vld [vmem:[#allocation9 + $0x3d0] sm:$0xff]
        %v1358 = vld [vmem:[#allocation9 + $0x3d8] sm:$0xff]
        %v1359 = vld [vmem:[#allocation9 + $0x3e0] sm:$0xff]
        %v1360 = vld [vmem:[#allocation9 + $0x3e8] sm:$0xff]
        %v1361 = vld [vmem:[#allocation9 + $0x3f0] sm:$0xff]
        %v1362 = vld [vmem:[#allocation9 + $0x3f8] sm:$0xff]
        %v1363 = vld [vmem:[#allocation9 + $0x400] sm:$0xff]
        %v1364 = vld [vmem:[#allocation9 + $0x408] sm:$0xff]
        %v1365 = vld [vmem:[#allocation9 + $0x410] sm:$0xff]
        %v1366 = vld [vmem:[#allocation9 + $0x418] sm:$0xff]
        %v1367 = vld [vmem:[#allocation9 + $0x420] sm:$0xff]
        %v1368 = vld [vmem:[#allocation9 + $0x428] sm:$0xff]
        %v1369 = vld [vmem:[#allocation9 + $0x430] sm:$0xff]
        %v1370 = vld [vmem:[#allocation9 + $0x438] sm:$0xff]
        %v1371 = vld [vmem:[#allocation9 + $0x440] sm:$0xff]
        %v1372 = vld [vmem:[#allocation9 + $0x448] sm:$0xff]
        %v1373 = vld [vmem:[#allocation9 + $0x450] sm:$0xff]
        %v1374 = vld [vmem:[#allocation9 + $0x458] sm:$0xff]
        %v1375 = vld [vmem:[#allocation9 + $0x460] sm:$0xff]
        %v1376 = vld [vmem:[#allocation9 + $0x468] sm:$0xff]
        %v1377 = vld [vmem:[#allocation9 + $0x470] sm:$0xff]
        %v1378 = vld [vmem:[#allocation9 + $0x478] sm:$0xff]
        %v1379 = vld [vmem:[%s4] sm:$0x1]
        %v1381 = vlaneseq
        %v1382 = vshrl.u32 %v1381, 7
        %v1383 = vsub.s32 0, %v1382
        %v1384 = vrot.slane %v1379, %v1383
        %1386 = vmatprep.subr.mxu0 0.0
        %1387 = vmatpush1.msra.mxu0 %v1235
        %1388 = vmatprep.subr.mxu0 0.0
        %1389 = vmatpush1.msra.mxu0 %v1236
        %1390 = vmatprep.subr.mxu0 0.0
        %1391 = vmatpush1.msra.mxu0 %v1237
        %1392 = vmatprep.subr.mxu0 0.0
        %1393 = vmatpush1.msra.mxu0 %v1238
        %1394 = vmatprep.subr.mxu0 0.0
        %1395 = vmatpush1.msra.mxu0 %v1239
        %1396 = vmatprep.subr.mxu0 0.0
        %1397 = vmatpush1.msra.mxu0 %v1240
        %1398 = vmatprep.subr.mxu0 0.0
        %1399 = vmatpush1.msra.mxu0 %v1241
        %1400 = vmatprep.subr.mxu0 0.0
        %1401 = vmatpush1.msra.mxu0 %v1242
        %1402 = vmatprep.subr.mxu0 0.0
        %1403 = vmatpush1.msra.mxu0 %v1243
        %1404 = vmatprep.subr.mxu0 0.0
        %1405 = vmatpush1.msra.mxu0 %v1244
        %1406 = vmatprep.subr.mxu0 0.0
        %1407 = vmatpush1.msra.mxu0 %v1245
        %1408 = vmatprep.subr.mxu0 0.0
        %1409 = vmatpush1.msra.mxu0 %v1246
        %1410 = vmatprep.subr.mxu0 0.0
        %1411 = vmatpush1.msra.mxu0 %v1247
        %1412 = vmatprep.subr.mxu0 0.0
        %1413 = vmatpush1.msra.mxu0 %v1248
        %1414 = vmatprep.subr.mxu0 0.0
        %1415 = vmatpush1.msra.mxu0 %v1249
        %1416 = vmatprep.subr.mxu0 0.0
        %1417 = vmatpush1.msra.mxu0 %v1250
        %1418 = vmatprep.subr.mxu0 0.0
        %1419 = vmatpush1.msra.mxu0 %v1251
        %1420 = vmatprep.subr.mxu0 0.0
        %1421 = vmatpush1.msra.mxu0 %v1252
        %1422 = vmatprep.subr.mxu0 0.0
        %1423 = vmatpush1.msra.mxu0 %v1253
        %1424 = vmatprep.subr.mxu0 0.0
        %1425 = vmatpush1.msra.mxu0 %v1254
        %1426 = vmatprep.subr.mxu0 0.0
        %1427 = vmatpush1.msra.mxu0 %v1255
        %1428 = vmatprep.subr.mxu0 0.0
        %1429 = vmatpush1.msra.mxu0 %v1256
        %1430 = vmatprep.subr.mxu0 0.0
        %1431 = vmatpush1.msra.mxu0 %v1257
        %1432 = vmatprep.subr.mxu0 0.0
        %1433 = vmatpush1.msra.mxu0 %v1258
        %1434 = vmatprep.subr.mxu0 0.0
        %1435 = vmatpush1.msra.mxu0 %v1259
        %1436 = vmatprep.subr.mxu0 0.0
        %1437 = vmatpush1.msra.mxu0 %v1260
        %1438 = vmatprep.subr.mxu0 0.0
        %1439 = vmatpush1.msra.mxu0 %v1261
        %1440 = vmatprep.subr.mxu0 0.0
        %1441 = vmatpush1.msra.mxu0 %v1262
        %1442 = vmatprep.subr.mxu0 0.0
        %1443 = vmatpush1.msra.mxu0 %v1263
        %1444 = vmatprep.subr.mxu0 0.0
        %1445 = vmatpush1.msra.mxu0 %v1264
        %1446 = vmatprep.subr.mxu0 0.0
        %1447 = vmatpush1.msra.mxu0 %v1265
        %1448 = vmatprep.subr.mxu0 0.0
        %1449 = vmatpush1.msra.mxu0 %v1266
        %1450 = vmatprep.mubr.f32.mxu0 %v946
        %1451 = vmatmul.mubr.f32.gmra.mrb[0].mxu0 %v945
        %v1452 = vpop.f32.mrb[0].mxu0
        %v1453 = vadd.f32 %v1384, %v1452
        %v1454 = vpop.f32.mrb[0].mxu0
        %1455 = vmatprep.mubr.f32.mxu0 %v949
        %1456 = vmatmul.mubr.f32.gmra.mrb[0].mxu0 %v948
        %v1457 = vpop.f32.mrb[0].mxu0
        %v1458 = vadd.f32 %v1384, %v1457
        %v1459 = vpop.f32.mrb[0].mxu0
        %1460 = vmatprep.mubr.f32.mxu0 %v952
        %1461 = vmatmul.mubr.f32.gmra.mrb[0].mxu0 %v951
        %v1462 = vpop.f32.mrb[0].mxu0
        %v1463 = vadd.f32 %v1384, %v1462
        %v1464 = vpop.f32.mrb[0].mxu0
        %1465 = vmatprep.mubr.f32.mxu0 %v955
        %1466 = vmatmul.mubr.f32.gmra.mrb[0].mxu0 %v954
        %v1467 = vpop.f32.mrb[0].mxu0
        %v1468 = vadd.f32 %v1384, %v1467
        %v1469 = vpop.f32.mrb[0].mxu0
        %1470 = vmatprep.mubr.f32.mxu0 %v958
        %1471 = vmatmul.mubr.f32.gmra.mrb[0].mxu0 %v957
        %v1472 = vpop.f32.mrb[0].mxu0
        %v1473 = vadd.f32 %v1384, %v1472
        %v1474 = vpop.f32.mrb[0].mxu0
        %1475 = vmatprep.mubr.f32.mxu0 %v961
        %1476 = vmatmul.mubr.f32.gmra.mrb[0].mxu0 %v960
        %v1477 = vpop.f32.mrb[0].mxu0
        %v1478 = vadd.f32 %v1384, %v1477
        %v1479 = vpop.f32.mrb[0].mxu0
        %1480 = vmatprep.mubr.f32.mxu0 %v964
        %1481 = vmatmul.mubr.f32.gmra.mrb[0].mxu0 %v963
        %v1482 = vpop.f32.mrb[0].mxu0
        %v1483 = vadd.f32 %v1384, %v1482
        %v1484 = vpop.f32.mrb[0].mxu0
        %1485 = vmatprep.mubr.f32.mxu0 %v967
        %1486 = vmatmul.mubr.f32.gmra.mrb[0].mxu0 %v966
        %v1487 = vpop.f32.mrb[0].mxu0
        %v1488 = vadd.f32 %v1384, %v1487
        %v1489 = vpop.f32.mrb[0].mxu0
        %1490 = vmatprep.mubr.f32.mxu0 %v970
        %1491 = vmatmul.mubr.f32.gmra.mrb[0].mxu0 %v969
        %v1492 = vpop.f32.mrb[0].mxu0
        %v1493 = vadd.f32 %v1384, %v1492
        %v1494 = vpop.f32.mrb[0].mxu0
        %1495 = vmatprep.mubr.f32.mxu0 %v973
        %1496 = vmatmul.mubr.f32.gmra.mrb[0].mxu0 %v972
        %v1497 = vpop.f32.mrb[0].mxu0
        %v1498 = vadd.f32 %v1384, %v1497
        %v1499 = vpop.f32.mrb[0].mxu0
        %1500 = vmatprep.mubr.f32.mxu0 %v976
        %1501 = vmatmul.mubr.f32.gmra.mrb[0].mxu0 %v975
        %v1502 = vpop.f32.mrb[0].mxu0
        %v1503 = vadd.f32 %v1384, %v1502
        %v1504 = vpop.f32.mrb[0].mxu0
        %1505 = vmatprep.mubr.f32.mxu0 %v979
        %1506 = vmatmul.mubr.f32.gmra.mrb[0].mxu0 %v978
        %v1507 = vpop.f32.mrb[0].mxu0
        %v1508 = vadd.f32 %v1384, %v1507
        %v1509 = vpop.f32.mrb[0].mxu0
        %1510 = vmatprep.mubr.f32.mxu0 %v982
        %1511 = vmatmul.mubr.f32.gmra.mrb[0].mxu0 %v981
        %v1512 = vpop.f32.mrb[0].mxu0
        %v1513 = vadd.f32 %v1384, %v1512
        %v1514 = vpop.f32.mrb[0].mxu0
        %1515 = vmatprep.mubr.f32.mxu0 %v985
        %1516 = vmatmul.mubr.f32.gmra.mrb[0].mxu0 %v984
        %v1517 = vpop.f32.mrb[0].mxu0
        %v1518 = vadd.f32 %v1384, %v1517
        %v1519 = vpop.f32.mrb[0].mxu0
        %1520 = vmatprep.mubr.f32.mxu0 %v988
        %1521 = vmatmul.mubr.f32.gmra.mrb[0].mxu0 %v987
        %v1522 = vpop.f32.mrb[0].mxu0
        %v1523 = vadd.f32 %v1384, %v1522
        %v1524 = vpop.f32.mrb[0].mxu0
        %1525 = vmatprep.mubr.f32.mxu0 %v991
        %1526 = vmatmul.mubr.f32.gmra.mrb[0].mxu0 %v990
        %v1527 = vpop.f32.mrb[0].mxu0
        %v1528 = vadd.f32 %v1384, %v1527
        %v1529 = vpop.f32.mrb[0].mxu0
        %1530 = vmatprep.mubr.f32.mxu0 %v994
        %1531 = vmatmul.mubr.f32.gmra.mrb[0].mxu0 %v993
        %v1532 = vpop.f32.mrb[0].mxu0
        %v1533 = vadd.f32 %v1384, %v1532
        %v1534 = vpop.f32.mrb[0].mxu0
        %1535 = vmatprep.mubr.f32.mxu0 %v997
        %1536 = vmatmul.mubr.f32.gmra.mrb[0].mxu0 %v996
        %v1537 = vpop.f32.mrb[0].mxu0
        %v1538 = vadd.f32 %v1384, %v1537
        %v1539 = vpop.f32.mrb[0].mxu0
        %1540 = vmatprep.mubr.f32.mxu0 %v1000
        %1541 = vmatmul.mubr.f32.gmra.mrb[0].mxu0 %v999
        %v1542 = vpop.f32.mrb[0].mxu0
        %v1543 = vadd.f32 %v1384, %v1542
        %v1544 = vpop.f32.mrb[0].mxu0
        %1545 = vmatprep.mubr.f32.mxu0 %v1003
        %1546 = vmatmul.mubr.f32.gmra.mrb[0].mxu0 %v1002
        %v1547 = vpop.f32.mrb[0].mxu0
        %v1548 = vadd.f32 %v1384, %v1547
        %v1549 = vpop.f32.mrb[0].mxu0
        %1550 = vmatprep.mubr.f32.mxu0 %v1006
        %1551 = vmatmul.mubr.f32.gmra.mrb[0].mxu0 %v1005
        %v1552 = vpop.f32.mrb[0].mxu0
        %v1553 = vadd.f32 %v1384, %v1552
        %v1554 = vpop.f32.mrb[0].mxu0
        %1555 = vmatprep.mubr.f32.mxu0 %v1009
        %1556 = vmatmul.mubr.f32.gmra.mrb[0].mxu0 %v1008
        %v1557 = vpop.f32.mrb[0].mxu0
        %v1558 = vadd.f32 %v1384, %v1557
        %v1559 = vpop.f32.mrb[0].mxu0
        %1560 = vmatprep.mubr.f32.mxu0 %v1012
        %1561 = vmatmul.mubr.f32.gmra.mrb[0].mxu0 %v1011
        %v1562 = vpop.f32.mrb[0].mxu0
        %v1563 = vadd.f32 %v1384, %v1562
        %v1564 = vpop.f32.mrb[0].mxu0
        %1565 = vmatprep.mubr.f32.mxu0 %v1015
        %1566 = vmatmul.mubr.f32.gmra.mrb[0].mxu0 %v1014
        %v1567 = vpop.f32.mrb[0].mxu0
        %v1568 = vadd.f32 %v1384, %v1567
        %v1569 = vpop.f32.mrb[0].mxu0
        %1570 = vmatprep.mubr.f32.mxu0 %v1018
        %1571 = vmatmul.mubr.f32.gmra.mrb[0].mxu0 %v1017
        %v1572 = vpop.f32.mrb[0].mxu0
        %v1573 = vadd.f32 %v1384, %v1572
        %v1574 = vpop.f32.mrb[0].mxu0
        %1575 = vmatprep.mubr.f32.mxu0 %v1021
        %1576 = vmatmul.mubr.f32.gmra.mrb[0].mxu0 %v1020
        %v1577 = vpop.f32.mrb[0].mxu0
        %v1578 = vadd.f32 %v1384, %v1577
        %v1579 = vpop.f32.mrb[0].mxu0
        %1580 = vmatprep.mubr.f32.mxu0 %v1024
        %1581 = vmatmul.mubr.f32.gmra.mrb[0].mxu0 %v1023
        %v1582 = vpop.f32.mrb[0].mxu0
        %v1583 = vadd.f32 %v1384, %v1582
        %v1584 = vpop.f32.mrb[0].mxu0
        %1585 = vmatprep.mubr.f32.mxu0 %v1027
        %1586 = vmatmul.mubr.f32.gmra.mrb[0].mxu0 %v1026
        %v1587 = vpop.f32.mrb[0].mxu0
        %v1588 = vadd.f32 %v1384, %v1587
        %v1589 = vpop.f32.mrb[0].mxu0
        %1590 = vmatprep.mubr.f32.mxu0 %v1030
        %1591 = vmatmul.mubr.f32.gmra.mrb[0].mxu0 %v1029
        %v1592 = vpop.f32.mrb[0].mxu0
        %v1593 = vadd.f32 %v1384, %v1592
        %v1594 = vpop.f32.mrb[0].mxu0
        %1595 = vmatprep.mubr.f32.mxu0 %v1033
        %1596 = vmatmul.mubr.f32.gmra.mrb[0].mxu0 %v1032
        %v1597 = vpop.f32.mrb[0].mxu0
        %v1598 = vadd.f32 %v1384, %v1597
        %v1599 = vpop.f32.mrb[0].mxu0
        %1600 = vmatprep.mubr.f32.mxu0 %v1036
        %1601 = vmatmul.mubr.f32.gmra.mrb[0].mxu0 %v1035
        %v1602 = vpop.f32.mrb[0].mxu0
        %v1603 = vadd.f32 %v1384, %v1602
        %v1604 = vpop.f32.mrb[0].mxu0
        %1605 = vmatprep.mubr.f32.mxu0 %v1039
        %1606 = vmatmul.mubr.f32.gmra.mrb[0].mxu0 %v1038
        %v1607 = vpop.f32.mrb[0].mxu0
        %v1608 = vadd.f32 %v1384, %v1607
        %v1609 = vpop.f32.mrb[0].mxu0
        %1610 = vdwg.mxu0
        %1611 = vmatprep.subr.mxu0 0.0
        %1612 = vmatpush1.msra.mxu0 %v1267
        %1613 = vmatprep.subr.mxu0 0.0
        %1614 = vmatpush1.msra.mxu0 %v1268
        %1615 = vmatprep.subr.mxu0 0.0
        %1616 = vmatpush1.msra.mxu0 %v1269
        %1617 = vmatprep.subr.mxu0 0.0
        %1618 = vmatpush1.msra.mxu0 %v1270
        %1619 = vmatprep.subr.mxu0 0.0
        %1620 = vmatpush1.msra.mxu0 %v1271
        %1621 = vmatprep.subr.mxu0 0.0
        %1622 = vmatpush1.msra.mxu0 %v1272
        %1623 = vmatprep.subr.mxu0 0.0
        %1624 = vmatpush1.msra.mxu0 %v1273
        %1625 = vmatprep.subr.mxu0 0.0
        %1626 = vmatpush1.msra.mxu0 %v1274
        %1627 = vmatprep.subr.mxu0 0.0
        %1628 = vmatpush1.msra.mxu0 %v1275
        %1629 = vmatprep.subr.mxu0 0.0
        %1630 = vmatpush1.msra.mxu0 %v1276
        %1631 = vmatprep.subr.mxu0 0.0
        %1632 = vmatpush1.msra.mxu0 %v1277
        %1633 = vmatprep.subr.mxu0 0.0
        %1634 = vmatpush1.msra.mxu0 %v1278
        %1635 = vmatprep.subr.mxu0 0.0
        %1636 = vmatpush1.msra.mxu0 %v1279
        %1637 = vmatprep.subr.mxu0 0.0
        %1638 = vmatpush1.msra.mxu0 %v1280
        %1639 = vmatprep.subr.mxu0 0.0
        %1640 = vmatpush1.msra.mxu0 %v1281
        %1641 = vmatprep.subr.mxu0 0.0
        %1642 = vmatpush1.msra.mxu0 %v1282
        %1643 = vmatprep.subr.mxu0 0.0
        %1644 = vmatpush1.msra.mxu0 %v1283
        %1645 = vmatprep.subr.mxu0 0.0
        %1646 = vmatpush1.msra.mxu0 %v1284
        %1647 = vmatprep.subr.mxu0 0.0
        %1648 = vmatpush1.msra.mxu0 %v1285
        %1649 = vmatprep.subr.mxu0 0.0
        %1650 = vmatpush1.msra.mxu0 %v1286
        %1651 = vmatprep.subr.mxu0 0.0
        %1652 = vmatpush1.msra.mxu0 %v1287
        %1653 = vmatprep.subr.mxu0 0.0
        %1654 = vmatpush1.msra.mxu0 %v1288
        %1655 = vmatprep.subr.mxu0 0.0
        %1656 = vmatpush1.msra.mxu0 %v1289
        %1657 = vmatprep.subr.mxu0 0.0
        %1658 = vmatpush1.msra.mxu0 %v1290
        %1659 = vmatprep.subr.mxu0 0.0
        %1660 = vmatpush1.msra.mxu0 %v1291
        %1661 = vmatprep.subr.mxu0 0.0
        %1662 = vmatpush1.msra.mxu0 %v1292
        %1663 = vmatprep.subr.mxu0 0.0
        %1664 = vmatpush1.msra.mxu0 %v1293
        %1665 = vmatprep.subr.mxu0 0.0
        %1666 = vmatpush1.msra.mxu0 %v1294
        %1667 = vmatprep.subr.mxu0 0.0
        %1668 = vmatpush1.msra.mxu0 %v1295
        %1669 = vmatprep.subr.mxu0 0.0
        %1670 = vmatpush1.msra.mxu0 %v1296
        %1671 = vmatprep.subr.mxu0 0.0
        %1672 = vmatpush1.msra.mxu0 %v1297
        %1673 = vmatprep.subr.mxu0 0.0
        %1674 = vmatpush1.msra.mxu0 %v1298
        %1675 = vmatprep.mubr.f32.mxu0 %v1042
        %1676 = vmatmul.mubr.f32.gmra.mrb[0].mxu0 %v947
        %v1677 = vpop.f32.mrb[0].mxu0
        %v1678 = vadd.f32 %v1453, %v1677
        %v1679 = vpop.f32.mrb[0].mxu0
        %1680 = vmatprep.mubr.f32.mxu0 %v1045
        %1681 = vmatmul.mubr.f32.gmra.mrb[0].mxu0 %v950
        %v1682 = vpop.f32.mrb[0].mxu0
        %v1683 = vadd.f32 %v1458, %v1682
        %v1684 = vpop.f32.mrb[0].mxu0
        %1685 = vmatprep.mubr.f32.mxu0 %v1048
        %1686 = vmatmul.mubr.f32.gmra.mrb[0].mxu0 %v953
        %v1687 = vpop.f32.mrb[0].mxu0
        %v1688 = vadd.f32 %v1463, %v1687
        %v1689 = vpop.f32.mrb[0].mxu0
        %1690 = vmatprep.mubr.f32.mxu0 %v1051
        %1691 = vmatmul.mubr.f32.gmra.mrb[0].mxu0 %v956
        %v1692 = vpop.f32.mrb[0].mxu0
        %v1693 = vadd.f32 %v1468, %v1692
        %v1694 = vpop.f32.mrb[0].mxu0
        %1695 = vmatprep.mubr.f32.mxu0 %v1054
        %1696 = vmatmul.mubr.f32.gmra.mrb[0].mxu0 %v959
        %v1697 = vpop.f32.mrb[0].mxu0
        %v1698 = vadd.f32 %v1473, %v1697
        %v1699 = vpop.f32.mrb[0].mxu0
        %1700 = vmatprep.mubr.f32.mxu0 %v1057
        %1701 = vmatmul.mubr.f32.gmra.mrb[0].mxu0 %v962
        %v1702 = vpop.f32.mrb[0].mxu0
        %v1703 = vadd.f32 %v1478, %v1702
        %v1704 = vpop.f32.mrb[0].mxu0
        %1705 = vmatprep.mubr.f32.mxu0 %v1060
        %1706 = vmatmul.mubr.f32.gmra.mrb[0].mxu0 %v965
        %v1707 = vpop.f32.mrb[0].mxu0
        %v1708 = vadd.f32 %v1483, %v1707
        %v1709 = vpop.f32.mrb[0].mxu0
        %1710 = vmatprep.mubr.f32.mxu0 %v1063
        %1711 = vmatmul.mubr.f32.gmra.mrb[0].mxu0 %v968
        %v1712 = vpop.f32.mrb[0].mxu0
        %v1713 = vadd.f32 %v1488, %v1712
        %v1714 = vpop.f32.mrb[0].mxu0
        %1715 = vmatprep.mubr.f32.mxu0 %v1066
        %1716 = vmatmul.mubr.f32.gmra.mrb[0].mxu0 %v971
        %v1717 = vpop.f32.mrb[0].mxu0
        %v1718 = vadd.f32 %v1493, %v1717
        %v1719 = vpop.f32.mrb[0].mxu0
        %1720 = vmatprep.mubr.f32.mxu0 %v1069
        %1721 = vmatmul.mubr.f32.gmra.mrb[0].mxu0 %v974
        %v1722 = vpop.f32.mrb[0].mxu0
        %v1723 = vadd.f32 %v1498, %v1722
        %v1724 = vpop.f32.mrb[0].mxu0
        %1725 = vmatprep.mubr.f32.mxu0 %v1072
        %1726 = vmatmul.mubr.f32.gmra.mrb[0].mxu0 %v977
        %v1727 = vpop.f32.mrb[0].mxu0
        %v1728 = vadd.f32 %v1503, %v1727
        %v1729 = vpop.f32.mrb[0].mxu0
        %1730 = vmatprep.mubr.f32.mxu0 %v1075
        %1731 = vmatmul.mubr.f32.gmra.mrb[0].mxu0 %v980
        %v1732 = vpop.f32.mrb[0].mxu0
        %v1733 = vadd.f32 %v1508, %v1732
        %v1734 = vpop.f32.mrb[0].mxu0
        %1735 = vmatprep.mubr.f32.mxu0 %v1078
        %1736 = vmatmul.mubr.f32.gmra.mrb[0].mxu0 %v983
        %v1737 = vpop.f32.mrb[0].mxu0
        %v1738 = vadd.f32 %v1513, %v1737
        %v1739 = vpop.f32.mrb[0].mxu0
        %1740 = vmatprep.mubr.f32.mxu0 %v1081
        %1741 = vmatmul.mubr.f32.gmra.mrb[0].mxu0 %v986
        %v1742 = vpop.f32.mrb[0].mxu0
        %v1743 = vadd.f32 %v1518, %v1742
        %v1744 = vpop.f32.mrb[0].mxu0
        %1745 = vmatprep.mubr.f32.mxu0 %v1084
        %1746 = vmatmul.mubr.f32.gmra.mrb[0].mxu0 %v989
        %v1747 = vpop.f32.mrb[0].mxu0
        %v1748 = vadd.f32 %v1523, %v1747
        %v1749 = vpop.f32.mrb[0].mxu0
        %1750 = vmatprep.mubr.f32.mxu0 %v1087
        %1751 = vmatmul.mubr.f32.gmra.mrb[0].mxu0 %v992
        %v1752 = vpop.f32.mrb[0].mxu0
        %v1753 = vadd.f32 %v1528, %v1752
        %v1754 = vpop.f32.mrb[0].mxu0
        %1755 = vmatprep.mubr.f32.mxu0 %v1090
        %1756 = vmatmul.mubr.f32.gmra.mrb[0].mxu0 %v995
        %v1757 = vpop.f32.mrb[0].mxu0
        %v1758 = vadd.f32 %v1533, %v1757
        %v1759 = vpop.f32.mrb[0].mxu0
        %1760 = vmatprep.mubr.f32.mxu0 %v1093
        %1761 = vmatmul.mubr.f32.gmra.mrb[0].mxu0 %v998
        %v1762 = vpop.f32.mrb[0].mxu0
        %v1763 = vadd.f32 %v1538, %v1762
        %v1764 = vpop.f32.mrb[0].mxu0
        %1765 = vmatprep.mubr.f32.mxu0 %v1096
        %1766 = vmatmul.mubr.f32.gmra.mrb[0].mxu0 %v1001
        %v1767 = vpop.f32.mrb[0].mxu0
        %v1768 = vadd.f32 %v1543, %v1767
        %v1769 = vpop.f32.mrb[0].mxu0
        %1770 = vmatprep.mubr.f32.mxu0 %v1099
        %1771 = vmatmul.mubr.f32.gmra.mrb[0].mxu0 %v1004
        %v1772 = vpop.f32.mrb[0].mxu0
        %v1773 = vadd.f32 %v1548, %v1772
        %v1774 = vpop.f32.mrb[0].mxu0
        %1775 = vmatprep.mubr.f32.mxu0 %v1102
        %1776 = vmatmul.mubr.f32.gmra.mrb[0].mxu0 %v1007
        %v1777 = vpop.f32.mrb[0].mxu0
        %v1778 = vadd.f32 %v1553, %v1777
        %v1779 = vpop.f32.mrb[0].mxu0
        %1780 = vmatprep.mubr.f32.mxu0 %v1105
        %1781 = vmatmul.mubr.f32.gmra.mrb[0].mxu0 %v1010
        %v1782 = vpop.f32.mrb[0].mxu0
        %v1783 = vadd.f32 %v1558, %v1782
        %v1784 = vpop.f32.mrb[0].mxu0
        %1785 = vmatprep.mubr.f32.mxu0 %v1108
        %1786 = vmatmul.mubr.f32.gmra.mrb[0].mxu0 %v1013
        %v1787 = vpop.f32.mrb[0].mxu0
        %v1788 = vadd.f32 %v1563, %v1787
        %v1789 = vpop.f32.mrb[0].mxu0
        %1790 = vmatprep.mubr.f32.mxu0 %v1111
        %1791 = vmatmul.mubr.f32.gmra.mrb[0].mxu0 %v1016
        %v1792 = vpop.f32.mrb[0].mxu0
        %v1793 = vadd.f32 %v1568, %v1792
        %v1794 = vpop.f32.mrb[0].mxu0
        %1795 = vmatprep.mubr.f32.mxu0 %v1114
        %1796 = vmatmul.mubr.f32.gmra.mrb[0].mxu0 %v1019
        %v1797 = vpop.f32.mrb[0].mxu0
        %v1798 = vadd.f32 %v1573, %v1797
        %v1799 = vpop.f32.mrb[0].mxu0
        %1800 = vmatprep.mubr.f32.mxu0 %v1117
        %1801 = vmatmul.mubr.f32.gmra.mrb[0].mxu0 %v1022
        %v1802 = vpop.f32.mrb[0].mxu0
        %v1803 = vadd.f32 %v1578, %v1802
        %v1804 = vpop.f32.mrb[0].mxu0
        %1805 = vmatprep.mubr.f32.mxu0 %v1120
        %1806 = vmatmul.mubr.f32.gmra.mrb[0].mxu0 %v1025
        %v1807 = vpop.f32.mrb[0].mxu0
        %v1808 = vadd.f32 %v1583, %v1807
        %v1809 = vpop.f32.mrb[0].mxu0
        %1810 = vmatprep.mubr.f32.mxu0 %v1123
        %1811 = vmatmul.mubr.f32.gmra.mrb[0].mxu0 %v1028
        %v1812 = vpop.f32.mrb[0].mxu0
        %v1813 = vadd.f32 %v1588, %v1812
        %v1814 = vpop.f32.mrb[0].mxu0
        %1815 = vmatprep.mubr.f32.mxu0 %v1126
        %1816 = vmatmul.mubr.f32.gmra.mrb[0].mxu0 %v1031
        %v1817 = vpop.f32.mrb[0].mxu0
        %v1818 = vadd.f32 %v1593, %v1817
        %v1819 = vpop.f32.mrb[0].mxu0
        %1820 = vmatprep.mubr.f32.mxu0 %v1129
        %1821 = vmatmul.mubr.f32.gmra.mrb[0].mxu0 %v1034
        %v1822 = vpop.f32.mrb[0].mxu0
        %v1823 = vadd.f32 %v1598, %v1822
        %v1824 = vpop.f32.mrb[0].mxu0
        %1825 = vmatprep.mubr.f32.mxu0 %v1132
        %1826 = vmatmul.mubr.f32.gmra.mrb[0].mxu0 %v1037
        %v1827 = vpop.f32.mrb[0].mxu0
        %v1828 = vadd.f32 %v1603, %v1827
        %v1829 = vpop.f32.mrb[0].mxu0
        %1830 = vmatprep.mubr.f32.mxu0 %v1135
        %1831 = vmatmul.mubr.f32.gmra.mrb[0].mxu0 %v1040
        %v1832 = vpop.f32.mrb[0].mxu0
        %v1833 = vadd.f32 %v1608, %v1832
        %v1834 = vpop.f32.mrb[0].mxu0
        %1835 = vdwg.mxu0
        %1836 = vmatprep.subr.mxu0 0.0
        %1837 = vmatpush1.msra.mxu0 %v1299
        %1838 = vmatprep.subr.mxu0 0.0
        %1839 = vmatpush1.msra.mxu0 %v1300
        %1840 = vmatprep.subr.mxu0 0.0
        %1841 = vmatpush1.msra.mxu0 %v1301
        %1842 = vmatprep.subr.mxu0 0.0
        %1843 = vmatpush1.msra.mxu0 %v1302
        %1844 = vmatprep.subr.mxu0 0.0
        %1845 = vmatpush1.msra.mxu0 %v1303
        %1846 = vmatprep.subr.mxu0 0.0
        %1847 = vmatpush1.msra.mxu0 %v1304
        %1848 = vmatprep.subr.mxu0 0.0
        %1849 = vmatpush1.msra.mxu0 %v1305
        %1850 = vmatprep.subr.mxu0 0.0
        %1851 = vmatpush1.msra.mxu0 %v1306
        %1852 = vmatprep.subr.mxu0 0.0
        %1853 = vmatpush1.msra.mxu0 %v1307
        %1854 = vmatprep.subr.mxu0 0.0
        %1855 = vmatpush1.msra.mxu0 %v1308
        %1856 = vmatprep.subr.mxu0 0.0
        %1857 = vmatpush1.msra.mxu0 %v1309
        %1858 = vmatprep.subr.mxu0 0.0
        %1859 = vmatpush1.msra.mxu0 %v1310
        %1860 = vmatprep.subr.mxu0 0.0
        %1861 = vmatpush1.msra.mxu0 %v1311
        %1862 = vmatprep.subr.mxu0 0.0
        %1863 = vmatpush1.msra.mxu0 %v1312
        %1864 = vmatprep.subr.mxu0 0.0
        %1865 = vmatpush1.msra.mxu0 %v1313
        %1866 = vmatprep.subr.mxu0 0.0
        %1867 = vmatpush1.msra.mxu0 %v1314
        %1868 = vmatprep.subr.mxu0 0.0
        %1869 = vmatpush1.msra.mxu0 %v1315
        %1870 = vmatprep.subr.mxu0 0.0
        %1871 = vmatpush1.msra.mxu0 %v1316
        %1872 = vmatprep.subr.mxu0 0.0
        %1873 = vmatpush1.msra.mxu0 %v1317
        %1874 = vmatprep.subr.mxu0 0.0
        %1875 = vmatpush1.msra.mxu0 %v1318
        %1876 = vmatprep.subr.mxu0 0.0
        %1877 = vmatpush1.msra.mxu0 %v1319
        %1878 = vmatprep.subr.mxu0 0.0
        %1879 = vmatpush1.msra.mxu0 %v1320
        %1880 = vmatprep.subr.mxu0 0.0
        %1881 = vmatpush1.msra.mxu0 %v1321
        %1882 = vmatprep.subr.mxu0 0.0
        %1883 = vmatpush1.msra.mxu0 %v1322
        %1884 = vmatprep.subr.mxu0 0.0
        %1885 = vmatpush1.msra.mxu0 %v1323
        %1886 = vmatprep.subr.mxu0 0.0
        %1887 = vmatpush1.msra.mxu0 %v1324
        %1888 = vmatprep.subr.mxu0 0.0
        %1889 = vmatpush1.msra.mxu0 %v1325
        %1890 = vmatprep.subr.mxu0 0.0
        %1891 = vmatpush1.msra.mxu0 %v1326
        %1892 = vmatprep.subr.mxu0 0.0
        %1893 = vmatpush1.msra.mxu0 %v1327
        %1894 = vmatprep.subr.mxu0 0.0
        %1895 = vmatpush1.msra.mxu0 %v1328
        %1896 = vmatprep.subr.mxu0 0.0
        %1897 = vmatpush1.msra.mxu0 %v1329
        %1898 = vmatprep.subr.mxu0 0.0
        %1899 = vmatpush1.msra.mxu0 %v1330
        %1900 = vmatprep.mubr.f32.mxu0 %v1044
        %1901 = vmatmul.mubr.f32.gmra.mrb[0].mxu0 %v1043
        %v1902 = vpop.f32.mrb[0].mxu0
        %v1903 = vadd.f32 %v1678, %v1902
        %v1904 = vpop.f32.mrb[0].mxu0
        %1905 = vmatprep.mubr.f32.mxu0 %v1047
        %1906 = vmatmul.mubr.f32.gmra.mrb[0].mxu0 %v1046
        %v1907 = vpop.f32.mrb[0].mxu0
        %v1908 = vadd.f32 %v1683, %v1907
        %v1909 = vpop.f32.mrb[0].mxu0
        %1910 = vmatprep.mubr.f32.mxu0 %v1050
        %1911 = vmatmul.mubr.f32.gmra.mrb[0].mxu0 %v1049
        %v1912 = vpop.f32.mrb[0].mxu0
        %v1913 = vadd.f32 %v1688, %v1912
        %v1914 = vpop.f32.mrb[0].mxu0
        %1915 = vmatprep.mubr.f32.mxu0 %v1053
        %1916 = vmatmul.mubr.f32.gmra.mrb[0].mxu0 %v1052
        %v1917 = vpop.f32.mrb[0].mxu0
        %v1918 = vadd.f32 %v1693, %v1917
        %v1919 = vpop.f32.mrb[0].mxu0
        %1920 = vmatprep.mubr.f32.mxu0 %v1056
        %1921 = vmatmul.mubr.f32.gmra.mrb[0].mxu0 %v1055
        %v1922 = vpop.f32.mrb[0].mxu0
        %v1923 = vadd.f32 %v1698, %v1922
        %v1924 = vpop.f32.mrb[0].mxu0
        %1925 = vmatprep.mubr.f32.mxu0 %v1059
        %1926 = vmatmul.mubr.f32.gmra.mrb[0].mxu0 %v1058
        %v1927 = vpop.f32.mrb[0].mxu0
        %v1928 = vadd.f32 %v1703, %v1927
        %v1929 = vpop.f32.mrb[0].mxu0
        %1930 = vmatprep.mubr.f32.mxu0 %v1062
        %1931 = vmatmul.mubr.f32.gmra.mrb[0].mxu0 %v1061
        %v1932 = vpop.f32.mrb[0].mxu0
        %v1933 = vadd.f32 %v1708, %v1932
        %v1934 = vpop.f32.mrb[0].mxu0
        %1935 = vmatprep.mubr.f32.mxu0 %v1065
        %1936 = vmatmul.mubr.f32.gmra.mrb[0].mxu0 %v1064
        %v1937 = vpop.f32.mrb[0].mxu0
        %v1938 = vadd.f32 %v1713, %v1937
        %v1939 = vpop.f32.mrb[0].mxu0
        %1940 = vmatprep.mubr.f32.mxu0 %v1068
        %1941 = vmatmul.mubr.f32.gmra.mrb[0].mxu0 %v1067
        %v1942 = vpop.f32.mrb[0].mxu0
        %v1943 = vadd.f32 %v1718, %v1942
        %v1944 = vpop.f32.mrb[0].mxu0
        %1945 = vmatprep.mubr.f32.mxu0 %v1071
        %1946 = vmatmul.mubr.f32.gmra.mrb[0].mxu0 %v1070
        %v1947 = vpop.f32.mrb[0].mxu0
        %v1948 = vadd.f32 %v1723, %v1947
        %v1949 = vpop.f32.mrb[0].mxu0
        %1950 = vmatprep.mubr.f32.mxu0 %v1074
        %1951 = vmatmul.mubr.f32.gmra.mrb[0].mxu0 %v1073
        %v1952 = vpop.f32.mrb[0].mxu0
        %v1953 = vadd.f32 %v1728, %v1952
        %v1954 = vpop.f32.mrb[0].mxu0
        %1955 = vmatprep.mubr.f32.mxu0 %v1077
        %1956 = vmatmul.mubr.f32.gmra.mrb[0].mxu0 %v1076
        %v1957 = vpop.f32.mrb[0].mxu0
        %v1958 = vadd.f32 %v1733, %v1957
        %v1959 = vpop.f32.mrb[0].mxu0
        %1960 = vmatprep.mubr.f32.mxu0 %v1080
        %1961 = vmatmul.mubr.f32.gmra.mrb[0].mxu0 %v1079
        %v1962 = vpop.f32.mrb[0].mxu0
        %v1963 = vadd.f32 %v1738, %v1962
        %v1964 = vpop.f32.mrb[0].mxu0
        %1965 = vmatprep.mubr.f32.mxu0 %v1083
        %1966 = vmatmul.mubr.f32.gmra.mrb[0].mxu0 %v1082
        %v1967 = vpop.f32.mrb[0].mxu0
        %v1968 = vadd.f32 %v1743, %v1967
        %v1969 = vpop.f32.mrb[0].mxu0
        %1970 = vmatprep.mubr.f32.mxu0 %v1086
        %1971 = vmatmul.mubr.f32.gmra.mrb[0].mxu0 %v1085
        %v1972 = vpop.f32.mrb[0].mxu0
        %v1973 = vadd.f32 %v1748, %v1972
        %v1974 = vpop.f32.mrb[0].mxu0
        %1975 = vmatprep.mubr.f32.mxu0 %v1089
        %1976 = vmatmul.mubr.f32.gmra.mrb[0].mxu0 %v1088
        %v1977 = vpop.f32.mrb[0].mxu0
        %v1978 = vadd.f32 %v1753, %v1977
        %v1979 = vpop.f32.mrb[0].mxu0
        %1980 = vmatprep.mubr.f32.mxu0 %v1092
        %1981 = vmatmul.mubr.f32.gmra.mrb[0].mxu0 %v1091
        %v1982 = vpop.f32.mrb[0].mxu0
        %v1983 = vadd.f32 %v1758, %v1982
        %v1984 = vpop.f32.mrb[0].mxu0
        %1985 = vmatprep.mubr.f32.mxu0 %v1095
        %1986 = vmatmul.mubr.f32.gmra.mrb[0].mxu0 %v1094
        %v1987 = vpop.f32.mrb[0].mxu0
        %v1988 = vadd.f32 %v1763, %v1987
        %v1989 = vpop.f32.mrb[0].mxu0
        %1990 = vmatprep.mubr.f32.mxu0 %v1098
        %1991 = vmatmul.mubr.f32.gmra.mrb[0].mxu0 %v1097
        %v1992 = vpop.f32.mrb[0].mxu0
        %v1993 = vadd.f32 %v1768, %v1992
        %v1994 = vpop.f32.mrb[0].mxu0
        %1995 = vmatprep.mubr.f32.mxu0 %v1101
        %1996 = vmatmul.mubr.f32.gmra.mrb[0].mxu0 %v1100
        %v1997 = vpop.f32.mrb[0].mxu0
        %v1998 = vadd.f32 %v1773, %v1997
        %v1999 = vpop.f32.mrb[0].mxu0
        %2000 = vmatprep.mubr.f32.mxu0 %v1104
        %2001 = vmatmul.mubr.f32.gmra.mrb[0].mxu0 %v1103
        %v2002 = vpop.f32.mrb[0].mxu0
        %v2003 = vadd.f32 %v1778, %v2002
        %v2004 = vpop.f32.mrb[0].mxu0
        %2005 = vmatprep.mubr.f32.mxu0 %v1107
        %2006 = vmatmul.mubr.f32.gmra.mrb[0].mxu0 %v1106
        %v2007 = vpop.f32.mrb[0].mxu0
        %v2008 = vadd.f32 %v1783, %v2007
        %v2009 = vpop.f32.mrb[0].mxu0
        %2010 = vmatprep.mubr.f32.mxu0 %v1110
        %2011 = vmatmul.mubr.f32.gmra.mrb[0].mxu0 %v1109
        %v2012 = vpop.f32.mrb[0].mxu0
        %v2013 = vadd.f32 %v1788, %v2012
        %v2014 = vpop.f32.mrb[0].mxu0
        %2015 = vmatprep.mubr.f32.mxu0 %v1113
        %2016 = vmatmul.mubr.f32.gmra.mrb[0].mxu0 %v1112
        %v2017 = vpop.f32.mrb[0].mxu0
        %v2018 = vadd.f32 %v1793, %v2017
        %v2019 = vpop.f32.mrb[0].mxu0
        %2020 = vmatprep.mubr.f32.mxu0 %v1116
        %2021 = vmatmul.mubr.f32.gmra.mrb[0].mxu0 %v1115
        %v2022 = vpop.f32.mrb[0].mxu0
        %v2023 = vadd.f32 %v1798, %v2022
        %v2024 = vpop.f32.mrb[0].mxu0
        %2025 = vmatprep.mubr.f32.mxu0 %v1119
        %2026 = vmatmul.mubr.f32.gmra.mrb[0].mxu0 %v1118
        %v2027 = vpop.f32.mrb[0].mxu0
        %v2028 = vadd.f32 %v1803, %v2027
        %v2029 = vpop.f32.mrb[0].mxu0
        %2030 = vmatprep.mubr.f32.mxu0 %v1122
        %2031 = vmatmul.mubr.f32.gmra.mrb[0].mxu0 %v1121
        %v2032 = vpop.f32.mrb[0].mxu0
        %v2033 = vadd.f32 %v1808, %v2032
        %v2034 = vpop.f32.mrb[0].mxu0
        %2035 = vmatprep.mubr.f32.mxu0 %v1125
        %2036 = vmatmul.mubr.f32.gmra.mrb[0].mxu0 %v1124
        %v2037 = vpop.f32.mrb[0].mxu0
        %v2038 = vadd.f32 %v1813, %v2037
        %v2039 = vpop.f32.mrb[0].mxu0
        %2040 = vmatprep.mubr.f32.mxu0 %v1128
        %2041 = vmatmul.mubr.f32.gmra.mrb[0].mxu0 %v1127
        %v2042 = vpop.f32.mrb[0].mxu0
        %v2043 = vadd.f32 %v1818, %v2042
        %v2044 = vpop.f32.mrb[0].mxu0
        %2045 = vmatprep.mubr.f32.mxu0 %v1131
        %2046 = vmatmul.mubr.f32.gmra.mrb[0].mxu0 %v1130
        %v2047 = vpop.f32.mrb[0].mxu0
        %v2048 = vadd.f32 %v1823, %v2047
        %v2049 = vpop.f32.mrb[0].mxu0
        %2050 = vmatprep.mubr.f32.mxu0 %v1134
        %2051 = vmatmul.mubr.f32.gmra.mrb[0].mxu0 %v1133
        %v2052 = vpop.f32.mrb[0].mxu0
        %v2053 = vadd.f32 %v1828, %v2052
        %v2054 = vpop.f32.mrb[0].mxu0
        %2055 = vmatprep.mubr.f32.mxu0 %v1137
        %2056 = vmatmul.mubr.f32.gmra.mrb[0].mxu0 %v1136
        %v2057 = vpop.f32.mrb[0].mxu0
        %v2058 = vadd.f32 %v1833, %v2057
        %v2059 = vpop.f32.mrb[0].mxu0
        %2060 = vdwg.mxu0
        %2061 = vmatprep.subr.mxu0 0.0
        %2062 = vmatpush1.msra.mxu0 %v1331
        %2063 = vmatprep.subr.mxu0 0.0
        %2064 = vmatpush1.msra.mxu0 %v1332
        %2065 = vmatprep.subr.mxu0 0.0
        %2066 = vmatpush1.msra.mxu0 %v1333
        %2067 = vmatprep.subr.mxu0 0.0
        %2068 = vmatpush1.msra.mxu0 %v1334
        %2069 = vmatprep.subr.mxu0 0.0
        %2070 = vmatpush1.msra.mxu0 %v1335
        %2071 = vmatprep.subr.mxu0 0.0
        %2072 = vmatpush1.msra.mxu0 %v1336
        %2073 = vmatprep.subr.mxu0 0.0
        %2074 = vmatpush1.msra.mxu0 %v1337
        %2075 = vmatprep.subr.mxu0 0.0
        %2076 = vmatpush1.msra.mxu0 %v1338
        %2077 = vmatprep.subr.mxu0 0.0
        %2078 = vmatpush1.msra.mxu0 %v1339
        %2079 = vmatprep.subr.mxu0 0.0
        %2080 = vmatpush1.msra.mxu0 %v1340
        %2081 = vmatprep.subr.mxu0 0.0
        %2082 = vmatpush1.msra.mxu0 %v1341
        %2083 = vmatprep.subr.mxu0 0.0
        %2084 = vmatpush1.msra.mxu0 %v1342
        %2085 = vmatprep.subr.mxu0 0.0
        %2086 = vmatpush1.msra.mxu0 %v1343
        %2087 = vmatprep.subr.mxu0 0.0
        %2088 = vmatpush1.msra.mxu0 %v1344
        %2089 = vmatprep.subr.mxu0 0.0
        %2090 = vmatpush1.msra.mxu0 %v1345
        %2091 = vmatprep.subr.mxu0 0.0
        %2092 = vmatpush1.msra.mxu0 %v1346
        %2093 = vmatprep.subr.mxu0 0.0
        %2094 = vmatpush1.msra.mxu0 %v1347
        %2095 = vmatprep.subr.mxu0 0.0
        %2096 = vmatpush1.msra.mxu0 %v1348
        %2097 = vmatprep.subr.mxu0 0.0
        %2098 = vmatpush1.msra.mxu0 %v1349
        %2099 = vmatprep.subr.mxu0 0.0
        %2100 = vmatpush1.msra.mxu0 %v1350
        %2101 = vmatprep.subr.mxu0 0.0
        %2102 = vmatpush1.msra.mxu0 %v1351
        %2103 = vmatprep.subr.mxu0 0.0
        %2104 = vmatpush1.msra.mxu0 %v1352
        %2105 = vmatprep.subr.mxu0 0.0
        %2106 = vmatpush1.msra.mxu0 %v1353
        %2107 = vmatprep.subr.mxu0 0.0
        %2108 = vmatpush1.msra.mxu0 %v1354
        %2109 = vmatprep.subr.mxu0 0.0
        %2110 = vmatpush1.msra.mxu0 %v1355
        %2111 = vmatprep.subr.mxu0 0.0
        %2112 = vmatpush1.msra.mxu0 %v1356
        %2113 = vmatprep.subr.mxu0 0.0
        %2114 = vmatpush1.msra.mxu0 %v1357
        %2115 = vmatprep.subr.mxu0 0.0
        %2116 = vmatpush1.msra.mxu0 %v1358
        %2117 = vmatprep.subr.mxu0 0.0
        %2118 = vmatpush1.msra.mxu0 %v1359
        %2119 = vmatprep.subr.mxu0 0.0
        %2120 = vmatpush1.msra.mxu0 %v1360
        %2121 = vmatprep.subr.mxu0 0.0
        %2122 = vmatpush1.msra.mxu0 %v1361
        %2123 = vmatprep.subr.mxu0 0.0
        %2124 = vmatpush1.msra.mxu0 %v1362
        %2125 = vmatprep.mubr.f32.mxu0 %v1140
        %2126 = vmatmul.mubr.f32.gmra.mrb[0].mxu0 %v1139
        %v2127 = vpop.f32.mrb[0].mxu0
        %v2128 = vadd.f32 %v1903, %v2127
        %v2129 = vpop.f32.mrb[0].mxu0
        %2130 = vmatprep.mubr.f32.mxu0 %v1143
        %2131 = vmatmul.mubr.f32.gmra.mrb[0].mxu0 %v1142
        %v2132 = vpop.f32.mrb[0].mxu0
        %v2133 = vadd.f32 %v1908, %v2132
        %v2134 = vpop.f32.mrb[0].mxu0
        %2135 = vmatprep.mubr.f32.mxu0 %v1146
        %2136 = vmatmul.mubr.f32.gmra.mrb[0].mxu0 %v1145
        %v2137 = vpop.f32.mrb[0].mxu0
        %v2138 = vadd.f32 %v1913, %v2137
        %v2139 = vpop.f32.mrb[0].mxu0
        %2140 = vmatprep.mubr.f32.mxu0 %v1149
        %2141 = vmatmul.mubr.f32.gmra.mrb[0].mxu0 %v1148
        %v2142 = vpop.f32.mrb[0].mxu0
        %v2143 = vadd.f32 %v1918, %v2142
        %v2144 = vpop.f32.mrb[0].mxu0
        %2145 = vmatprep.mubr.f32.mxu0 %v1152
        %2146 = vmatmul.mubr.f32.gmra.mrb[0].mxu0 %v1151
        %v2147 = vpop.f32.mrb[0].mxu0
        %v2148 = vadd.f32 %v1923, %v2147
        %v2149 = vpop.f32.mrb[0].mxu0
        %2150 = vmatprep.mubr.f32.mxu0 %v1155
        %2151 = vmatmul.mubr.f32.gmra.mrb[0].mxu0 %v1154
        %v2152 = vpop.f32.mrb[0].mxu0
        %v2153 = vadd.f32 %v1928, %v2152
        %v2154 = vpop.f32.mrb[0].mxu0
        %2155 = vmatprep.mubr.f32.mxu0 %v1158
        %2156 = vmatmul.mubr.f32.gmra.mrb[0].mxu0 %v1157
        %v2157 = vpop.f32.mrb[0].mxu0
        %v2158 = vadd.f32 %v1933, %v2157
        %v2159 = vpop.f32.mrb[0].mxu0
        %2160 = vmatprep.mubr.f32.mxu0 %v1161
        %2161 = vmatmul.mubr.f32.gmra.mrb[0].mxu0 %v1160
        %v2162 = vpop.f32.mrb[0].mxu0
        %v2163 = vadd.f32 %v1938, %v2162
        %v2164 = vpop.f32.mrb[0].mxu0
        %2165 = vmatprep.mubr.f32.mxu0 %v1164
        %2166 = vmatmul.mubr.f32.gmra.mrb[0].mxu0 %v1163
        %v2167 = vpop.f32.mrb[0].mxu0
        %v2168 = vadd.f32 %v1943, %v2167
        %v2169 = vpop.f32.mrb[0].mxu0
        %2170 = vmatprep.mubr.f32.mxu0 %v1167
        %2171 = vmatmul.mubr.f32.gmra.mrb[0].mxu0 %v1166
        %v2172 = vpop.f32.mrb[0].mxu0
        %v2173 = vadd.f32 %v1948, %v2172
        %v2174 = vpop.f32.mrb[0].mxu0
        %2175 = vmatprep.mubr.f32.mxu0 %v1170
        %2176 = vmatmul.mubr.f32.gmra.mrb[0].mxu0 %v1169
        %v2177 = vpop.f32.mrb[0].mxu0
        %v2178 = vadd.f32 %v1953, %v2177
        %v2179 = vpop.f32.mrb[0].mxu0
        %2180 = vmatprep.mubr.f32.mxu0 %v1173
        %2181 = vmatmul.mubr.f32.gmra.mrb[0].mxu0 %v1172
        %v2182 = vpop.f32.mrb[0].mxu0
        %v2183 = vadd.f32 %v1958, %v2182
        %v2184 = vpop.f32.mrb[0].mxu0
        %2185 = vmatprep.mubr.f32.mxu0 %v1176
        %2186 = vmatmul.mubr.f32.gmra.mrb[0].mxu0 %v1175
        %v2187 = vpop.f32.mrb[0].mxu0
        %v2188 = vadd.f32 %v1963, %v2187
        %v2189 = vpop.f32.mrb[0].mxu0
        %2190 = vmatprep.mubr.f32.mxu0 %v1179
        %2191 = vmatmul.mubr.f32.gmra.mrb[0].mxu0 %v1178
        %v2192 = vpop.f32.mrb[0].mxu0
        %v2193 = vadd.f32 %v1968, %v2192
        %v2194 = vpop.f32.mrb[0].mxu0
        %2195 = vmatprep.mubr.f32.mxu0 %v1182
        %2196 = vmatmul.mubr.f32.gmra.mrb[0].mxu0 %v1181
        %v2197 = vpop.f32.mrb[0].mxu0
        %v2198 = vadd.f32 %v1973, %v2197
        %v2199 = vpop.f32.mrb[0].mxu0
        %2200 = vmatprep.mubr.f32.mxu0 %v1185
        %2201 = vmatmul.mubr.f32.gmra.mrb[0].mxu0 %v1184
        %v2202 = vpop.f32.mrb[0].mxu0
        %v2203 = vadd.f32 %v1978, %v2202
        %v2204 = vpop.f32.mrb[0].mxu0
        %2205 = vmatprep.mubr.f32.mxu0 %v1188
        %2206 = vmatmul.mubr.f32.gmra.mrb[0].mxu0 %v1187
        %v2207 = vpop.f32.mrb[0].mxu0
        %v2208 = vadd.f32 %v1983, %v2207
        %v2209 = vpop.f32.mrb[0].mxu0
        %2210 = vmatprep.mubr.f32.mxu0 %v1191
        %2211 = vmatmul.mubr.f32.gmra.mrb[0].mxu0 %v1190
        %v2212 = vpop.f32.mrb[0].mxu0
        %v2213 = vadd.f32 %v1988, %v2212
        %v2214 = vpop.f32.mrb[0].mxu0
        %2215 = vmatprep.mubr.f32.mxu0 %v1194
        %2216 = vmatmul.mubr.f32.gmra.mrb[0].mxu0 %v1193
        %v2217 = vpop.f32.mrb[0].mxu0
        %v2218 = vadd.f32 %v1993, %v2217
        %v2219 = vpop.f32.mrb[0].mxu0
        %2220 = vmatprep.mubr.f32.mxu0 %v1197
        %2221 = vmatmul.mubr.f32.gmra.mrb[0].mxu0 %v1196
        %v2222 = vpop.f32.mrb[0].mxu0
        %v2223 = vadd.f32 %v1998, %v2222
        %v2224 = vpop.f32.mrb[0].mxu0
        %2225 = vmatprep.mubr.f32.mxu0 %v1200
        %2226 = vmatmul.mubr.f32.gmra.mrb[0].mxu0 %v1199
        %v2227 = vpop.f32.mrb[0].mxu0
        %v2228 = vadd.f32 %v2003, %v2227
        %v2229 = vpop.f32.mrb[0].mxu0
        %2230 = vmatprep.mubr.f32.mxu0 %v1203
        %2231 = vmatmul.mubr.f32.gmra.mrb[0].mxu0 %v1202
        %v2232 = vpop.f32.mrb[0].mxu0
        %v2233 = vadd.f32 %v2008, %v2232
        %v2234 = vpop.f32.mrb[0].mxu0
        %2235 = vmatprep.mubr.f32.mxu0 %v1206
        %2236 = vmatmul.mubr.f32.gmra.mrb[0].mxu0 %v1205
        %v2237 = vpop.f32.mrb[0].mxu0
        %v2238 = vadd.f32 %v2013, %v2237
        %v2239 = vpop.f32.mrb[0].mxu0
        %2240 = vmatprep.mubr.f32.mxu0 %v1209
        %2241 = vmatmul.mubr.f32.gmra.mrb[0].mxu0 %v1208
        %v2242 = vpop.f32.mrb[0].mxu0
        %v2243 = vadd.f32 %v2018, %v2242
        %v2244 = vpop.f32.mrb[0].mxu0
        %2245 = vmatprep.mubr.f32.mxu0 %v1212
        %2246 = vmatmul.mubr.f32.gmra.mrb[0].mxu0 %v1211
        %v2247 = vpop.f32.mrb[0].mxu0
        %v2248 = vadd.f32 %v2023, %v2247
        %v2249 = vpop.f32.mrb[0].mxu0
        %2250 = vmatprep.mubr.f32.mxu0 %v1215
        %2251 = vmatmul.mubr.f32.gmra.mrb[0].mxu0 %v1214
        %v2252 = vpop.f32.mrb[0].mxu0
        %v2253 = vadd.f32 %v2028, %v2252
        %v2254 = vpop.f32.mrb[0].mxu0
        %2255 = vmatprep.mubr.f32.mxu0 %v1218
        %2256 = vmatmul.mubr.f32.gmra.mrb[0].mxu0 %v1217
        %v2257 = vpop.f32.mrb[0].mxu0
        %v2258 = vadd.f32 %v2033, %v2257
        %v2259 = vpop.f32.mrb[0].mxu0
        %2260 = vmatprep.mubr.f32.mxu0 %v1221
        %2261 = vmatmul.mubr.f32.gmra.mrb[0].mxu0 %v1220
        %v2262 = vpop.f32.mrb[0].mxu0
        %v2263 = vadd.f32 %v2038, %v2262
        %v2264 = vpop.f32.mrb[0].mxu0
        %2265 = vmatprep.mubr.f32.mxu0 %v1224
        %2266 = vmatmul.mubr.f32.gmra.mrb[0].mxu0 %v1223
        %v2267 = vpop.f32.mrb[0].mxu0
        %v2268 = vadd.f32 %v2043, %v2267
        %v2269 = vpop.f32.mrb[0].mxu0
        %2270 = vmatprep.mubr.f32.mxu0 %v1227
        %2271 = vmatmul.mubr.f32.gmra.mrb[0].mxu0 %v1226
        %v2272 = vpop.f32.mrb[0].mxu0
        %v2273 = vadd.f32 %v2048, %v2272
        %v2274 = vpop.f32.mrb[0].mxu0
        %2275 = vmatprep.mubr.f32.mxu0 %v1230
        %2276 = vmatmul.mubr.f32.gmra.mrb[0].mxu0 %v1229
        %v2277 = vpop.f32.mrb[0].mxu0
        %v2278 = vadd.f32 %v2053, %v2277
        %v2279 = vpop.f32.mrb[0].mxu0
        %2280 = vmatprep.mubr.f32.mxu0 %v1233
        %2281 = vmatmul.mubr.f32.gmra.mrb[0].mxu0 %v1232
        %v2282 = vpop.f32.mrb[0].mxu0
        %v2283 = vadd.f32 %v2058, %v2282
        %v2284 = vpop.f32.mrb[0].mxu0
        %2285 = vdwg.mxu0
        %2286 = vmatprep.subr.mxu0 0.0
        %2287 = vmatpush1.msra.mxu0 %v1363
        %2288 = vmatprep.subr.mxu0 0.0
        %2289 = vmatpush1.msra.mxu0 %v1364
        %2290 = vmatprep.subr.mxu0 0.0
        %2291 = vmatpush1.msra.mxu0 %v1365
        %2292 = vmatprep.subr.mxu0 0.0
        %2293 = vmatpush1.msra.mxu0 %v1366
        %2294 = vmatprep.subr.mxu0 0.0
        %2295 = vmatpush1.msra.mxu0 %v1367
        %2296 = vmatprep.subr.mxu0 0.0
        %2297 = vmatpush1.msra.mxu0 %v1368
        %2298 = vmatprep.subr.mxu0 0.0
        %2299 = vmatpush1.msra.mxu0 %v1369
        %2300 = vmatprep.subr.mxu0 0.0
        %2301 = vmatpush1.msra.mxu0 %v1370
        %2302 = vmatprep.subr.mxu0 0.0
        %2303 = vmatpush1.msra.mxu0 %v1371
        %2304 = vmatprep.subr.mxu0 0.0
        %2305 = vmatpush1.msra.mxu0 %v1372
        %2306 = vmatprep.subr.mxu0 0.0
        %2307 = vmatpush1.msra.mxu0 %v1373
        %2308 = vmatprep.subr.mxu0 0.0
        %2309 = vmatpush1.msra.mxu0 %v1374
        %2310 = vmatprep.subr.mxu0 0.0
        %2311 = vmatpush1.msra.mxu0 %v1375
        %2312 = vmatprep.subr.mxu0 0.0
        %2313 = vmatpush1.msra.mxu0 %v1376
        %2314 = vmatprep.subr.mxu0 0.0
        %2315 = vmatpush1.msra.mxu0 %v1377
        %2316 = vmatprep.subr.mxu0 0.0
        %2317 = vmatpush1.msra.mxu0 %v1378
        %2318 = vmatprep.subr.mxu0 0.0
        %2319 = vmatpush1.msra.mxu0 0.0
        %2320 = vmatprep.subr.mxu0 0.0
        %2321 = vmatpush1.msra.mxu0 0.0
        %2322 = vmatprep.subr.mxu0 0.0
        %2323 = vmatpush1.msra.mxu0 0.0
        %2324 = vmatprep.subr.mxu0 0.0
        %2325 = vmatpush1.msra.mxu0 0.0
        %2326 = vmatprep.subr.mxu0 0.0
        %2327 = vmatpush1.msra.mxu0 0.0
        %2328 = vmatprep.subr.mxu0 0.0
        %2329 = vmatpush1.msra.mxu0 0.0
        %2330 = vmatprep.subr.mxu0 0.0
        %2331 = vmatpush1.msra.mxu0 0.0
        %2332 = vmatprep.subr.mxu0 0.0
        %2333 = vmatpush1.msra.mxu0 0.0
        %2334 = vmatprep.subr.mxu0 0.0
        %2335 = vmatpush1.msra.mxu0 0.0
        %2336 = vmatprep.subr.mxu0 0.0
        %2337 = vmatpush1.msra.mxu0 0.0
        %2338 = vmatprep.subr.mxu0 0.0
        %2339 = vmatpush1.msra.mxu0 0.0
        %2340 = vmatprep.subr.mxu0 0.0
        %2341 = vmatpush1.msra.mxu0 0.0
        %2342 = vmatprep.subr.mxu0 0.0
        %2343 = vmatpush1.msra.mxu0 0.0
        %2344 = vmatprep.subr.mxu0 0.0
        %2345 = vmatpush1.msra.mxu0 0.0
        %2346 = vmatprep.subr.mxu0 0.0
        %2347 = vmatpush1.msra.mxu0 0.0
        %2348 = vmatprep.subr.mxu0 0.0
        %2349 = vmatpush1.msra.mxu0 0.0
        %2350 = vmatprep.mubr.f32.mxu0 0.0
        %2351 = vmatmul.mubr.f32.gmra.mrb[0].mxu0 %v1141
        %v2352 = vpop.f32.mrb[0].mxu0
        %v2353 = vadd.f32 %v2128, %v2352
        %v2354 = vpop.f32.mrb[0].mxu0
        %2355 = vmatprep.mubr.f32.mxu0 0.0
        %2356 = vmatmul.mubr.f32.gmra.mrb[0].mxu0 %v1144
        %v2357 = vpop.f32.mrb[0].mxu0
        %v2358 = vadd.f32 %v2133, %v2357
        %v2359 = vpop.f32.mrb[0].mxu0
        %2360 = vmatprep.mubr.f32.mxu0 0.0
        %2361 = vmatmul.mubr.f32.gmra.mrb[0].mxu0 %v1147
        %v2362 = vpop.f32.mrb[0].mxu0
        %v2363 = vadd.f32 %v2138, %v2362
        %v2364 = vpop.f32.mrb[0].mxu0
        %2365 = vmatprep.mubr.f32.mxu0 0.0
        %2366 = vmatmul.mubr.f32.gmra.mrb[0].mxu0 %v1150
        %v2367 = vpop.f32.mrb[0].mxu0
        %v2368 = vadd.f32 %v2143, %v2367
        %v2369 = vpop.f32.mrb[0].mxu0
        %2370 = vmatprep.mubr.f32.mxu0 0.0
        %2371 = vmatmul.mubr.f32.gmra.mrb[0].mxu0 %v1153
        %v2372 = vpop.f32.mrb[0].mxu0
        %v2373 = vadd.f32 %v2148, %v2372
        %v2374 = vpop.f32.mrb[0].mxu0
        %2375 = vmatprep.mubr.f32.mxu0 0.0
        %2376 = vmatmul.mubr.f32.gmra.mrb[0].mxu0 %v1156
        %v2377 = vpop.f32.mrb[0].mxu0
        %v2378 = vadd.f32 %v2153, %v2377
        %v2379 = vpop.f32.mrb[0].mxu0
        %2380 = vmatprep.mubr.f32.mxu0 0.0
        %2381 = vmatmul.mubr.f32.gmra.mrb[0].mxu0 %v1159
        %v2382 = vpop.f32.mrb[0].mxu0
        %v2383 = vadd.f32 %v2158, %v2382
        %v2384 = vpop.f32.mrb[0].mxu0
        %2385 = vmatprep.mubr.f32.mxu0 0.0
        %2386 = vmatmul.mubr.f32.gmra.mrb[0].mxu0 %v1162
        %v2387 = vpop.f32.mrb[0].mxu0
        %v2388 = vadd.f32 %v2163, %v2387
        %v2389 = vpop.f32.mrb[0].mxu0
        %2390 = vmatprep.mubr.f32.mxu0 0.0
        %2391 = vmatmul.mubr.f32.gmra.mrb[0].mxu0 %v1165
        %v2392 = vpop.f32.mrb[0].mxu0
        %v2393 = vadd.f32 %v2168, %v2392
        %v2394 = vpop.f32.mrb[0].mxu0
        %2395 = vmatprep.mubr.f32.mxu0 0.0
        %2396 = vmatmul.mubr.f32.gmra.mrb[0].mxu0 %v1168
        %v2397 = vpop.f32.mrb[0].mxu0
        %v2398 = vadd.f32 %v2173, %v2397
        %v2399 = vpop.f32.mrb[0].mxu0
        %2400 = vmatprep.mubr.f32.mxu0 0.0
        %2401 = vmatmul.mubr.f32.gmra.mrb[0].mxu0 %v1171
        %v2402 = vpop.f32.mrb[0].mxu0
        %v2403 = vadd.f32 %v2178, %v2402
        %v2404 = vpop.f32.mrb[0].mxu0
        %2405 = vmatprep.mubr.f32.mxu0 0.0
        %2406 = vmatmul.mubr.f32.gmra.mrb[0].mxu0 %v1174
        %v2407 = vpop.f32.mrb[0].mxu0
        %v2408 = vadd.f32 %v2183, %v2407
        %v2409 = vpop.f32.mrb[0].mxu0
        %2410 = vmatprep.mubr.f32.mxu0 0.0
        %2411 = vmatmul.mubr.f32.gmra.mrb[0].mxu0 %v1177
        %v2412 = vpop.f32.mrb[0].mxu0
        %v2413 = vadd.f32 %v2188, %v2412
        %v2414 = vpop.f32.mrb[0].mxu0
        %2415 = vmatprep.mubr.f32.mxu0 0.0
        %2416 = vmatmul.mubr.f32.gmra.mrb[0].mxu0 %v1180
        %v2417 = vpop.f32.mrb[0].mxu0
        %v2418 = vadd.f32 %v2193, %v2417
        %v2419 = vpop.f32.mrb[0].mxu0
        %2420 = vmatprep.mubr.f32.mxu0 0.0
        %2421 = vmatmul.mubr.f32.gmra.mrb[0].mxu0 %v1183
        %v2422 = vpop.f32.mrb[0].mxu0
        %v2423 = vadd.f32 %v2198, %v2422
        %v2424 = vpop.f32.mrb[0].mxu0
        %2425 = vmatprep.mubr.f32.mxu0 0.0
        %2426 = vmatmul.mubr.f32.gmra.mrb[0].mxu0 %v1186
        %v2427 = vpop.f32.mrb[0].mxu0
        %v2428 = vadd.f32 %v2203, %v2427
        %v2429 = vpop.f32.mrb[0].mxu0
        %2430 = vmatprep.mubr.f32.mxu0 0.0
        %2431 = vmatmul.mubr.f32.gmra.mrb[0].mxu0 %v1189
        %v2432 = vpop.f32.mrb[0].mxu0
        %v2433 = vadd.f32 %v2208, %v2432
        %v2434 = vpop.f32.mrb[0].mxu0
        %2435 = vmatprep.mubr.f32.mxu0 0.0
        %2436 = vmatmul.mubr.f32.gmra.mrb[0].mxu0 %v1192
        %v2437 = vpop.f32.mrb[0].mxu0
        %v2438 = vadd.f32 %v2213, %v2437
        %v2439 = vpop.f32.mrb[0].mxu0
        %2440 = vmatprep.mubr.f32.mxu0 0.0
        %2441 = vmatmul.mubr.f32.gmra.mrb[0].mxu0 %v1195
        %v2442 = vpop.f32.mrb[0].mxu0
        %v2443 = vadd.f32 %v2218, %v2442
        %v2444 = vpop.f32.mrb[0].mxu0
        %2445 = vmatprep.mubr.f32.mxu0 0.0
        %2446 = vmatmul.mubr.f32.gmra.mrb[0].mxu0 %v1198
        %v2447 = vpop.f32.mrb[0].mxu0
        %v2448 = vadd.f32 %v2223, %v2447
        %v2449 = vpop.f32.mrb[0].mxu0
        %2450 = vmatprep.mubr.f32.mxu0 0.0
        %2451 = vmatmul.mubr.f32.gmra.mrb[0].mxu0 %v1201
        %v2452 = vpop.f32.mrb[0].mxu0
        %v2453 = vadd.f32 %v2228, %v2452
        %v2454 = vpop.f32.mrb[0].mxu0
        %2455 = vmatprep.mubr.f32.mxu0 0.0
        %2456 = vmatmul.mubr.f32.gmra.mrb[0].mxu0 %v1204
        %v2457 = vpop.f32.mrb[0].mxu0
        %v2458 = vadd.f32 %v2233, %v2457
        %v2459 = vpop.f32.mrb[0].mxu0
        %2460 = vmatprep.mubr.f32.mxu0 0.0
        %2461 = vmatmul.mubr.f32.gmra.mrb[0].mxu0 %v1207
        %v2462 = vpop.f32.mrb[0].mxu0
        %v2463 = vadd.f32 %v2238, %v2462
        %v2464 = vpop.f32.mrb[0].mxu0
        %2465 = vmatprep.mubr.f32.mxu0 0.0
        %2466 = vmatmul.mubr.f32.gmra.mrb[0].mxu0 %v1210
        %v2467 = vpop.f32.mrb[0].mxu0
        %v2468 = vadd.f32 %v2243, %v2467
        %v2469 = vpop.f32.mrb[0].mxu0
        %2470 = vmatprep.mubr.f32.mxu0 0.0
        %2471 = vmatmul.mubr.f32.gmra.mrb[0].mxu0 %v1213
        %v2472 = vpop.f32.mrb[0].mxu0
        %v2473 = vadd.f32 %v2248, %v2472
        %v2474 = vpop.f32.mrb[0].mxu0
        %2475 = vmatprep.mubr.f32.mxu0 0.0
        %2476 = vmatmul.mubr.f32.gmra.mrb[0].mxu0 %v1216
        %v2477 = vpop.f32.mrb[0].mxu0
        %v2478 = vadd.f32 %v2253, %v2477
        %v2479 = vpop.f32.mrb[0].mxu0
        %2480 = vmatprep.mubr.f32.mxu0 0.0
        %2481 = vmatmul.mubr.f32.gmra.mrb[0].mxu0 %v1219
        %v2482 = vpop.f32.mrb[0].mxu0
        %v2483 = vadd.f32 %v2258, %v2482
        %v2484 = vpop.f32.mrb[0].mxu0
        %2485 = vmatprep.mubr.f32.mxu0 0.0
        %2486 = vmatmul.mubr.f32.gmra.mrb[0].mxu0 %v1222
        %v2487 = vpop.f32.mrb[0].mxu0
        %v2488 = vadd.f32 %v2263, %v2487
        %v2489 = vpop.f32.mrb[0].mxu0
        %2490 = vmatprep.mubr.f32.mxu0 0.0
        %2491 = vmatmul.mubr.f32.gmra.mrb[0].mxu0 %v1225
        %v2492 = vpop.f32.mrb[0].mxu0
        %v2493 = vadd.f32 %v2268, %v2492
        %v2494 = vpop.f32.mrb[0].mxu0
        %2495 = vmatprep.mubr.f32.mxu0 0.0
        %2496 = vmatmul.mubr.f32.gmra.mrb[0].mxu0 %v1228
        %v2497 = vpop.f32.mrb[0].mxu0
        %v2498 = vadd.f32 %v2273, %v2497
        %v2499 = vpop.f32.mrb[0].mxu0
        %2500 = vmatprep.mubr.f32.mxu0 0.0
        %2501 = vmatmul.mubr.f32.gmra.mrb[0].mxu0 %v1231
        %v2502 = vpop.f32.mrb[0].mxu0
        %v2503 = vadd.f32 %v2278, %v2502
        %v2504 = vpop.f32.mrb[0].mxu0
        %2505 = vmatprep.mubr.f32.mxu0 0.0
        %2506 = vmatmul.mubr.f32.gmra.mrb[0].mxu0 %v1234
        %v2507 = vpop.f32.mrb[0].mxu0
        %v2508 = vadd.f32 %v2283, %v2507
        %v2509 = vpop.f32.mrb[0].mxu0
        %2510 = vdwg.mxu0
        %v2511 = vmax.f32 %v2353, 0.0
        %v2512 = vmax.f32 %v2358, 0.0
        %v2513 = vmax.f32 %v2363, 0.0
        %v2514 = vmax.f32 %v2368, 0.0
        %v2515 = vmax.f32 %v2373, 0.0
        %v2516 = vmax.f32 %v2378, 0.0
        %v2517 = vmax.f32 %v2383, 0.0
        %v2518 = vmax.f32 %v2388, 0.0
        %v2519 = vmax.f32 %v2393, 0.0
        %v2520 = vmax.f32 %v2398, 0.0
        %v2521 = vmax.f32 %v2403, 0.0
        %v2522 = vmax.f32 %v2408, 0.0
        %v2523 = vmax.f32 %v2413, 0.0
        %v2524 = vmax.f32 %v2418, 0.0
        %v2525 = vmax.f32 %v2423, 0.0
        %v2526 = vmax.f32 %v2428, 0.0
        %v2527 = vmax.f32 %v2433, 0.0
        %v2528 = vmax.f32 %v2438, 0.0
        %v2529 = vmax.f32 %v2443, 0.0
        %v2530 = vmax.f32 %v2448, 0.0
        %v2531 = vmax.f32 %v2453, 0.0
        %v2532 = vmax.f32 %v2458, 0.0
        %v2533 = vmax.f32 %v2463, 0.0
        %v2534 = vmax.f32 %v2468, 0.0
        %v2535 = vmax.f32 %v2473, 0.0
        %v2536 = vmax.f32 %v2478, 0.0
        %v2537 = vmax.f32 %v2483, 0.0
        %v2538 = vmax.f32 %v2488, 0.0
        %v2539 = vmax.f32 %v2493, 0.0
        %v2540 = vmax.f32 %v2498, 0.0
        %v2541 = vmax.f32 %v2503, 0.0
        %v2542 = vmax.f32 %v2508, 0.0
        %v2543 = vld [vmem:[#allocation10] sm:$0xff]
        %v2544 = vld [vmem:[#allocation10 + $0x8] sm:$0xff]
        %v2545 = vld [vmem:[#allocation10 + $0x10] sm:$0xff]
        %v2546 = vld [vmem:[#allocation10 + $0x18] sm:$0xff]
        %v2547 = vld [vmem:[#allocation10 + $0x20] sm:$0xff]
        %v2548 = vld [vmem:[#allocation10 + $0x28] sm:$0xff]
        %v2549 = vld [vmem:[#allocation10 + $0x30] sm:$0xff]
        %v2550 = vld [vmem:[#allocation10 + $0x38] sm:$0xff]
        %v2551 = vld [vmem:[#allocation10 + $0x40] sm:$0xff]
        %v2552 = vld [vmem:[#allocation10 + $0x48] sm:$0xff]
        %v2553 = vld [vmem:[#allocation10 + $0x50] sm:$0xff]
        %v2554 = vld [vmem:[#allocation10 + $0x58] sm:$0xff]
        %v2555 = vld [vmem:[#allocation10 + $0x60] sm:$0xff]
        %v2556 = vld [vmem:[#allocation10 + $0x68] sm:$0xff]
        %v2557 = vld [vmem:[#allocation10 + $0x70] sm:$0xff]
        %v2558 = vld [vmem:[#allocation10 + $0x78] sm:$0xff]
        %v2559 = vld [vmem:[%s6] sm:$0x1]
        %v2561 = vlaneseq
        %v2562 = vshrl.u32 %v2561, 7
        %v2563 = vsub.s32 0, %v2562
        %v2564 = vrot.slane %v2559, %v2563
        %2566 = vmatprep.subr.mxu0 0.0
        %2567 = vmatpush1.msra.mxu0 %v2543
        %2568 = vmatprep.subr.mxu0 0.0
        %2569 = vmatpush1.msra.mxu0 %v2544
        %2570 = vmatprep.subr.mxu0 0.0
        %2571 = vmatpush1.msra.mxu0 %v2545
        %2572 = vmatprep.subr.mxu0 0.0
        %2573 = vmatpush1.msra.mxu0 %v2546
        %2574 = vmatprep.subr.mxu0 0.0
        %2575 = vmatpush1.msra.mxu0 %v2547
        %2576 = vmatprep.subr.mxu0 0.0
        %2577 = vmatpush1.msra.mxu0 %v2548
        %2578 = vmatprep.subr.mxu0 0.0
        %2579 = vmatpush1.msra.mxu0 %v2549
        %2580 = vmatprep.subr.mxu0 0.0
        %2581 = vmatpush1.msra.mxu0 %v2550
        %2582 = vmatprep.subr.mxu0 0.0
        %2583 = vmatpush1.msra.mxu0 %v2551
        %2584 = vmatprep.subr.mxu0 0.0
        %2585 = vmatpush1.msra.mxu0 %v2552
        %2586 = vmatprep.subr.mxu0 0.0
        %2587 = vmatpush1.msra.mxu0 %v2553
        %2588 = vmatprep.subr.mxu0 0.0
        %2589 = vmatpush1.msra.mxu0 %v2554
        %2590 = vmatprep.subr.mxu0 0.0
        %2591 = vmatpush1.msra.mxu0 %v2555
        %2592 = vmatprep.subr.mxu0 0.0
        %2593 = vmatpush1.msra.mxu0 %v2556
        %2594 = vmatprep.subr.mxu0 0.0
        %2595 = vmatpush1.msra.mxu0 %v2557
        %2596 = vmatprep.subr.mxu0 0.0
        %2597 = vmatpush1.msra.mxu0 %v2558
        %2598 = vmatprep.subr.mxu0 0.0
        %2599 = vmatpush1.msra.mxu0 0.0
        %2600 = vmatprep.subr.mxu0 0.0
        %2601 = vmatpush1.msra.mxu0 0.0
        %2602 = vmatprep.subr.mxu0 0.0
        %2603 = vmatpush1.msra.mxu0 0.0
        %2604 = vmatprep.subr.mxu0 0.0
        %2605 = vmatpush1.msra.mxu0 0.0
        %2606 = vmatprep.subr.mxu0 0.0
        %2607 = vmatpush1.msra.mxu0 0.0
        %2608 = vmatprep.subr.mxu0 0.0
        %2609 = vmatpush1.msra.mxu0 0.0
        %2610 = vmatprep.subr.mxu0 0.0
        %2611 = vmatpush1.msra.mxu0 0.0
        %2612 = vmatprep.subr.mxu0 0.0
        %2613 = vmatpush1.msra.mxu0 0.0
        %2614 = vmatprep.subr.mxu0 0.0
        %2615 = vmatpush1.msra.mxu0 0.0
        %2616 = vmatprep.subr.mxu0 0.0
        %2617 = vmatpush1.msra.mxu0 0.0
        %2618 = vmatprep.subr.mxu0 0.0
        %2619 = vmatpush1.msra.mxu0 0.0
        %2620 = vmatprep.subr.mxu0 0.0
        %2621 = vmatpush1.msra.mxu0 0.0
        %2622 = vmatprep.subr.mxu0 0.0
        %2623 = vmatpush1.msra.mxu0 0.0
        %2624 = vmatprep.subr.mxu0 0.0
        %2625 = vmatpush1.msra.mxu0 0.0
        %2626 = vmatprep.subr.mxu0 0.0
        %2627 = vmatpush1.msra.mxu0 0.0
        %2628 = vmatprep.subr.mxu0 0.0
        %2629 = vmatpush1.msra.mxu0 0.0
        %2630 = vmatprep.mubr.f32.mxu0 0.0
        %2631 = vmatmul.mubr.f32.gmra.mrb[0].mxu0 %v2511
        %v2632 = vpop.f32.mrb[0].mxu0
        %v2633 = vadd.f32 %v2564, %v2632
        %v2634 = vpop.f32.mrb[0].mxu0
        %2635 = vmatprep.mubr.f32.mxu0 0.0
        %2636 = vmatmul.mubr.f32.gmra.mrb[0].mxu0 %v2512
        %v2637 = vpop.f32.mrb[0].mxu0
        %v2638 = vadd.f32 %v2564, %v2637
        %v2639 = vpop.f32.mrb[0].mxu0
        %2640 = vmatprep.mubr.f32.mxu0 0.0
        %2641 = vmatmul.mubr.f32.gmra.mrb[0].mxu0 %v2513
        %v2642 = vpop.f32.mrb[0].mxu0
        %v2643 = vadd.f32 %v2564, %v2642
        %v2644 = vpop.f32.mrb[0].mxu0
        %2645 = vmatprep.mubr.f32.mxu0 0.0
        %2646 = vmatmul.mubr.f32.gmra.mrb[0].mxu0 %v2514
        %v2647 = vpop.f32.mrb[0].mxu0
        %v2648 = vadd.f32 %v2564, %v2647
        %v2649 = vpop.f32.mrb[0].mxu0
        %2650 = vmatprep.mubr.f32.mxu0 0.0
        %2651 = vmatmul.mubr.f32.gmra.mrb[0].mxu0 %v2515
        %v2652 = vpop.f32.mrb[0].mxu0
        %v2653 = vadd.f32 %v2564, %v2652
        %v2654 = vpop.f32.mrb[0].mxu0
        %2655 = vmatprep.mubr.f32.mxu0 0.0
        %2656 = vmatmul.mubr.f32.gmra.mrb[0].mxu0 %v2516
        %v2657 = vpop.f32.mrb[0].mxu0
        %v2658 = vadd.f32 %v2564, %v2657
        %v2659 = vpop.f32.mrb[0].mxu0
        %2660 = vmatprep.mubr.f32.mxu0 0.0
        %2661 = vmatmul.mubr.f32.gmra.mrb[0].mxu0 %v2517
        %v2662 = vpop.f32.mrb[0].mxu0
        %v2663 = vadd.f32 %v2564, %v2662
        %v2664 = vpop.f32.mrb[0].mxu0
        %2665 = vmatprep.mubr.f32.mxu0 0.0
        %2666 = vmatmul.mubr.f32.gmra.mrb[0].mxu0 %v2518
        %v2667 = vpop.f32.mrb[0].mxu0
        %v2668 = vadd.f32 %v2564, %v2667
        %v2669 = vpop.f32.mrb[0].mxu0
        %2670 = vmatprep.mubr.f32.mxu0 0.0
        %2671 = vmatmul.mubr.f32.gmra.mrb[0].mxu0 %v2519
        %v2672 = vpop.f32.mrb[0].mxu0
        %v2673 = vadd.f32 %v2564, %v2672
        %v2674 = vpop.f32.mrb[0].mxu0
        %2675 = vmatprep.mubr.f32.mxu0 0.0
        %2676 = vmatmul.mubr.f32.gmra.mrb[0].mxu0 %v2520
        %v2677 = vpop.f32.mrb[0].mxu0
        %v2678 = vadd.f32 %v2564, %v2677
        %v2679 = vpop.f32.mrb[0].mxu0
        %2680 = vmatprep.mubr.f32.mxu0 0.0
        %2681 = vmatmul.mubr.f32.gmra.mrb[0].mxu0 %v2521
        %v2682 = vpop.f32.mrb[0].mxu0
        %v2683 = vadd.f32 %v2564, %v2682
        %v2684 = vpop.f32.mrb[0].mxu0
        %2685 = vmatprep.mubr.f32.mxu0 0.0
        %2686 = vmatmul.mubr.f32.gmra.mrb[0].mxu0 %v2522
        %v2687 = vpop.f32.mrb[0].mxu0
        %v2688 = vadd.f32 %v2564, %v2687
        %v2689 = vpop.f32.mrb[0].mxu0
        %2690 = vmatprep.mubr.f32.mxu0 0.0
        %2691 = vmatmul.mubr.f32.gmra.mrb[0].mxu0 %v2523
        %v2692 = vpop.f32.mrb[0].mxu0
        %v2693 = vadd.f32 %v2564, %v2692
        %v2694 = vpop.f32.mrb[0].mxu0
        %2695 = vmatprep.mubr.f32.mxu0 0.0
        %2696 = vmatmul.mubr.f32.gmra.mrb[0].mxu0 %v2524
        %v2697 = vpop.f32.mrb[0].mxu0
        %v2698 = vadd.f32 %v2564, %v2697
        %v2699 = vpop.f32.mrb[0].mxu0
        %2700 = vmatprep.mubr.f32.mxu0 0.0
        %2701 = vmatmul.mubr.f32.gmra.mrb[0].mxu0 %v2525
        %v2702 = vpop.f32.mrb[0].mxu0
        %v2703 = vadd.f32 %v2564, %v2702
        %v2704 = vpop.f32.mrb[0].mxu0
        %2705 = vmatprep.mubr.f32.mxu0 0.0
        %2706 = vmatmul.mubr.f32.gmra.mrb[0].mxu0 %v2526
        %v2707 = vpop.f32.mrb[0].mxu0
        %v2708 = vadd.f32 %v2564, %v2707
        %v2709 = vpop.f32.mrb[0].mxu0
        %2710 = vmatprep.mubr.f32.mxu0 0.0
        %2711 = vmatmul.mubr.f32.gmra.mrb[0].mxu0 %v2527
        %v2712 = vpop.f32.mrb[0].mxu0
        %v2713 = vadd.f32 %v2564, %v2712
        %v2714 = vpop.f32.mrb[0].mxu0
        %2715 = vmatprep.mubr.f32.mxu0 0.0
        %2716 = vmatmul.mubr.f32.gmra.mrb[0].mxu0 %v2528
        %v2717 = vpop.f32.mrb[0].mxu0
        %v2718 = vadd.f32 %v2564, %v2717
        %v2719 = vpop.f32.mrb[0].mxu0
        %2720 = vmatprep.mubr.f32.mxu0 0.0
        %2721 = vmatmul.mubr.f32.gmra.mrb[0].mxu0 %v2529
        %v2722 = vpop.f32.mrb[0].mxu0
        %v2723 = vadd.f32 %v2564, %v2722
        %v2724 = vpop.f32.mrb[0].mxu0
        %2725 = vmatprep.mubr.f32.mxu0 0.0
        %2726 = vmatmul.mubr.f32.gmra.mrb[0].mxu0 %v2530
        %v2727 = vpop.f32.mrb[0].mxu0
        %v2728 = vadd.f32 %v2564, %v2727
        %v2729 = vpop.f32.mrb[0].mxu0
        %2730 = vmatprep.mubr.f32.mxu0 0.0
        %2731 = vmatmul.mubr.f32.gmra.mrb[0].mxu0 %v2531
        %v2732 = vpop.f32.mrb[0].mxu0
        %v2733 = vadd.f32 %v2564, %v2732
        %v2734 = vpop.f32.mrb[0].mxu0
        %2735 = vmatprep.mubr.f32.mxu0 0.0
        %2736 = vmatmul.mubr.f32.gmra.mrb[0].mxu0 %v2532
        %v2737 = vpop.f32.mrb[0].mxu0
        %v2738 = vadd.f32 %v2564, %v2737
        %v2739 = vpop.f32.mrb[0].mxu0
        %2740 = vmatprep.mubr.f32.mxu0 0.0
        %2741 = vmatmul.mubr.f32.gmra.mrb[0].mxu0 %v2533
        %v2742 = vpop.f32.mrb[0].mxu0
        %v2743 = vadd.f32 %v2564, %v2742
        %v2744 = vpop.f32.mrb[0].mxu0
        %2745 = vmatprep.mubr.f32.mxu0 0.0
        %2746 = vmatmul.mubr.f32.gmra.mrb[0].mxu0 %v2534
        %v2747 = vpop.f32.mrb[0].mxu0
        %v2748 = vadd.f32 %v2564, %v2747
        %v2749 = vpop.f32.mrb[0].mxu0
        %2750 = vmatprep.mubr.f32.mxu0 0.0
        %2751 = vmatmul.mubr.f32.gmra.mrb[0].mxu0 %v2535
        %v2752 = vpop.f32.mrb[0].mxu0
        %v2753 = vadd.f32 %v2564, %v2752
        %v2754 = vpop.f32.mrb[0].mxu0
        %2755 = vmatprep.mubr.f32.mxu0 0.0
        %2756 = vmatmul.mubr.f32.gmra.mrb[0].mxu0 %v2536
        %v2757 = vpop.f32.mrb[0].mxu0
        %v2758 = vadd.f32 %v2564, %v2757
        %v2759 = vpop.f32.mrb[0].mxu0
        %2760 = vmatprep.mubr.f32.mxu0 0.0
        %2761 = vmatmul.mubr.f32.gmra.mrb[0].mxu0 %v2537
        %v2762 = vpop.f32.mrb[0].mxu0
        %v2763 = vadd.f32 %v2564, %v2762
        %v2764 = vpop.f32.mrb[0].mxu0
        %2765 = vmatprep.mubr.f32.mxu0 0.0
        %2766 = vmatmul.mubr.f32.gmra.mrb[0].mxu0 %v2538
        %v2767 = vpop.f32.mrb[0].mxu0
        %v2768 = vadd.f32 %v2564, %v2767
        %v2769 = vpop.f32.mrb[0].mxu0
        %2770 = vmatprep.mubr.f32.mxu0 0.0
        %2771 = vmatmul.mubr.f32.gmra.mrb[0].mxu0 %v2539
        %v2772 = vpop.f32.mrb[0].mxu0
        %v2773 = vadd.f32 %v2564, %v2772
        %v2774 = vpop.f32.mrb[0].mxu0
        %2775 = vmatprep.mubr.f32.mxu0 0.0
        %2776 = vmatmul.mubr.f32.gmra.mrb[0].mxu0 %v2540
        %v2777 = vpop.f32.mrb[0].mxu0
        %v2778 = vadd.f32 %v2564, %v2777
        %v2779 = vpop.f32.mrb[0].mxu0
        %2780 = vmatprep.mubr.f32.mxu0 0.0
        %2781 = vmatmul.mubr.f32.gmra.mrb[0].mxu0 %v2541
        %v2782 = vpop.f32.mrb[0].mxu0
        %v2783 = vadd.f32 %v2564, %v2782
        %v2784 = vpop.f32.mrb[0].mxu0
        %2785 = vmatprep.mubr.f32.mxu0 0.0
        %2786 = vmatmul.mubr.f32.gmra.mrb[0].mxu0 %v2542
        %v2787 = vpop.f32.mrb[0].mxu0
        %v2788 = vadd.f32 %v2564, %v2787
        %v2789 = vpop.f32.mrb[0].mxu0
        %2790 = vdwg.mxu0
        %v2791 = vmax.f32 %v2633, 0.0
        %v2792 = vmax.f32 %v2638, 0.0
        %v2793 = vmax.f32 %v2643, 0.0
        %v2794 = vmax.f32 %v2648, 0.0
        %v2795 = vmax.f32 %v2653, 0.0
        %v2796 = vmax.f32 %v2658, 0.0
        %v2797 = vmax.f32 %v2663, 0.0
        %v2798 = vmax.f32 %v2668, 0.0
        %v2799 = vmax.f32 %v2673, 0.0
        %v2800 = vmax.f32 %v2678, 0.0
        %v2801 = vmax.f32 %v2683, 0.0
        %v2802 = vmax.f32 %v2688, 0.0
        %v2803 = vmax.f32 %v2693, 0.0
        %v2804 = vmax.f32 %v2698, 0.0
        %v2805 = vmax.f32 %v2703, 0.0
        %v2806 = vmax.f32 %v2708, 0.0
        %v2807 = vmax.f32 %v2713, 0.0
        %v2808 = vmax.f32 %v2718, 0.0
        %v2809 = vmax.f32 %v2723, 0.0
        %v2810 = vmax.f32 %v2728, 0.0
        %v2811 = vmax.f32 %v2733, 0.0
        %v2812 = vmax.f32 %v2738, 0.0
        %v2813 = vmax.f32 %v2743, 0.0
        %v2814 = vmax.f32 %v2748, 0.0
        %v2815 = vmax.f32 %v2753, 0.0
        %v2816 = vmax.f32 %v2758, 0.0
        %v2817 = vmax.f32 %v2763, 0.0
        %v2818 = vmax.f32 %v2768, 0.0
        %v2819 = vmax.f32 %v2773, 0.0
        %v2820 = vmax.f32 %v2778, 0.0
        %v2821 = vmax.f32 %v2783, 0.0
        %v2822 = vmax.f32 %v2788, 0.0
        %v2823 = vadd.f32 %v2791, %v341
        %v2824 = vadd.f32 %v2792, %v342
        %v2825 = vadd.f32 %v2793, %v343
        %v2826 = vadd.f32 %v2794, %v344
        %v2827 = vadd.f32 %v2795, %v345
        %v2828 = vadd.f32 %v2796, %v346
        %v2829 = vadd.f32 %v2797, %v347
        %v2830 = vadd.f32 %v2798, %v348
        %v2831 = vadd.f32 %v2799, %v349
        %v2832 = vadd.f32 %v2800, %v350
        %v2833 = vadd.f32 %v2801, %v351
        %v2834 = vadd.f32 %v2802, %v352
        %v2835 = vadd.f32 %v2803, %v353
        %v2836 = vadd.f32 %v2804, %v354
        %v2837 = vadd.f32 %v2805, %v355
        %v2838 = vadd.f32 %v2806, %v356
        %v2839 = vadd.f32 %v2807, %v357
        %v2840 = vadd.f32 %v2808, %v358
        %v2841 = vadd.f32 %v2809, %v359
        %v2842 = vadd.f32 %v2810, %v360
        %v2843 = vadd.f32 %v2811, %v361
        %v2844 = vadd.f32 %v2812, %v362
        %v2845 = vadd.f32 %v2813, %v363
        %v2846 = vadd.f32 %v2814, %v364
        %v2847 = vadd.f32 %v2815, %v365
        %v2848 = vadd.f32 %v2816, %v366
        %v2849 = vadd.f32 %v2817, %v367
        %v2850 = vadd.f32 %v2818, %v368
        %v2851 = vadd.f32 %v2819, %v369
        %v2852 = vadd.f32 %v2820, %v370
        %v2853 = vadd.f32 %v2821, %v371
        %v2854 = vadd.f32 %v2822, %v372
        %2855 = vst [vmem:[%s340] sm:$0xff] %v2823
        %2856 = vst [vmem:[%s340 + $0x8] sm:$0xff] %v2824
        %2857 = vst [vmem:[%s340 + $0x10] sm:$0xff] %v2825
        %2858 = vst [vmem:[%s340 + $0x18] sm:$0xff] %v2826
        %2859 = vst [vmem:[%s340 + $0x20] sm:$0xff] %v2827
        %2860 = vst [vmem:[%s340 + $0x28] sm:$0xff] %v2828
        %2861 = vst [vmem:[%s340 + $0x30] sm:$0xff] %v2829
        %2862 = vst [vmem:[%s340 + $0x38] sm:$0xff] %v2830
        %2863 = vst [vmem:[%s340 + $0x40] sm:$0xff] %v2831
        %2864 = vst [vmem:[%s340 + $0x48] sm:$0xff] %v2832
        %2865 = vst [vmem:[%s340 + $0x50] sm:$0xff] %v2833
        %2866 = vst [vmem:[%s340 + $0x58] sm:$0xff] %v2834
        %2867 = vst [vmem:[%s340 + $0x60] sm:$0xff] %v2835
        %2868 = vst [vmem:[%s340 + $0x68] sm:$0xff] %v2836
        %2869 = vst [vmem:[%s340 + $0x70] sm:$0xff] %v2837
        %2870 = vst [vmem:[%s340 + $0x78] sm:$0xff] %v2838
        %2871 = vst [vmem:[%s340 + $0x80] sm:$0xff] %v2839
        %2872 = vst [vmem:[%s340 + $0x88] sm:$0xff] %v2840
        %2873 = vst [vmem:[%s340 + $0x90] sm:$0xff] %v2841
        %2874 = vst [vmem:[%s340 + $0x98] sm:$0xff] %v2842
        %2875 = vst [vmem:[%s340 + $0xa0] sm:$0xff] %v2843
        %2876 = vst [vmem:[%s340 + $0xa8] sm:$0xff] %v2844
        %2877 = vst [vmem:[%s340 + $0xb0] sm:$0xff] %v2845
        %2878 = vst [vmem:[%s340 + $0xb8] sm:$0xff] %v2846
        %2879 = vst [vmem:[%s340 + $0xc0] sm:$0xff] %v2847
        %2880 = vst [vmem:[%s340 + $0xc8] sm:$0xff] %v2848
        %2881 = vst [vmem:[%s340 + $0xd0] sm:$0xff] %v2849
        %2882 = vst [vmem:[%s340 + $0xd8] sm:$0xff] %v2850
        %2883 = vst [vmem:[%s340 + $0xe0] sm:$0xff] %v2851
        %2884 = vst [vmem:[%s340 + $0xe8] sm:$0xff] %v2852
        %2885 = vst [vmem:[%s340 + $0xf0] sm:$0xff] %v2853
        %2886 = vst [vmem:[%s340 + $0xf8] sm:$0xff] %v2854
        %s2887 = sand.u32 %s186, 1
        %s2888 = scalar_lea.sflag [#allocation6], %s2887
        %s2889 = sand.u32 %s186, 1
        %s2890 = smul.addr %s2889, 256
        %s2891 = scalar_lea.vmem [#allocation12], %s2890
        // Predicated region
        $region65: #{tpu_custom_call.1} parent=47 // pred_check
          %p2892 = pneg %p196
        $region66: #{tpu_custom_call.1} parent=47 // pred_check_branch
          %2894 = sbr.rel (%p2892) target = $region68
        $region67: #{tpu_custom_call.1} parent=47 // pred_region
          %s2896 = ssub.s32 4096, 4096
          %2897 = vsyncadd %s2888, %s2896
          %s2898 = smul.addr %s26, 32
          %s2899 = smul.addr %s2898, 128
          %s2900 = scalar_lea.hbm %s7, %s2899
          %s2901 = sshll.u32 %s2891, 4
          %s2902 = int_to_ptr.vmem [resolvable:$true] %s2901
          %2907 = dma.vmem_to_hbm [thread:$0]  %s2902, 4096, %s2900, %s2888, 128, 128, 8
        $region68: #{tpu_custom_call.1} parent=47 // pred_fallthru
          _
      $region48: #{tpu_custom_call.1} parent=5 // pred_fallthru
        _
      %p2908 = scmp.le.s32.totalorder 2, %s21
      // Predicated region
      $region69: #{tpu_custom_call.1} parent=5 // pred_check
        %p2909 = pneg %p2908
      $region70: #{tpu_custom_call.1} parent=5 // pred_check_branch
        %2911 = sbr.rel (%p2909) target = $region72
      $region71: #{tpu_custom_call.1} parent=5 // pred_region
        %s2912 = ssub.s32 %s21, 2
        // Predicated region
        $region73: #{tpu_custom_call.1} parent=71 // pred_check
          %p2913 = pneg %p202
        $region74: #{tpu_custom_call.1} parent=71 // pred_check_branch
          %2915 = sbr.rel (%p2913) target = $region76
        $region75: #{tpu_custom_call.1} parent=71 // pred_region
          %s2916 = sand.u32 %s187, 1
          %s2917 = scalar_lea.sflag [#allocation6], %s2916
          %s2918 = sand.u32 %s187, 1
          %s2919 = smul.addr %s2918, 256
          %s2920 = scalar_lea.vmem [#allocation12], %s2919
          %2921 = dma.done %s2917, 4096
        $region76: #{tpu_custom_call.1} parent=71 // pred_fallthru
          _
      $region72: #{tpu_custom_call.1} parent=5 // pred_fallthru
        _
    $region6: #{tpu_custom_call.1} parent=1 // loop_footer
      %s25 = sadd.s32 1, %s21
    $region7: #{tpu_custom_call.1} parent=1 // loop_footer_branch
      %20 = sbr.rel target = $region3
    $region8: #{tpu_custom_call.1} parent=1 // loop_exit
      _
    %2922 = vsyncpa [#allocation5], 1
    %s2923 = scalar_lea.sflag [#allocation5], 1
    %2924 = vsyncpa %s2923, 1
    %2925 = vsyncpa [#allocation8], 1
    %2926 = vsyncpa [#allocation11], 1
    %2927 = vsyncpa [#allocation6], 1
    %s2928 = scalar_lea.sflag [#allocation6], 1
    %2929 = vsyncpa %s2928, 1

</llo_original>
